<compile_context>
chip_gen: v7x
topology: tpu7x:2x2x1
jax: 0.10.0
libtpu: 0.0.40
codegen_flags: <defaults>
</compile_context>

<pallas_src>
import jax
import jax.numpy as jnp
from jax.experimental import pallas as pl
from jax.experimental.pallas import tpu as pltpu

_MM_DTYPE = jnp.bfloat16  # matmul operand dtype (accumulation stays float32)


# ---------------------------------------------------------------------------
# Kernel 1: fused Er+Ec conv encoder, evaluated only at the stride-8 frames.
# ---------------------------------------------------------------------------
def _conv_relu_ds8(x, w2, b):
    """x: (B, T, Cin) f32, w2: (K*Cin, Cout) bf16 (k-major), b: (1, Cout) f32.

    Returns relu(conv1d(x, 'same'))[:, ::8, :] -> (B, T//8, Cout).
    """
    B, T, Cin = x.shape
    KCin, Cout = w2.shape
    K = KCin // Cin
    assert K * Cin == KCin and K % 2 == 1
    pad = (K - 1) // 2
    # Invariant (review): stride-8 subsampling + pad < 8 guarantees no
    # right-edge padding is ever read (max row = 8*(To-1) + pad < T).  Do not
    # change K / stride / pad without revisiting this.
    assert T % 8 == 0 and pad < 8
    To = T // 8

    def kernel(x_ref, w_ref, b_ref, o_ref):
        # im2col at the stride-8 output frames only: output frame j needs
        # rows 8j + (k - pad); only j == 0 with k < pad touches the zero pad.
        cols = []
        for k in range(K):
            d = k - pad
            if d >= 0:
                cols.append(x_ref[pl.ds(d, To, stride=8), :])
            elif To > 1:
                body = x_ref[pl.ds(8 + d, To - 1, stride=8), :]
                cols.append(jnp.concatenate(
                    [jnp.zeros((1, Cin), x_ref.dtype), body], axis=0))
            else:
                cols.append(jnp.zeros((To, Cin), x_ref.dtype))
        patches = jnp.concatenate(cols, axis=-1).astype(w_ref.dtype)  # (To, K*Cin)
        acc = jnp.dot(patches, w_ref[...], preferred_element_type=jnp.float32)
        o_ref[...] = jnp.maximum(acc + b_ref[...], 0.0)

    return pl.pallas_call(
        kernel,
        out_shape=jax.ShapeDtypeStruct((B, To, Cout), jnp.float32),
        grid=(B,),
        in_specs=[
            pl.BlockSpec((None, T, Cin), lambda i: (i, 0, 0)),
            pl.BlockSpec((KCin, Cout), lambda i: (0, 0)),
            pl.BlockSpec((1, Cout), lambda i: (0, 0)),
        ],
        out_specs=pl.BlockSpec((None, To, Cout), lambda i: (i, 0, 0)),
        compiler_params=pltpu.CompilerParams(dimension_semantics=("parallel",)),
    )(x, w2, b)


# ---------------------------------------------------------------------------
# Kernel 2: single-layer LSTM (fused i,f,g,o gates) + linear head, pipelined
# over time chunks with h/c state carried in persistent VMEM scratch.
# ---------------------------------------------------------------------------
def _pick_time_chunk(T, bytes_per_step, budget_bytes=4 << 20, max_chunk=256):
    cap = min(T, max_chunk,
              max(8, (budget_bytes // max(bytes_per_step, 1)) // 8 * 8))
    best = 8
    for tc in range(8, cap + 1, 8):
        if T % tc == 0:
            best = tc
    return best


def _lstm_project(rc_t, third_t, w_rc, w_3, w_hh, b_g, w_out, b_out, T):
    """rc_t: (T//8, B, Dr+Dc); third_t: (1, B, D3) or (T, B, D3).

    Returns (T, B, Dout) float32.  The reference's repeat_interleave(8) of
    rhythm/content is folded into the t//8 indexing of rc_t.
    """
    To, B, Drc = rc_t.shape
    Tt, _, D3 = third_t.shape
    H = w_hh.shape[0]
    G = 4 * H
    Dout = w_out.shape[1]
    assert To * 8 == T and Tt in (1, T)

    # Pad batch to a sublane multiple so batch-folded reshapes inside the
    # kernel are layout-preserving and matmul M rows are dense.
    Bp = ((B + 7) // 8) * 8
    if Bp != B:
        rc_t = jnp.pad(rc_t, ((0, 0), (0, Bp - B), (0, 0)))
        third_t = jnp.pad(third_t, ((0, 0), (0, Bp - B), (0, 0)))

    w_rc = w_rc.astype(_MM_DTYPE)
    w_3 = w_3.astype(_MM_DTYPE)
    w_out = w_out.astype(_MM_DTYPE)

    bytes_per_step = 4 * Bp * (2 * G + H + D3 + Dout)
    TC = _pick_time_chunk(T, bytes_per_step)   # time chunk (multiple of 8)
    nt = T // TC
    Toc = TC // 8
    U = 8                                      # unrolled recurrence window

    def kernel(rc_ref, t3_ref, wrc_ref, w3_ref, whh_ref, bg_ref, wout_ref,
               bout_ref, o_ref, x_sc, hist_sc, h_sc, c_sc):
        @pl.when(pl.program_id(0) == 0)
        def _():
            h_sc[...] = jnp.zeros_like(h_sc)
            c_sc[...] = jnp.zeros_like(c_sc)

        # ---- prologue (time-parallel): x_t = rc_proj[t//8] + third_proj + b
        rcp = jnp.dot(rc_ref[...].reshape(Toc * Bp, Drc).astype(_MM_DTYPE),
                      wrc_ref[...], preferred_element_type=jnp.float32)
        rcp = jnp.broadcast_to(rcp.reshape(Toc, 1, Bp, G),
                               (Toc, 8, Bp, G)).reshape(TC, Bp, G)
        if Tt == 1:
            t3 = jnp.dot(t3_ref[0].astype(_MM_DTYPE), w3_ref[...],
                         preferred_element_type=jnp.float32) + bg_ref[...]
            x_sc[...] = rcp + t3[None]
        else:
            t3 = jnp.dot(t3_ref[...].reshape(TC * Bp, D3).astype(_MM_DTYPE),
                         w3_ref[...], preferred_element_type=jnp.float32)
            x_sc[...] = rcp + t3.reshape(TC, Bp, G) + bg_ref[...][None]

        # ---- serial recurrence: one (Bp,H)x(H,4H) matmul + gates per step,
        #      h/c held in vregs through the fori carry.
        def chunk_body(q, hc):
            h, c = hc
            base = pl.multiple_of(q * U, U)
            for u in range(U):                      # static 8-step window
                t = base + u
                gates = x_sc[t] + jnp.dot(h, whh_ref[...],
                                          preferred_element_type=jnp.float32)
                i_g = jax.nn.sigmoid(gates[:, 0:H])
                f_g = jax.nn.sigmoid(gates[:, H:2 * H])
                g_g = jnp.tanh(gates[:, 2 * H:3 * H])
                o_g = jax.nn.sigmoid(gates[:, 3 * H:4 * H])
                c = f_g * c + i_g * g_g
                h = o_g * jnp.tanh(c)
                hist_sc[t] = h
            return (h, c)

        h_fin, c_fin = jax.lax.fori_loop(0, TC // U, chunk_body,
                                         (h_sc[...], c_sc[...]))
        h_sc[...] = h_fin
        c_sc[...] = c_fin

        # ---- epilogue (time-parallel): one (TC*Bp,H)x(H,Dout) projection,
        #      dense whole-block store.
        out = jnp.dot(hist_sc[...].reshape(TC * Bp, H).astype(_MM_DTYPE),
                      wout_ref[...], preferred_element_type=jnp.float32)
        o_ref[...] = (out + bout_ref[...]).reshape(TC, Bp, Dout)

    third_spec = (pl.BlockSpec((1, Bp, D3), lambda t: (0, 0, 0)) if Tt == 1
                  else pl.BlockSpec((TC, Bp, D3), lambda t: (t, 0, 0)))
    out = pl.pallas_call(
        kernel,
        out_shape=jax.ShapeDtypeStruct((T, Bp, Dout), jnp.float32),
        grid=(nt,),
        in_specs=[
            pl.BlockSpec((Toc, Bp, Drc), lambda t: (t, 0, 0)),
            third_spec,
            pl.BlockSpec((Drc, G), lambda t: (0, 0)),
            pl.BlockSpec((D3, G), lambda t: (0, 0)),
            pl.BlockSpec((H, G), lambda t: (0, 0)),
            pl.BlockSpec((1, G), lambda t: (0, 0)),
            pl.BlockSpec((H, Dout), lambda t: (0, 0)),
            pl.BlockSpec((1, Dout), lambda t: (0, 0)),
        ],
        out_specs=pl.BlockSpec((TC, Bp, Dout), lambda t: (t, 0, 0)),
        scratch_shapes=[
            pltpu.VMEM((TC, Bp, G), jnp.float32),   # precomputed gate inputs
            pltpu.VMEM((TC, Bp, H), jnp.float32),   # hidden-state history
            pltpu.VMEM((Bp, H), jnp.float32),       # h carry across chunks
            pltpu.VMEM((Bp, H), jnp.float32),       # c carry across chunks
        ],
        compiler_params=pltpu.CompilerParams(dimension_semantics=("arbitrary",)),
    )(rc_t, third_t, w_rc, w_3, w_hh, b_g, w_out, b_out)
    if Bp != B:
        out = out[:, :B]
    return out


# ---------------------------------------------------------------------------
# generator.forward
# ---------------------------------------------------------------------------
def generator_forward(voice, sp_id, params):
    """voice: (B, T, n_mel) [PyTorch `voice` before transpose], sp_id: (B, dim_spk)."""
    B, T, n_mel = voice.shape
    er_w, er_b = params["er_w"], params["er_b"]
    ec_w, ec_b = params["ec_w"], params["ec_b"]
    K = er_w.shape[0]
    dim_r = er_w.shape[2]
    dim_c = ec_w.shape[2]

    # Er/Ec fused along Cout; weights flattened k-major for the im2col matmul.
    enc_w = jnp.concatenate([er_w, ec_w], axis=2).reshape(
        K * n_mel, dim_r + dim_c).astype(_MM_DTYPE)
    enc_b = jnp.concatenate([er_b, ec_b], axis=1)

    rc = _conv_relu_ds8(voice, enc_w, enc_b)                 # (B, T//8, dr+dc)
    rhythm, content = rc[..., :dim_r], rc[..., dim_r:]
    rc_t = jnp.transpose(rc, (1, 0, 2))                      # (T//8, B, dr+dc)
    spk_t = sp_id[None, :, :]                                # (1, B, dim_spk)

    # P on (rhythm, content, speaker): W_ih split along Din (rc stays fused).
    p_wih = params["p_wih"]
    w_prc = p_wih[:dim_r + dim_c]
    w_ps = p_wih[dim_r + dim_c:]
    pitch_tb = _lstm_project(rc_t, spk_t, w_prc, w_ps,
                             params["p_whh"], params["p_b"],
                             params["p_wout"], params["p_bout"], T)  # (T,B,dp)
    pitch_p_repeat = jnp.transpose(pitch_tb, (1, 0, 2))      # identity in ref

    # Ds on (rhythm, content, pitch): pitch consumed directly in (T,B,·) layout.
    d_wih = params["d_wih"]
    w_drc = d_wih[:dim_r + dim_c]
    w_dp = d_wih[dim_r + dim_c:]
    mel_tb = _lstm_project(rc_t, pitch_tb, w_drc, w_dp,
                           params["d_whh"], params["d_b"],
                           params["d_wout"], params["d_bout"], T)    # (T,B,mel)
    mel_output = jnp.transpose(mel_tb, (1, 0, 2))            # (B, T, n_mel)

    # Er/Ec on the reconstructed mel, then P again with the speaker id.
    rc_r = _conv_relu_ds8(mel_output, enc_w, enc_b)
    rhythm_r, content_r = rc_r[..., :dim_r], rc_r[..., dim_r:]
    rc_r_t = jnp.transpose(rc_r, (1, 0, 2))
    pitch_r_tb = _lstm_project(rc_r_t, spk_t, w_prc, w_ps,
                               params["p_whh"], params["p_b"],
                               params["p_wout"], params["p_bout"], T)
    pitch_p_r = jnp.transpose(pitch_r_tb, (1, 0, 2))

    return (mel_output, pitch_p_repeat, rhythm, content,
            rhythm_r, content_r, pitch_p_r)


# ---------------------------------------------------------------------------
# Deterministic parameter construction + demo run
# ---------------------------------------------------------------------------
def make_params(key, *, n_mel, dim_r, dim_c, dim_spk, dim_p, hidden, k):
    keys = jax.random.split(key, 14)
    s = 0.15
    f32 = jnp.float32
    G = 4 * hidden
    din_p = dim_r + dim_c + dim_spk
    din_d = dim_r + dim_c + dim_p
    return {
        "er_w": jax.random.normal(keys[0], (k, n_mel, dim_r), f32) * s,
        "er_b": jax.random.normal(keys[1], (1, dim_r), f32) * s,
        "ec_w": jax.random.normal(keys[2], (k, n_mel, dim_c), f32) * s,
        "ec_b": jax.random.normal(keys[3], (1, dim_c), f32) * s,
        "p_wih": jax.random.normal(keys[4], (din_p, G), f32) * s,
        "p_whh": jax.random.normal(keys[5], (hidden, G), f32) * s,
        "p_b": jax.random.normal(keys[6], (1, G), f32) * s,
        "p_wout": jax.random.normal(keys[7], (hidden, dim_p), f32) * s,
        "p_bout": jax.random.normal(keys[8], (1, dim_p), f32) * s,
        "d_wih": jax.random.normal(keys[9], (din_d, G), f32) * s,
        "d_whh": jax.random.normal(keys[10], (hidden, G), f32) * s,
        "d_b": jax.random.normal(keys[11], (1, G), f32) * s,
        "d_wout": jax.random.normal(keys[12], (hidden, n_mel), f32) * s,
        "d_bout": jax.random.normal(keys[13], (1, n_mel), f32) * s,
    }


if __name__ == "__main__":
    B, T, N_MEL = 2, 16, 16          # T must be a multiple of 8
    DIM_R, DIM_C, DIM_SPK, DIM_P = 4, 8, 8, 4
    HIDDEN, K = 16, 5

    root = jax.random.PRNGKey(0)
    k_params, k_voice, k_spk = jax.random.split(root, 3)
    params = make_params(k_params, n_mel=N_MEL, dim_r=DIM_R, dim_c=DIM_C,
                         dim_spk=DIM_SPK, dim_p=DIM_P, hidden=HIDDEN, k=K)
    voice = jax.random.normal(k_voice, (B, T, N_MEL), jnp.float32)
    sp_id = jax.random.normal(k_spk, (B, DIM_SPK), jnp.float32)

    fwd = jax.jit(generator_forward)
    outs = jax.block_until_ready(fwd(voice, sp_id, params))

    (mel_output, pitch_p, rhythm, content, rhythm_r, content_r, pitch_p_r) = outs
    assert mel_output.shape == (B, T, N_MEL)
    assert pitch_p.shape == (B, T, DIM_P)
    assert rhythm.shape == (B, T // 8, DIM_R)
    assert content.shape == (B, T // 8, DIM_C)
    assert rhythm_r.shape == (B, T // 8, DIM_R)
    assert content_r.shape == (B, T // 8, DIM_C)
    assert pitch_p_r.shape == (B, T, DIM_P)
    assert all(bool(jnp.isfinite(o).all()) for o in outs)
    print("KERNEL_OK")
</pallas_src>

<mosaic_0001>
module attributes {stable_mosaic.version = 11 : i64} {
  func.func @kernel(%arg0: i32, %arg1: memref<1x16x16xf32, #tpu.memory_space<vmem>>, %arg2: memref<80x12xbf16, #tpu.memory_space<vmem>>, %arg3: memref<1x12xf32, #tpu.memory_space<vmem>>, %arg4: memref<1x2x12xf32, #tpu.memory_space<vmem>>) attributes {dimension_semantics = [#tpu.dimension_semantics<parallel>], iteration_bounds = array<i64: 2>, scalar_prefetch = 0 : i64, scratch_operands = 0 : i64, tpu.core_type = #tpu.core_type<tc>, window_params = [{transform_indices = @transform_0, window_bounds = array<i64: 1, 16, 16>}, {pipeline_mode = #tpu.pipeline_mode<synchronous>, transform_indices = @transform_1, window_bounds = array<i64: 80, 12>}, {pipeline_mode = #tpu.pipeline_mode<synchronous>, transform_indices = @transform_2, window_bounds = array<i64: 1, 12>}, {transform_indices = @transform_3, window_bounds = array<i64: 1, 2, 12>}]} {
    %c0 = arith.constant 0 : index
    %c6 = arith.constant 6 : index
    %c0_0 = arith.constant 0 : index
    %0 = tpu.strided_load %arg1[%c0, %c6, %c0_0] {strides = array<i32: 1, 8, 1>} : memref<1x16x16xf32, #tpu.memory_space<vmem>>, vector<1x1x16xf32>
    %1 = vector.shape_cast %0 : vector<1x1x16xf32> to vector<1x16xf32>
    %cst = arith.constant 0.000000e+00 : f32
    %2 = vector.broadcast %cst : f32 to vector<1x16xf32>
    %3 = tpu.concatenate %2, %1 in 0 : vector<1x16xf32>, vector<1x16xf32> -> vector<2x16xf32>
    %c0_1 = arith.constant 0 : index
    %c7 = arith.constant 7 : index
    %c0_2 = arith.constant 0 : index
    %4 = tpu.strided_load %arg1[%c0_1, %c7, %c0_2] {strides = array<i32: 1, 8, 1>} : memref<1x16x16xf32, #tpu.memory_space<vmem>>, vector<1x1x16xf32>
    %5 = vector.shape_cast %4 : vector<1x1x16xf32> to vector<1x16xf32>
    %cst_3 = arith.constant 0.000000e+00 : f32
    %6 = vector.broadcast %cst_3 : f32 to vector<1x16xf32>
    %7 = tpu.concatenate %6, %5 in 0 : vector<1x16xf32>, vector<1x16xf32> -> vector<2x16xf32>
    %c0_4 = arith.constant 0 : index
    %c0_5 = arith.constant 0 : index
    %c0_6 = arith.constant 0 : index
    %8 = tpu.strided_load %arg1[%c0_4, %c0_5, %c0_6] {strides = array<i32: 1, 8, 1>} : memref<1x16x16xf32, #tpu.memory_space<vmem>>, vector<1x2x16xf32>
    %9 = vector.shape_cast %8 : vector<1x2x16xf32> to vector<2x16xf32>
    %c0_7 = arith.constant 0 : index
    %c1 = arith.constant 1 : index
    %c0_8 = arith.constant 0 : index
    %10 = tpu.strided_load %arg1[%c0_7, %c1, %c0_8] {strides = array<i32: 1, 8, 1>} : memref<1x16x16xf32, #tpu.memory_space<vmem>>, vector<1x2x16xf32>
    %11 = vector.shape_cast %10 : vector<1x2x16xf32> to vector<2x16xf32>
    %c0_9 = arith.constant 0 : index
    %c2 = arith.constant 2 : index
    %c0_10 = arith.constant 0 : index
    %12 = tpu.strided_load %arg1[%c0_9, %c2, %c0_10] {strides = array<i32: 1, 8, 1>} : memref<1x16x16xf32, #tpu.memory_space<vmem>>, vector<1x2x16xf32>
    %13 = vector.shape_cast %12 : vector<1x2x16xf32> to vector<2x16xf32>
    %14 = tpu.concatenate %3, %7, %9, %11, %13 in 1 : vector<2x16xf32>, vector<2x16xf32>, vector<2x16xf32>, vector<2x16xf32>, vector<2x16xf32> -> vector<2x80xf32>
    %15 = arith.truncf %14 : vector<2x80xf32> to vector<2x80xbf16>
    %c0_11 = arith.constant 0 : index
    %c0_12 = arith.constant 0 : index
    %16 = vector.load %arg2[%c0_11, %c0_12] : memref<80x12xbf16, #tpu.memory_space<vmem>>, vector<80x12xbf16>
    %cst_13 = arith.constant dense<0.000000e+00> : vector<2x12xf32>
    %17 = tpu.matmul %15, %16, %cst_13 {dimension_numbers = #tpu.dot_dimension_numbers<[1], [0], [0], [1], [0, 0, 1, 1], [], []>} : vector<2x80xbf16>, vector<80x12xbf16>, vector<2x12xf32> -> vector<2x12xf32>
    %c0_14 = arith.constant 0 : index
    %c0_15 = arith.constant 0 : index
    %18 = vector.load %arg3[%c0_14, %c0_15] : memref<1x12xf32, #tpu.memory_space<vmem>>, vector<1x12xf32>
    %19 = vector.broadcast %18 : vector<1x12xf32> to vector<2x12xf32>
    %20 = arith.addf %17, %19 : vector<2x12xf32>
    %cst_16 = arith.constant 0.000000e+00 : f32
    %21 = vector.broadcast %cst_16 : f32 to vector<2x12xf32>
    %22 = arith.maximumf %20, %21 : vector<2x12xf32>
    %c0_17 = arith.constant 0 : index
    %c0_18 = arith.constant 0 : index
    %c0_19 = arith.constant 0 : index
    %23 = vector.load %arg4[%c0_17, %c0_18, %c0_19] : memref<1x2x12xf32, #tpu.memory_space<vmem>>, vector<1x2x12xf32>
    %24 = vector.shape_cast %23 : vector<1x2x12xf32> to vector<2x12xf32>
    %25 = vector.shape_cast %22 : vector<2x12xf32> to vector<1x2x12xf32>
    tpu.vector_store %arg4[%c0_17, %c0_18, %c0_19], %25 {strides = array<i32>} : memref<1x2x12xf32, #tpu.memory_space<vmem>>, vector<1x2x12xf32>,
    return
  }
  func.func @transform_0(%arg0: i32) -> (i32, i32, i32) {
    %c0_i32 = arith.constant 0 : i32
    %c0_i32_0 = arith.constant 0 : i32
    %c0_i32_1 = arith.constant 0 : i32
    return %arg0, %c0_i32, %c0_i32_0 : i32, i32, i32
  }
  func.func @transform_1(%arg0: i32) -> (i32, i32) {
    %c0_i32 = arith.constant 0 : i32
    %c0_i32_0 = arith.constant 0 : i32
    %c0_i32_1 = arith.constant 0 : i32
    return %c0_i32, %c0_i32_0 : i32, i32
  }
  func.func @transform_2(%arg0: i32) -> (i32, i32) {
    %c0_i32 = arith.constant 0 : i32
    %c0_i32_0 = arith.constant 0 : i32
    %c0_i32_1 = arith.constant 0 : i32
    return %c0_i32, %c0_i32_0 : i32, i32
  }
  func.func @transform_3(%arg0: i32) -> (i32, i32, i32) {
    %c0_i32 = arith.constant 0 : i32
    %c0_i32_0 = arith.constant 0 : i32
    %c0_i32_1 = arith.constant 0 : i32
    return %arg0, %c0_i32, %c0_i32_0 : i32, i32, i32
  }
}

module attributes {stable_mosaic.version = 11 : i64} {
  func.func @kernel(%arg0: i32, %arg1: memref<2x8x12xf32, #tpu.memory_space<vmem>>, %arg2: memref<1x8x8xf32, #tpu.memory_space<vmem>>, %arg3: memref<12x64xbf16, #tpu.memory_space<vmem>>, %arg4: memref<8x64xbf16, #tpu.memory_space<vmem>>, %arg5: memref<16x64xf32, #tpu.memory_space<vmem>>, %arg6: memref<1x64xf32, #tpu.memory_space<vmem>>, %arg7: memref<16x4xbf16, #tpu.memory_space<vmem>>, %arg8: memref<1x4xf32, #tpu.memory_space<vmem>>, %arg9: memref<16x8x4xf32, #tpu.memory_space<vmem>>, %arg10: memref<16x8x64xf32, #tpu.memory_space<vmem>>, %arg11: memref<16x8x16xf32, #tpu.memory_space<vmem>>, %arg12: memref<8x16xf32, #tpu.memory_space<vmem>>, %arg13: memref<8x16xf32, #tpu.memory_space<vmem>>) attributes {dimension_semantics = [#tpu.dimension_semantics<arbitrary>], iteration_bounds = array<i64: 1>, scalar_prefetch = 0 : i64, scratch_operands = 4 : i64, tpu.core_type = #tpu.core_type<tc>, window_params = [{transform_indices = @transform_0, window_bounds = array<i64: 2, 8, 12>}, {pipeline_mode = #tpu.pipeline_mode<synchronous>, transform_indices = @transform_1, window_bounds = array<i64: 1, 8, 8>}, {pipeline_mode = #tpu.pipeline_mode<synchronous>, transform_indices = @transform_2, window_bounds = array<i64: 12, 64>}, {pipeline_mode = #tpu.pipeline_mode<synchronous>, transform_indices = @transform_3, window_bounds = array<i64: 8, 64>}, {pipeline_mode = #tpu.pipeline_mode<synchronous>, transform_indices = @transform_4, window_bounds = array<i64: 16, 64>}, {pipeline_mode = #tpu.pipeline_mode<synchronous>, transform_indices = @transform_5, window_bounds = array<i64: 1, 64>}, {pipeline_mode = #tpu.pipeline_mode<synchronous>, transform_indices = @transform_6, window_bounds = array<i64: 16, 4>}, {pipeline_mode = #tpu.pipeline_mode<synchronous>, transform_indices = @transform_7, window_bounds = array<i64: 1, 4>}, {transform_indices = @transform_8, window_bounds = array<i64: 16, 8, 4>}]} {
    %c0_i32 = arith.constant 0 : i32
    %0 = arith.cmpi eq, %arg0, %c0_i32 : i32
    %1 = arith.extui %0 : i1 to i32
    %c0_i32_0 = arith.constant 0 : i32
    %2 = arith.cmpi ne, %1, %c0_i32_0 : i32
    scf.if %2 {
      %cst_37 = arith.constant 0.000000e+00 : f32
      %40 = vector.broadcast %cst_37 : f32 to vector<8x16xf32>
      %c0_38 = arith.constant 0 : index
      %c0_39 = arith.constant 0 : index
      %41 = vector.load %arg12[%c0_38, %c0_39] : memref<8x16xf32, #tpu.memory_space<vmem>>, vector<8x16xf32>
      tpu.vector_store %arg12[%c0_38, %c0_39], %40 {strides = array<i32>} : memref<8x16xf32, #tpu.memory_space<vmem>>, vector<8x16xf32>,
      %cst_40 = arith.constant 0.000000e+00 : f32
      %42 = vector.broadcast %cst_40 : f32 to vector<8x16xf32>
      %c0_41 = arith.constant 0 : index
      %c0_42 = arith.constant 0 : index
      %43 = vector.load %arg13[%c0_41, %c0_42] : memref<8x16xf32, #tpu.memory_space<vmem>>, vector<8x16xf32>
      tpu.vector_store %arg13[%c0_41, %c0_42], %42 {strides = array<i32>} : memref<8x16xf32, #tpu.memory_space<vmem>>, vector<8x16xf32>,
    } else {
    }
    %c0 = arith.constant 0 : index
    %c0_1 = arith.constant 0 : index
    %c0_2 = arith.constant 0 : index
    %3 = vector.load %arg1[%c0, %c0_1, %c0_2] : memref<2x8x12xf32, #tpu.memory_space<vmem>>, vector<2x8x12xf32>
    %4 = vector.shape_cast %3 : vector<2x8x12xf32> to vector<16x12xf32>
    %5 = arith.truncf %4 : vector<16x12xf32> to vector<16x12xbf16>
    %c0_3 = arith.constant 0 : index
    %c0_4 = arith.constant 0 : index
    %6 = vector.load %arg3[%c0_3, %c0_4] : memref<12x64xbf16, #tpu.memory_space<vmem>>, vector<12x64xbf16>
    %cst = arith.constant dense<0.000000e+00> : vector<16x64xf32>
    %7 = tpu.matmul %5, %6, %cst {dimension_numbers = #tpu.dot_dimension_numbers<[1], [0], [0], [1], [0, 0, 1, 1], [], []>} : vector<16x12xbf16>, vector<12x64xbf16>, vector<16x64xf32> -> vector<16x64xf32>
    %8 = vector.shape_cast %7 : vector<16x64xf32> to vector<2x1x8x64xf32>
    %9 = vector.shape_cast %8 : vector<2x1x8x64xf32> to vector<2x1x8x64xf32>
    %10 = vector.broadcast %9 : vector<2x1x8x64xf32> to vector<2x8x8x64xf32>
    %11 = vector.shape_cast %10 : vector<2x8x8x64xf32> to vector<16x8x64xf32>
    %c0_5 = arith.constant 0 : index
    %c0_6 = arith.constant 0 : index
    %c0_7 = arith.constant 0 : index
    %12 = vector.load %arg2[%c0_5, %c0_6, %c0_7] : memref<1x8x8xf32, #tpu.memory_space<vmem>>, vector<1x8x8xf32>
    %13 = vector.shape_cast %12 : vector<1x8x8xf32> to vector<8x8xf32>
    %14 = arith.truncf %13 : vector<8x8xf32> to vector<8x8xbf16>
    %c0_8 = arith.constant 0 : index
    %c0_9 = arith.constant 0 : index
    %15 = vector.load %arg4[%c0_8, %c0_9] : memref<8x64xbf16, #tpu.memory_space<vmem>>, vector<8x64xbf16>
    %cst_10 = arith.constant dense<0.000000e+00> : vector<8x64xf32>
    %16 = tpu.matmul %14, %15, %cst_10 {dimension_numbers = #tpu.dot_dimension_numbers<[1], [0], [0], [1], [0, 0, 1, 1], [], []>} : vector<8x8xbf16>, vector<8x64xbf16>, vector<8x64xf32> -> vector<8x64xf32>
    %c0_11 = arith.constant 0 : index
    %c0_12 = arith.constant 0 : index
    %17 = vector.load %arg6[%c0_11, %c0_12] : memref<1x64xf32, #tpu.memory_space<vmem>>, vector<1x64xf32>
    %18 = vector.broadcast %17 : vector<1x64xf32> to vector<8x64xf32>
    %19 = arith.addf %16, %18 : vector<8x64xf32>
    %20 = vector.shape_cast %19 : vector<8x64xf32> to vector<1x8x64xf32>
    %21 = vector.broadcast %20 : vector<1x8x64xf32> to vector<16x8x64xf32>
    %22 = arith.addf %11, %21 : vector<16x8x64xf32>
    %c0_13 = arith.constant 0 : index
    %c0_14 = arith.constant 0 : index
    %c0_15 = arith.constant 0 : index
    %23 = vector.load %arg10[%c0_13, %c0_14, %c0_15] : memref<16x8x64xf32, #tpu.memory_space<vmem>>, vector<16x8x64xf32>
    tpu.vector_store %arg10[%c0_13, %c0_14, %c0_15], %22 {strides = array<i32>} : memref<16x8x64xf32, #tpu.memory_space<vmem>>, vector<16x8x64xf32>,
    %c0_16 = arith.constant 0 : index
    %c0_17 = arith.constant 0 : index
    %24 = vector.load %arg12[%c0_16, %c0_17] : memref<8x16xf32, #tpu.memory_space<vmem>>, vector<8x16xf32>
    %c0_18 = arith.constant 0 : index
    %c0_19 = arith.constant 0 : index
    %25 = vector.load %arg13[%c0_18, %c0_19] : memref<8x16xf32, #tpu.memory_space<vmem>>, vector<8x16xf32>
    %c0_i32_20 = arith.constant 0 : i32
    %c2_i32 = arith.constant 2 : i32
    %26 = arith.addi %c0_i32_20, %c2_i32 : i32
    %c1_i32 = arith.constant 1 : i32
    %27:2 = scf.for %arg14 = %c0_i32_20 to %26 step %c1_i32 iter_args(%arg15 = %24, %arg16 = %25) -> (vector<8x16xf32>, vector<8x16xf32>)  : i32 {
      %c8_i32 = arith.constant 8 : i32
      %40 = arith.muli %arg14, %c8_i32 : i32
      %41 = tpu.assume_multiple %40, 8 : i32
      %c0_i32_37 = arith.constant 0 : i32
      %42 = arith.addi %41, %c0_i32_37 : i32
      %43 = arith.index_cast %42 : i32 to index
      %c0_38 = arith.constant 0 : index
      %c0_39 = arith.constant 0 : index
      %44 = vector.load %arg10[%43, %c0_38, %c0_39] : memref<16x8x64xf32, #tpu.memory_space<vmem>>, vector<1x8x64xf32>
      %45 = vector.shape_cast %44 : vector<1x8x64xf32> to vector<8x64xf32>
      %c0_40 = arith.constant 0 : index
      %c0_41 = arith.constant 0 : index
      %46 = vector.load %arg5[%c0_40, %c0_41] : memref<16x64xf32, #tpu.memory_space<vmem>>, vector<16x64xf32>
      %cst_42 = arith.constant dense<0.000000e+00> : vector<8x64xf32>
      %47 = tpu.matmul %arg15, %46, %cst_42 {dimension_numbers = #tpu.dot_dimension_numbers<[1], [0], [0], [1], [0, 0, 1, 1], [], []>} : vector<8x16xf32>, vector<16x64xf32>, vector<8x64xf32> -> vector<8x64xf32>
      %48 = arith.addf %45, %47 : vector<8x64xf32>
      %49 = vector.extract_strided_slice %48 {offsets = [0, 0], sizes = [8, 16], strides = [1, 1]} : vector<8x64xf32> to vector<8x16xf32>
      %50 = arith.negf %49 : vector<8x16xf32>
      %51 = math.exp %50 : vector<8x16xf32>
      %cst_43 = arith.constant 1.000000e+00 : f32
      %52 = vector.broadcast %cst_43 : f32 to vector<8x16xf32>
      %53 = arith.addf %52, %51 : vector<8x16xf32>
      %54 = arith.divf %52, %53 : vector<8x16xf32>
      %55 = vector.extract_strided_slice %48 {offsets = [0, 16], sizes = [8, 16], strides = [1, 1]} : vector<8x64xf32> to vector<8x16xf32>
      %56 = arith.negf %55 : vector<8x16xf32>
      %57 = math.exp %56 : vector<8x16xf32>
      %cst_44 = arith.constant 1.000000e+00 : f32
      %58 = vector.broadcast %cst_44 : f32 to vector<8x16xf32>
      %59 = arith.addf %58, %57 : vector<8x16xf32>
      %60 = arith.divf %58, %59 : vector<8x16xf32>
      %61 = vector.extract_strided_slice %48 {offsets = [0, 32], sizes = [8, 16], strides = [1, 1]} : vector<8x64xf32> to vector<8x16xf32>
      %62 = math.tanh %61 : vector<8x16xf32>
      %63 = vector.extract_strided_slice %48 {offsets = [0, 48], sizes = [8, 16], strides = [1, 1]} : vector<8x64xf32> to vector<8x16xf32>
      %64 = arith.negf %63 : vector<8x16xf32>
      %65 = math.exp %64 : vector<8x16xf32>
      %cst_45 = arith.constant 1.000000e+00 : f32
      %66 = vector.broadcast %cst_45 : f32 to vector<8x16xf32>
      %67 = arith.addf %66, %65 : vector<8x16xf32>
      %68 = arith.divf %66, %67 : vector<8x16xf32>
      %69 = arith.mulf %60, %arg16 : vector<8x16xf32>
      %70 = arith.mulf %54, %62 : vector<8x16xf32>
      %71 = arith.addf %69, %70 : vector<8x16xf32>
      %72 = math.tanh %71 : vector<8x16xf32>
      %73 = arith.mulf %68, %72 : vector<8x16xf32>
      %74 = arith.index_cast %42 : i32 to index
      %c0_46 = arith.constant 0 : index
      %c0_47 = arith.constant 0 : index
      %75 = vector.load %arg11[%74, %c0_46, %c0_47] : memref<16x8x16xf32, #tpu.memory_space<vmem>>, vector<1x8x16xf32>
      %76 = vector.shape_cast %75 : vector<1x8x16xf32> to vector<8x16xf32>
      %77 = vector.shape_cast %73 : vector<8x16xf32> to vector<1x8x16xf32>
      tpu.vector_store %arg11[%74, %c0_46, %c0_47], %77 {strides = array<i32>} : memref<16x8x16xf32, #tpu.memory_space<vmem>>, vector<1x8x16xf32>,
      %c1_i32_48 = arith.constant 1 : i32
      %78 = arith.addi %41, %c1_i32_48 : i32
      %79 = arith.index_cast %78 : i32 to index
      %c0_49 = arith.constant 0 : index
      %c0_50 = arith.constant 0 : index
      %80 = vector.load %arg10[%79, %c0_49, %c0_50] : memref<16x8x64xf32, #tpu.memory_space<vmem>>, vector<1x8x64xf32>
      %81 = vector.shape_cast %80 : vector<1x8x64xf32> to vector<8x64xf32>
      %c0_51 = arith.constant 0 : index
      %c0_52 = arith.constant 0 : index
      %82 = vector.load %arg5[%c0_51, %c0_52] : memref<16x64xf32, #tpu.memory_space<vmem>>, vector<16x64xf32>
      %cst_53 = arith.constant dense<0.000000e+00> : vector<8x64xf32>
      %83 = tpu.matmul %73, %82, %cst_53 {dimension_numbers = #tpu.dot_dimension_numbers<[1], [0], [0], [1], [0, 0, 1, 1], [], []>} : vector<8x16xf32>, vector<16x64xf32>, vector<8x64xf32> -> vector<8x64xf32>
      %84 = arith.addf %81, %83 : vector<8x64xf32>
      %85 = vector.extract_strided_slice %84 {offsets = [0, 0], sizes = [8, 16], strides = [1, 1]} : vector<8x64xf32> to vector<8x16xf32>
      %86 = arith.negf %85 : vector<8x16xf32>
      %87 = math.exp %86 : vector<8x16xf32>
      %cst_54 = arith.constant 1.000000e+00 : f32
      %88 = vector.broadcast %cst_54 : f32 to vector<8x16xf32>
      %89 = arith.addf %88, %87 : vector<8x16xf32>
      %90 = arith.divf %88, %89 : vector<8x16xf32>
      %91 = vector.extract_strided_slice %84 {offsets = [0, 16], sizes = [8, 16], strides = [1, 1]} : vector<8x64xf32> to vector<8x16xf32>
      %92 = arith.negf %91 : vector<8x16xf32>
      %93 = math.exp %92 : vector<8x16xf32>
      %cst_55 = arith.constant 1.000000e+00 : f32
      %94 = vector.broadcast %cst_55 : f32 to vector<8x16xf32>
      %95 = arith.addf %94, %93 : vector<8x16xf32>
      %96 = arith.divf %94, %95 : vector<8x16xf32>
      %97 = vector.extract_strided_slice %84 {offsets = [0, 32], sizes = [8, 16], strides = [1, 1]} : vector<8x64xf32> to vector<8x16xf32>
      %98 = math.tanh %97 : vector<8x16xf32>
      %99 = vector.extract_strided_slice %84 {offsets = [0, 48], sizes = [8, 16], strides = [1, 1]} : vector<8x64xf32> to vector<8x16xf32>
      %100 = arith.negf %99 : vector<8x16xf32>
      %101 = math.exp %100 : vector<8x16xf32>
      %cst_56 = arith.constant 1.000000e+00 : f32
      %102 = vector.broadcast %cst_56 : f32 to vector<8x16xf32>
      %103 = arith.addf %102, %101 : vector<8x16xf32>
      %104 = arith.divf %102, %103 : vector<8x16xf32>
      %105 = arith.mulf %96, %71 : vector<8x16xf32>
      %106 = arith.mulf %90, %98 : vector<8x16xf32>
      %107 = arith.addf %105, %106 : vector<8x16xf32>
      %108 = math.tanh %107 : vector<8x16xf32>
      %109 = arith.mulf %104, %108 : vector<8x16xf32>
      %110 = arith.index_cast %78 : i32 to index
      %c0_57 = arith.constant 0 : index
      %c0_58 = arith.constant 0 : index
      %111 = vector.load %arg11[%110, %c0_57, %c0_58] : memref<16x8x16xf32, #tpu.memory_space<vmem>>, vector<1x8x16xf32>
      %112 = vector.shape_cast %111 : vector<1x8x16xf32> to vector<8x16xf32>
      %113 = vector.shape_cast %109 : vector<8x16xf32> to vector<1x8x16xf32>
      tpu.vector_store %arg11[%110, %c0_57, %c0_58], %113 {strides = array<i32>} : memref<16x8x16xf32, #tpu.memory_space<vmem>>, vector<1x8x16xf32>,
      %c2_i32_59 = arith.constant 2 : i32
      %114 = arith.addi %41, %c2_i32_59 : i32
      %115 = arith.index_cast %114 : i32 to index
      %c0_60 = arith.constant 0 : index
      %c0_61 = arith.constant 0 : index
      %116 = vector.load %arg10[%115, %c0_60, %c0_61] : memref<16x8x64xf32, #tpu.memory_space<vmem>>, vector<1x8x64xf32>
      %117 = vector.shape_cast %116 : vector<1x8x64xf32> to vector<8x64xf32>
      %c0_62 = arith.constant 0 : index
      %c0_63 = arith.constant 0 : index
      %118 = vector.load %arg5[%c0_62, %c0_63] : memref<16x64xf32, #tpu.memory_space<vmem>>, vector<16x64xf32>
      %cst_64 = arith.constant dense<0.000000e+00> : vector<8x64xf32>
      %119 = tpu.matmul %109, %118, %cst_64 {dimension_numbers = #tpu.dot_dimension_numbers<[1], [0], [0], [1], [0, 0, 1, 1], [], []>} : vector<8x16xf32>, vector<16x64xf32>, vector<8x64xf32> -> vector<8x64xf32>
      %120 = arith.addf %117, %119 : vector<8x64xf32>
      %121 = vector.extract_strided_slice %120 {offsets = [0, 0], sizes = [8, 16], strides = [1, 1]} : vector<8x64xf32> to vector<8x16xf32>
      %122 = arith.negf %121 : vector<8x16xf32>
      %123 = math.exp %122 : vector<8x16xf32>
      %cst_65 = arith.constant 1.000000e+00 : f32
      %124 = vector.broadcast %cst_65 : f32 to vector<8x16xf32>
      %125 = arith.addf %124, %123 : vector<8x16xf32>
      %126 = arith.divf %124, %125 : vector<8x16xf32>
      %127 = vector.extract_strided_slice %120 {offsets = [0, 16], sizes = [8, 16], strides = [1, 1]} : vector<8x64xf32> to vector<8x16xf32>
      %128 = arith.negf %127 : vector<8x16xf32>
      %129 = math.exp %128 : vector<8x16xf32>
      %cst_66 = arith.constant 1.000000e+00 : f32
      %130 = vector.broadcast %cst_66 : f32 to vector<8x16xf32>
      %131 = arith.addf %130, %129 : vector<8x16xf32>
      %132 = arith.divf %130, %131 : vector<8x16xf32>
      %133 = vector.extract_strided_slice %120 {offsets = [0, 32], sizes = [8, 16], strides = [1, 1]} : vector<8x64xf32> to vector<8x16xf32>
      %134 = math.tanh %133 : vector<8x16xf32>
      %135 = vector.extract_strided_slice %120 {offsets = [0, 48], sizes = [8, 16], strides = [1, 1]} : vector<8x64xf32> to vector<8x16xf32>
      %136 = arith.negf %135 : vector<8x16xf32>
      %137 = math.exp %136 : vector<8x16xf32>
      %cst_67 = arith.constant 1.000000e+00 : f32
      %138 = vector.broadcast %cst_67 : f32 to vector<8x16xf32>
      %139 = arith.addf %138, %137 : vector<8x16xf32>
      %140 = arith.divf %138, %139 : vector<8x16xf32>
      %141 = arith.mulf %132, %107 : vector<8x16xf32>
      %142 = arith.mulf %126, %134 : vector<8x16xf32>
      %143 = arith.addf %141, %142 : vector<8x16xf32>
      %144 = math.tanh %143 : vector<8x16xf32>
      %145 = arith.mulf %140, %144 : vector<8x16xf32>
      %146 = arith.index_cast %114 : i32 to index
      %c0_68 = arith.constant 0 : index
      %c0_69 = arith.constant 0 : index
      %147 = vector.load %arg11[%146, %c0_68, %c0_69] : memref<16x8x16xf32, #tpu.memory_space<vmem>>, vector<1x8x16xf32>
      %148 = vector.shape_cast %147 : vector<1x8x16xf32> to vector<8x16xf32>
      %149 = vector.shape_cast %145 : vector<8x16xf32> to vector<1x8x16xf32>
      tpu.vector_store %arg11[%146, %c0_68, %c0_69], %149 {strides = array<i32>} : memref<16x8x16xf32, #tpu.memory_space<vmem>>, vector<1x8x16xf32>,
      %c3_i32 = arith.constant 3 : i32
      %150 = arith.addi %41, %c3_i32 : i32
      %151 = arith.index_cast %150 : i32 to index
      %c0_70 = arith.constant 0 : index
      %c0_71 = arith.constant 0 : index
      %152 = vector.load %arg10[%151, %c0_70, %c0_71] : memref<16x8x64xf32, #tpu.memory_space<vmem>>, vector<1x8x64xf32>
      %153 = vector.shape_cast %152 : vector<1x8x64xf32> to vector<8x64xf32>
      %c0_72 = arith.constant 0 : index
      %c0_73 = arith.constant 0 : index
      %154 = vector.load %arg5[%c0_72, %c0_73] : memref<16x64xf32, #tpu.memory_space<vmem>>, vector<16x64xf32>
      %cst_74 = arith.constant dense<0.000000e+00> : vector<8x64xf32>
      %155 = tpu.matmul %145, %154, %cst_74 {dimension_numbers = #tpu.dot_dimension_numbers<[1], [0], [0], [1], [0, 0, 1, 1], [], []>} : vector<8x16xf32>, vector<16x64xf32>, vector<8x64xf32> -> vector<8x64xf32>
      %156 = arith.addf %153, %155 : vector<8x64xf32>
      %157 = vector.extract_strided_slice %156 {offsets = [0, 0], sizes = [8, 16], strides = [1, 1]} : vector<8x64xf32> to vector<8x16xf32>
      %158 = arith.negf %157 : vector<8x16xf32>
      %159 = math.exp %158 : vector<8x16xf32>
      %cst_75 = arith.constant 1.000000e+00 : f32
      %160 = vector.broadcast %cst_75 : f32 to vector<8x16xf32>
      %161 = arith.addf %160, %159 : vector<8x16xf32>
      %162 = arith.divf %160, %161 : vector<8x16xf32>
      %163 = vector.extract_strided_slice %156 {offsets = [0, 16], sizes = [8, 16], strides = [1, 1]} : vector<8x64xf32> to vector<8x16xf32>
      %164 = arith.negf %163 : vector<8x16xf32>
      %165 = math.exp %164 : vector<8x16xf32>
      %cst_76 = arith.constant 1.000000e+00 : f32
      %166 = vector.broadcast %cst_76 : f32 to vector<8x16xf32>
      %167 = arith.addf %166, %165 : vector<8x16xf32>
      %168 = arith.divf %166, %167 : vector<8x16xf32>
      %169 = vector.extract_strided_slice %156 {offsets = [0, 32], sizes = [8, 16], strides = [1, 1]} : vector<8x64xf32> to vector<8x16xf32>
      %170 = math.tanh %169 : vector<8x16xf32>
      %171 = vector.extract_strided_slice %156 {offsets = [0, 48], sizes = [8, 16], strides = [1, 1]} : vector<8x64xf32> to vector<8x16xf32>
      %172 = arith.negf %171 : vector<8x16xf32>
      %173 = math.exp %172 : vector<8x16xf32>
      %cst_77 = arith.constant 1.000000e+00 : f32
      %174 = vector.broadcast %cst_77 : f32 to vector<8x16xf32>
      %175 = arith.addf %174, %173 : vector<8x16xf32>
      %176 = arith.divf %174, %175 : vector<8x16xf32>
      %177 = arith.mulf %168, %143 : vector<8x16xf32>
      %178 = arith.mulf %162, %170 : vector<8x16xf32>
      %179 = arith.addf %177, %178 : vector<8x16xf32>
      %180 = math.tanh %179 : vector<8x16xf32>
      %181 = arith.mulf %176, %180 : vector<8x16xf32>
      %182 = arith.index_cast %150 : i32 to index
      %c0_78 = arith.constant 0 : index
      %c0_79 = arith.constant 0 : index
      %183 = vector.load %arg11[%182, %c0_78, %c0_79] : memref<16x8x16xf32, #tpu.memory_space<vmem>>, vector<1x8x16xf32>
      %184 = vector.shape_cast %183 : vector<1x8x16xf32> to vector<8x16xf32>
      %185 = vector.shape_cast %181 : vector<8x16xf32> to vector<1x8x16xf32>
      tpu.vector_store %arg11[%182, %c0_78, %c0_79], %185 {strides = array<i32>} : memref<16x8x16xf32, #tpu.memory_space<vmem>>, vector<1x8x16xf32>,
      %c4_i32 = arith.constant 4 : i32
      %186 = arith.addi %41, %c4_i32 : i32
      %187 = arith.index_cast %186 : i32 to index
      %c0_80 = arith.constant 0 : index
      %c0_81 = arith.constant 0 : index
      %188 = vector.load %arg10[%187, %c0_80, %c0_81] : memref<16x8x64xf32, #tpu.memory_space<vmem>>, vector<1x8x64xf32>
      %189 = vector.shape_cast %188 : vector<1x8x64xf32> to vector<8x64xf32>
      %c0_82 = arith.constant 0 : index
      %c0_83 = arith.constant 0 : index
      %190 = vector.load %arg5[%c0_82, %c0_83] : memref<16x64xf32, #tpu.memory_space<vmem>>, vector<16x64xf32>
      %cst_84 = arith.constant dense<0.000000e+00> : vector<8x64xf32>
      %191 = tpu.matmul %181, %190, %cst_84 {dimension_numbers = #tpu.dot_dimension_numbers<[1], [0], [0], [1], [0, 0, 1, 1], [], []>} : vector<8x16xf32>, vector<16x64xf32>, vector<8x64xf32> -> vector<8x64xf32>
      %192 = arith.addf %189, %191 : vector<8x64xf32>
      %193 = vector.extract_strided_slice %192 {offsets = [0, 0], sizes = [8, 16], strides = [1, 1]} : vector<8x64xf32> to vector<8x16xf32>
      %194 = arith.negf %193 : vector<8x16xf32>
      %195 = math.exp %194 : vector<8x16xf32>
      %cst_85 = arith.constant 1.000000e+00 : f32
      %196 = vector.broadcast %cst_85 : f32 to vector<8x16xf32>
      %197 = arith.addf %196, %195 : vector<8x16xf32>
      %198 = arith.divf %196, %197 : vector<8x16xf32>
      %199 = vector.extract_strided_slice %192 {offsets = [0, 16], sizes = [8, 16], strides = [1, 1]} : vector<8x64xf32> to vector<8x16xf32>
      %200 = arith.negf %199 : vector<8x16xf32>
      %201 = math.exp %200 : vector<8x16xf32>
      %cst_86 = arith.constant 1.000000e+00 : f32
      %202 = vector.broadcast %cst_86 : f32 to vector<8x16xf32>
      %203 = arith.addf %202, %201 : vector<8x16xf32>
      %204 = arith.divf %202, %203 : vector<8x16xf32>
      %205 = vector.extract_strided_slice %192 {offsets = [0, 32], sizes = [8, 16], strides = [1, 1]} : vector<8x64xf32> to vector<8x16xf32>
      %206 = math.tanh %205 : vector<8x16xf32>
      %207 = vector.extract_strided_slice %192 {offsets = [0, 48], sizes = [8, 16], strides = [1, 1]} : vector<8x64xf32> to vector<8x16xf32>
      %208 = arith.negf %207 : vector<8x16xf32>
      %209 = math.exp %208 : vector<8x16xf32>
      %cst_87 = arith.constant 1.000000e+00 : f32
      %210 = vector.broadcast %cst_87 : f32 to vector<8x16xf32>
      %211 = arith.addf %210, %209 : vector<8x16xf32>
      %212 = arith.divf %210, %211 : vector<8x16xf32>
      %213 = arith.mulf %204, %179 : vector<8x16xf32>
      %214 = arith.mulf %198, %206 : vector<8x16xf32>
      %215 = arith.addf %213, %214 : vector<8x16xf32>
      %216 = math.tanh %215 : vector<8x16xf32>
      %217 = arith.mulf %212, %216 : vector<8x16xf32>
      %218 = arith.index_cast %186 : i32 to index
      %c0_88 = arith.constant 0 : index
      %c0_89 = arith.constant 0 : index
      %219 = vector.load %arg11[%218, %c0_88, %c0_89] : memref<16x8x16xf32, #tpu.memory_space<vmem>>, vector<1x8x16xf32>
      %220 = vector.shape_cast %219 : vector<1x8x16xf32> to vector<8x16xf32>
      %221 = vector.shape_cast %217 : vector<8x16xf32> to vector<1x8x16xf32>
      tpu.vector_store %arg11[%218, %c0_88, %c0_89], %221 {strides = array<i32>} : memref<16x8x16xf32, #tpu.memory_space<vmem>>, vector<1x8x16xf32>,
      %c5_i32 = arith.constant 5 : i32
      %222 = arith.addi %41, %c5_i32 : i32
      %223 = arith.index_cast %222 : i32 to index
      %c0_90 = arith.constant 0 : index
      %c0_91 = arith.constant 0 : index
      %224 = vector.load %arg10[%223, %c0_90, %c0_91] : memref<16x8x64xf32, #tpu.memory_space<vmem>>, vector<1x8x64xf32>
      %225 = vector.shape_cast %224 : vector<1x8x64xf32> to vector<8x64xf32>
      %c0_92 = arith.constant 0 : index
      %c0_93 = arith.constant 0 : index
      %226 = vector.load %arg5[%c0_92, %c0_93] : memref<16x64xf32, #tpu.memory_space<vmem>>, vector<16x64xf32>
      %cst_94 = arith.constant dense<0.000000e+00> : vector<8x64xf32>
      %227 = tpu.matmul %217, %226, %cst_94 {dimension_numbers = #tpu.dot_dimension_numbers<[1], [0], [0], [1], [0, 0, 1, 1], [], []>} : vector<8x16xf32>, vector<16x64xf32>, vector<8x64xf32> -> vector<8x64xf32>
      %228 = arith.addf %225, %227 : vector<8x64xf32>
      %229 = vector.extract_strided_slice %228 {offsets = [0, 0], sizes = [8, 16], strides = [1, 1]} : vector<8x64xf32> to vector<8x16xf32>
      %230 = arith.negf %229 : vector<8x16xf32>
      %231 = math.exp %230 : vector<8x16xf32>
      %cst_95 = arith.constant 1.000000e+00 : f32
      %232 = vector.broadcast %cst_95 : f32 to vector<8x16xf32>
      %233 = arith.addf %232, %231 : vector<8x16xf32>
      %234 = arith.divf %232, %233 : vector<8x16xf32>
      %235 = vector.extract_strided_slice %228 {offsets = [0, 16], sizes = [8, 16], strides = [1, 1]} : vector<8x64xf32> to vector<8x16xf32>
      %236 = arith.negf %235 : vector<8x16xf32>
      %237 = math.exp %236 : vector<8x16xf32>
      %cst_96 = arith.constant 1.000000e+00 : f32
      %238 = vector.broadcast %cst_96 : f32 to vector<8x16xf32>
      %239 = arith.addf %238, %237 : vector<8x16xf32>
      %240 = arith.divf %238, %239 : vector<8x16xf32>
      %241 = vector.extract_strided_slice %228 {offsets = [0, 32], sizes = [8, 16], strides = [1, 1]} : vector<8x64xf32> to vector<8x16xf32>
      %242 = math.tanh %241 : vector<8x16xf32>
      %243 = vector.extract_strided_slice %228 {offsets = [0, 48], sizes = [8, 16], strides = [1, 1]} : vector<8x64xf32> to vector<8x16xf32>
      %244 = arith.negf %243 : vector<8x16xf32>
      %245 = math.exp %244 : vector<8x16xf32>
      %cst_97 = arith.constant 1.000000e+00 : f32
      %246 = vector.broadcast %cst_97 : f32 to vector<8x16xf32>
      %247 = arith.addf %246, %245 : vector<8x16xf32>
      %248 = arith.divf %246, %247 : vector<8x16xf32>
      %249 = arith.mulf %240, %215 : vector<8x16xf32>
      %250 = arith.mulf %234, %242 : vector<8x16xf32>
      %251 = arith.addf %249, %250 : vector<8x16xf32>
      %252 = math.tanh %251 : vector<8x16xf32>
      %253 = arith.mulf %248, %252 : vector<8x16xf32>
      %254 = arith.index_cast %222 : i32 to index
      %c0_98 = arith.constant 0 : index
      %c0_99 = arith.constant 0 : index
      %255 = vector.load %arg11[%254, %c0_98, %c0_99] : memref<16x8x16xf32, #tpu.memory_space<vmem>>, vector<1x8x16xf32>
      %256 = vector.shape_cast %255 : vector<1x8x16xf32> to vector<8x16xf32>
      %257 = vector.shape_cast %253 : vector<8x16xf32> to vector<1x8x16xf32>
      tpu.vector_store %arg11[%254, %c0_98, %c0_99], %257 {strides = array<i32>} : memref<16x8x16xf32, #tpu.memory_space<vmem>>, vector<1x8x16xf32>,
      %c6_i32 = arith.constant 6 : i32
      %258 = arith.addi %41, %c6_i32 : i32
      %259 = arith.index_cast %258 : i32 to index
      %c0_100 = arith.constant 0 : index
      %c0_101 = arith.constant 0 : index
      %260 = vector.load %arg10[%259, %c0_100, %c0_101] : memref<16x8x64xf32, #tpu.memory_space<vmem>>, vector<1x8x64xf32>
      %261 = vector.shape_cast %260 : vector<1x8x64xf32> to vector<8x64xf32>
      %c0_102 = arith.constant 0 : index
      %c0_103 = arith.constant 0 : index
      %262 = vector.load %arg5[%c0_102, %c0_103] : memref<16x64xf32, #tpu.memory_space<vmem>>, vector<16x64xf32>
      %cst_104 = arith.constant dense<0.000000e+00> : vector<8x64xf32>
      %263 = tpu.matmul %253, %262, %cst_104 {dimension_numbers = #tpu.dot_dimension_numbers<[1], [0], [0], [1], [0, 0, 1, 1], [], []>} : vector<8x16xf32>, vector<16x64xf32>, vector<8x64xf32> -> vector<8x64xf32>
      %264 = arith.addf %261, %263 : vector<8x64xf32>
      %265 = vector.extract_strided_slice %264 {offsets = [0, 0], sizes = [8, 16], strides = [1, 1]} : vector<8x64xf32> to vector<8x16xf32>
      %266 = arith.negf %265 : vector<8x16xf32>
      %267 = math.exp %266 : vector<8x16xf32>
      %cst_105 = arith.constant 1.000000e+00 : f32
      %268 = vector.broadcast %cst_105 : f32 to vector<8x16xf32>
      %269 = arith.addf %268, %267 : vector<8x16xf32>
      %270 = arith.divf %268, %269 : vector<8x16xf32>
      %271 = vector.extract_strided_slice %264 {offsets = [0, 16], sizes = [8, 16], strides = [1, 1]} : vector<8x64xf32> to vector<8x16xf32>
      %272 = arith.negf %271 : vector<8x16xf32>
      %273 = math.exp %272 : vector<8x16xf32>
      %cst_106 = arith.constant 1.000000e+00 : f32
      %274 = vector.broadcast %cst_106 : f32 to vector<8x16xf32>
      %275 = arith.addf %274, %273 : vector<8x16xf32>
      %276 = arith.divf %274, %275 : vector<8x16xf32>
      %277 = vector.extract_strided_slice %264 {offsets = [0, 32], sizes = [8, 16], strides = [1, 1]} : vector<8x64xf32> to vector<8x16xf32>
      %278 = math.tanh %277 : vector<8x16xf32>
      %279 = vector.extract_strided_slice %264 {offsets = [0, 48], sizes = [8, 16], strides = [1, 1]} : vector<8x64xf32> to vector<8x16xf32>
      %280 = arith.negf %279 : vector<8x16xf32>
      %281 = math.exp %280 : vector<8x16xf32>
      %cst_107 = arith.constant 1.000000e+00 : f32
      %282 = vector.broadcast %cst_107 : f32 to vector<8x16xf32>
      %283 = arith.addf %282, %281 : vector<8x16xf32>
      %284 = arith.divf %282, %283 : vector<8x16xf32>
      %285 = arith.mulf %276, %251 : vector<8x16xf32>
      %286 = arith.mulf %270, %278 : vector<8x16xf32>
      %287 = arith.addf %285, %286 : vector<8x16xf32>
      %288 = math.tanh %287 : vector<8x16xf32>
      %289 = arith.mulf %284, %288 : vector<8x16xf32>
      %290 = arith.index_cast %258 : i32 to index
      %c0_108 = arith.constant 0 : index
      %c0_109 = arith.constant 0 : index
      %291 = vector.load %arg11[%290, %c0_108, %c0_109] : memref<16x8x16xf32, #tpu.memory_space<vmem>>, vector<1x8x16xf32>
      %292 = vector.shape_cast %291 : vector<1x8x16xf32> to vector<8x16xf32>
      %293 = vector.shape_cast %289 : vector<8x16xf32> to vector<1x8x16xf32>
      tpu.vector_store %arg11[%290, %c0_108, %c0_109], %293 {strides = array<i32>} : memref<16x8x16xf32, #tpu.memory_space<vmem>>, vector<1x8x16xf32>,
      %c7_i32 = arith.constant 7 : i32
      %294 = arith.addi %41, %c7_i32 : i32
      %295 = arith.index_cast %294 : i32 to index
      %c0_110 = arith.constant 0 : index
      %c0_111 = arith.constant 0 : index
      %296 = vector.load %arg10[%295, %c0_110, %c0_111] : memref<16x8x64xf32, #tpu.memory_space<vmem>>, vector<1x8x64xf32>
      %297 = vector.shape_cast %296 : vector<1x8x64xf32> to vector<8x64xf32>
      %c0_112 = arith.constant 0 : index
      %c0_113 = arith.constant 0 : index
      %298 = vector.load %arg5[%c0_112, %c0_113] : memref<16x64xf32, #tpu.memory_space<vmem>>, vector<16x64xf32>
      %cst_114 = arith.constant dense<0.000000e+00> : vector<8x64xf32>
      %299 = tpu.matmul %289, %298, %cst_114 {dimension_numbers = #tpu.dot_dimension_numbers<[1], [0], [0], [1], [0, 0, 1, 1], [], []>} : vector<8x16xf32>, vector<16x64xf32>, vector<8x64xf32> -> vector<8x64xf32>
      %300 = arith.addf %297, %299 : vector<8x64xf32>
      %301 = vector.extract_strided_slice %300 {offsets = [0, 0], sizes = [8, 16], strides = [1, 1]} : vector<8x64xf32> to vector<8x16xf32>
      %302 = arith.negf %301 : vector<8x16xf32>
      %303 = math.exp %302 : vector<8x16xf32>
      %cst_115 = arith.constant 1.000000e+00 : f32
      %304 = vector.broadcast %cst_115 : f32 to vector<8x16xf32>
      %305 = arith.addf %304, %303 : vector<8x16xf32>
      %306 = arith.divf %304, %305 : vector<8x16xf32>
      %307 = vector.extract_strided_slice %300 {offsets = [0, 16], sizes = [8, 16], strides = [1, 1]} : vector<8x64xf32> to vector<8x16xf32>
      %308 = arith.negf %307 : vector<8x16xf32>
      %309 = math.exp %308 : vector<8x16xf32>
      %cst_116 = arith.constant 1.000000e+00 : f32
      %310 = vector.broadcast %cst_116 : f32 to vector<8x16xf32>
      %311 = arith.addf %310, %309 : vector<8x16xf32>
      %312 = arith.divf %310, %311 : vector<8x16xf32>
      %313 = vector.extract_strided_slice %300 {offsets = [0, 32], sizes = [8, 16], strides = [1, 1]} : vector<8x64xf32> to vector<8x16xf32>
      %314 = math.tanh %313 : vector<8x16xf32>
      %315 = vector.extract_strided_slice %300 {offsets = [0, 48], sizes = [8, 16], strides = [1, 1]} : vector<8x64xf32> to vector<8x16xf32>
      %316 = arith.negf %315 : vector<8x16xf32>
      %317 = math.exp %316 : vector<8x16xf32>
      %cst_117 = arith.constant 1.000000e+00 : f32
      %318 = vector.broadcast %cst_117 : f32 to vector<8x16xf32>
      %319 = arith.addf %318, %317 : vector<8x16xf32>
      %320 = arith.divf %318, %319 : vector<8x16xf32>
      %321 = arith.mulf %312, %287 : vector<8x16xf32>
      %322 = arith.mulf %306, %314 : vector<8x16xf32>
      %323 = arith.addf %321, %322 : vector<8x16xf32>
      %324 = math.tanh %323 : vector<8x16xf32>
      %325 = arith.mulf %320, %324 : vector<8x16xf32>
      %326 = arith.index_cast %294 : i32 to index
      %c0_118 = arith.constant 0 : index
      %c0_119 = arith.constant 0 : index
      %327 = vector.load %arg11[%326, %c0_118, %c0_119] : memref<16x8x16xf32, #tpu.memory_space<vmem>>, vector<1x8x16xf32>
      %328 = vector.shape_cast %327 : vector<1x8x16xf32> to vector<8x16xf32>
      %329 = vector.shape_cast %325 : vector<8x16xf32> to vector<1x8x16xf32>
      tpu.vector_store %arg11[%326, %c0_118, %c0_119], %329 {strides = array<i32>} : memref<16x8x16xf32, #tpu.memory_space<vmem>>, vector<1x8x16xf32>,
      scf.yield %325, %323 : vector<8x16xf32>, vector<8x16xf32>
    }
    %c2_i32_21 = arith.constant 2 : i32
    %c0_22 = arith.constant 0 : index
    %c0_23 = arith.constant 0 : index
    %28 = vector.load %arg12[%c0_22, %c0_23] : memref<8x16xf32, #tpu.memory_space<vmem>>, vector<8x16xf32>
    tpu.vector_store %arg12[%c0_22, %c0_23], %27#0 {strides = array<i32>} : memref<8x16xf32, #tpu.memory_space<vmem>>, vector<8x16xf32>,
    %c0_24 = arith.constant 0 : index
    %c0_25 = arith.constant 0 : index
    %29 = vector.load %arg13[%c0_24, %c0_25] : memref<8x16xf32, #tpu.memory_space<vmem>>, vector<8x16xf32>
    tpu.vector_store %arg13[%c0_24, %c0_25], %27#1 {strides = array<i32>} : memref<8x16xf32, #tpu.memory_space<vmem>>, vector<8x16xf32>,
    %c0_26 = arith.constant 0 : index
    %c0_27 = arith.constant 0 : index
    %c0_28 = arith.constant 0 : index
    %30 = vector.load %arg11[%c0_26, %c0_27, %c0_28] : memref<16x8x16xf32, #tpu.memory_space<vmem>>, vector<16x8x16xf32>
    %31 = vector.shape_cast %30 : vector<16x8x16xf32> to vector<128x16xf32>
    %32 = arith.truncf %31 : vector<128x16xf32> to vector<128x16xbf16>
    %c0_29 = arith.constant 0 : index
    %c0_30 = arith.constant 0 : index
    %33 = vector.load %arg7[%c0_29, %c0_30] : memref<16x4xbf16, #tpu.memory_space<vmem>>, vector<16x4xbf16>
    %cst_31 = arith.constant dense<0.000000e+00> : vector<128x4xf32>
    %34 = tpu.matmul %32, %33, %cst_31 {dimension_numbers = #tpu.dot_dimension_numbers<[1], [0], [0], [1], [0, 0, 1, 1], [], []>} : vector<128x16xbf16>, vector<16x4xbf16>, vector<128x4xf32> -> vector<128x4xf32>
    %c0_32 = arith.constant 0 : index
    %c0_33 = arith.constant 0 : index
    %35 = vector.load %arg8[%c0_32, %c0_33] : memref<1x4xf32, #tpu.memory_space<vmem>>, vector<1x4xf32>
    %36 = vector.broadcast %35 : vector<1x4xf32> to vector<128x4xf32>
    %37 = arith.addf %34, %36 : vector<128x4xf32>
    %38 = vector.shape_cast %37 : vector<128x4xf32> to vector<16x8x4xf32>
    %c0_34 = arith.constant 0 : index
    %c0_35 = arith.constant 0 : index
    %c0_36 = arith.constant 0 : index
    %39 = vector.load %arg9[%c0_34, %c0_35, %c0_36] : memref<16x8x4xf32, #tpu.memory_space<vmem>>, vector<16x8x4xf32>
    tpu.vector_store %arg9[%c0_34, %c0_35, %c0_36], %38 {strides = array<i32>} : memref<16x8x4xf32, #tpu.memory_space<vmem>>, vector<16x8x4xf32>,
    return
  }
  func.func @transform_0(%arg0: i32) -> (i32, i32, i32) {
    %c0_i32 = arith.constant 0 : i32
    %c0_i32_0 = arith.constant 0 : i32
    %c0_i32_1 = arith.constant 0 : i32
    return %arg0, %c0_i32, %c0_i32_0 : i32, i32, i32
  }
  func.func @transform_1(%arg0: i32) -> (i32, i32, i32) {
    %c0_i32 = arith.constant 0 : i32
    %c0_i32_0 = arith.constant 0 : i32
    %c0_i32_1 = arith.constant 0 : i32
    %c0_i32_2 = arith.constant 0 : i32
    return %c0_i32, %c0_i32_0, %c0_i32_1 : i32, i32, i32
  }
  func.func @transform_2(%arg0: i32) -> (i32, i32) {
    %c0_i32 = arith.constant 0 : i32
    %c0_i32_0 = arith.constant 0 : i32
    %c0_i32_1 = arith.constant 0 : i32
    return %c0_i32, %c0_i32_0 : i32, i32
  }
  func.func @transform_3(%arg0: i32) -> (i32, i32) {
    %c0_i32 = arith.constant 0 : i32
    %c0_i32_0 = arith.constant 0 : i32
    %c0_i32_1 = arith.constant 0 : i32
    return %c0_i32, %c0_i32_0 : i32, i32
  }
  func.func @transform_4(%arg0: i32) -> (i32, i32) {
    %c0_i32 = arith.constant 0 : i32
    %c0_i32_0 = arith.constant 0 : i32
    %c0_i32_1 = arith.constant 0 : i32
    return %c0_i32, %c0_i32_0 : i32, i32
  }
  func.func @transform_5(%arg0: i32) -> (i32, i32) {
    %c0_i32 = arith.constant 0 : i32
    %c0_i32_0 = arith.constant 0 : i32
    %c0_i32_1 = arith.constant 0 : i32
    return %c0_i32, %c0_i32_0 : i32, i32
  }
  func.func @transform_6(%arg0: i32) -> (i32, i32) {
    %c0_i32 = arith.constant 0 : i32
    %c0_i32_0 = arith.constant 0 : i32
    %c0_i32_1 = arith.constant 0 : i32
    return %c0_i32, %c0_i32_0 : i32, i32
  }
  func.func @transform_7(%arg0: i32) -> (i32, i32) {
    %c0_i32 = arith.constant 0 : i32
    %c0_i32_0 = arith.constant 0 : i32
    %c0_i32_1 = arith.constant 0 : i32
    return %c0_i32, %c0_i32_0 : i32, i32
  }
  func.func @transform_8(%arg0: i32) -> (i32, i32, i32) {
    %c0_i32 = arith.constant 0 : i32
    %c0_i32_0 = arith.constant 0 : i32
    %c0_i32_1 = arith.constant 0 : i32
    return %arg0, %c0_i32, %c0_i32_0 : i32, i32, i32
  }
}

module attributes {stable_mosaic.version = 11 : i64} {
  func.func @kernel(%arg0: i32, %arg1: memref<2x8x12xf32, #tpu.memory_space<vmem>>, %arg2: memref<16x8x4xf32, #tpu.memory_space<vmem>>, %arg3: memref<12x64xbf16, #tpu.memory_space<vmem>>, %arg4: memref<4x64xbf16, #tpu.memory_space<vmem>>, %arg5: memref<16x64xf32, #tpu.memory_space<vmem>>, %arg6: memref<1x64xf32, #tpu.memory_space<vmem>>, %arg7: memref<16x16xbf16, #tpu.memory_space<vmem>>, %arg8: memref<1x16xf32, #tpu.memory_space<vmem>>, %arg9: memref<16x8x16xf32, #tpu.memory_space<vmem>>, %arg10: memref<16x8x64xf32, #tpu.memory_space<vmem>>, %arg11: memref<16x8x16xf32, #tpu.memory_space<vmem>>, %arg12: memref<8x16xf32, #tpu.memory_space<vmem>>, %arg13: memref<8x16xf32, #tpu.memory_space<vmem>>) attributes {dimension_semantics = [#tpu.dimension_semantics<arbitrary>], iteration_bounds = array<i64: 1>, scalar_prefetch = 0 : i64, scratch_operands = 4 : i64, tpu.core_type = #tpu.core_type<tc>, window_params = [{transform_indices = @transform_0, window_bounds = array<i64: 2, 8, 12>}, {transform_indices = @transform_1, window_bounds = array<i64: 16, 8, 4>}, {pipeline_mode = #tpu.pipeline_mode<synchronous>, transform_indices = @transform_2, window_bounds = array<i64: 12, 64>}, {pipeline_mode = #tpu.pipeline_mode<synchronous>, transform_indices = @transform_3, window_bounds = array<i64: 4, 64>}, {pipeline_mode = #tpu.pipeline_mode<synchronous>, transform_indices = @transform_4, window_bounds = array<i64: 16, 64>}, {pipeline_mode = #tpu.pipeline_mode<synchronous>, transform_indices = @transform_5, window_bounds = array<i64: 1, 64>}, {pipeline_mode = #tpu.pipeline_mode<synchronous>, transform_indices = @transform_6, window_bounds = array<i64: 16, 16>}, {pipeline_mode = #tpu.pipeline_mode<synchronous>, transform_indices = @transform_7, window_bounds = array<i64: 1, 16>}, {transform_indices = @transform_8, window_bounds = array<i64: 16, 8, 16>}]} {
    %c0_i32 = arith.constant 0 : i32
    %0 = arith.cmpi eq, %arg0, %c0_i32 : i32
    %1 = arith.extui %0 : i1 to i32
    %c0_i32_0 = arith.constant 0 : i32
    %2 = arith.cmpi ne, %1, %c0_i32_0 : i32
    scf.if %2 {
      %cst_37 = arith.constant 0.000000e+00 : f32
      %40 = vector.broadcast %cst_37 : f32 to vector<8x16xf32>
      %c0_38 = arith.constant 0 : index
      %c0_39 = arith.constant 0 : index
      %41 = vector.load %arg12[%c0_38, %c0_39] : memref<8x16xf32, #tpu.memory_space<vmem>>, vector<8x16xf32>
      tpu.vector_store %arg12[%c0_38, %c0_39], %40 {strides = array<i32>} : memref<8x16xf32, #tpu.memory_space<vmem>>, vector<8x16xf32>,
      %cst_40 = arith.constant 0.000000e+00 : f32
      %42 = vector.broadcast %cst_40 : f32 to vector<8x16xf32>
      %c0_41 = arith.constant 0 : index
      %c0_42 = arith.constant 0 : index
      %43 = vector.load %arg13[%c0_41, %c0_42] : memref<8x16xf32, #tpu.memory_space<vmem>>, vector<8x16xf32>
      tpu.vector_store %arg13[%c0_41, %c0_42], %42 {strides = array<i32>} : memref<8x16xf32, #tpu.memory_space<vmem>>, vector<8x16xf32>,
    } else {
    }
    %c0 = arith.constant 0 : index
    %c0_1 = arith.constant 0 : index
    %c0_2 = arith.constant 0 : index
    %3 = vector.load %arg1[%c0, %c0_1, %c0_2] : memref<2x8x12xf32, #tpu.memory_space<vmem>>, vector<2x8x12xf32>
    %4 = vector.shape_cast %3 : vector<2x8x12xf32> to vector<16x12xf32>
    %5 = arith.truncf %4 : vector<16x12xf32> to vector<16x12xbf16>
    %c0_3 = arith.constant 0 : index
    %c0_4 = arith.constant 0 : index
    %6 = vector.load %arg3[%c0_3, %c0_4] : memref<12x64xbf16, #tpu.memory_space<vmem>>, vector<12x64xbf16>
    %cst = arith.constant dense<0.000000e+00> : vector<16x64xf32>
    %7 = tpu.matmul %5, %6, %cst {dimension_numbers = #tpu.dot_dimension_numbers<[1], [0], [0], [1], [0, 0, 1, 1], [], []>} : vector<16x12xbf16>, vector<12x64xbf16>, vector<16x64xf32> -> vector<16x64xf32>
    %8 = vector.shape_cast %7 : vector<16x64xf32> to vector<2x1x8x64xf32>
    %9 = vector.shape_cast %8 : vector<2x1x8x64xf32> to vector<2x1x8x64xf32>
    %10 = vector.broadcast %9 : vector<2x1x8x64xf32> to vector<2x8x8x64xf32>
    %11 = vector.shape_cast %10 : vector<2x8x8x64xf32> to vector<16x8x64xf32>
    %c0_5 = arith.constant 0 : index
    %c0_6 = arith.constant 0 : index
    %c0_7 = arith.constant 0 : index
    %12 = vector.load %arg2[%c0_5, %c0_6, %c0_7] : memref<16x8x4xf32, #tpu.memory_space<vmem>>, vector<16x8x4xf32>
    %13 = vector.shape_cast %12 : vector<16x8x4xf32> to vector<128x4xf32>
    %14 = arith.truncf %13 : vector<128x4xf32> to vector<128x4xbf16>
    %c0_8 = arith.constant 0 : index
    %c0_9 = arith.constant 0 : index
    %15 = vector.load %arg4[%c0_8, %c0_9] : memref<4x64xbf16, #tpu.memory_space<vmem>>, vector<4x64xbf16>
    %cst_10 = arith.constant dense<0.000000e+00> : vector<128x64xf32>
    %16 = tpu.matmul %14, %15, %cst_10 {dimension_numbers = #tpu.dot_dimension_numbers<[1], [0], [0], [1], [0, 0, 1, 1], [], []>} : vector<128x4xbf16>, vector<4x64xbf16>, vector<128x64xf32> -> vector<128x64xf32>
    %17 = vector.shape_cast %16 : vector<128x64xf32> to vector<16x8x64xf32>
    %18 = arith.addf %11, %17 : vector<16x8x64xf32>
    %c0_11 = arith.constant 0 : index
    %c0_12 = arith.constant 0 : index
    %19 = vector.load %arg6[%c0_11, %c0_12] : memref<1x64xf32, #tpu.memory_space<vmem>>, vector<1x64xf32>
    %20 = vector.shape_cast %19 : vector<1x64xf32> to vector<1x1x64xf32>
    %21 = vector.broadcast %20 : vector<1x1x64xf32> to vector<16x8x64xf32>
    %22 = arith.addf %18, %21 : vector<16x8x64xf32>
    %c0_13 = arith.constant 0 : index
    %c0_14 = arith.constant 0 : index
    %c0_15 = arith.constant 0 : index
    %23 = vector.load %arg10[%c0_13, %c0_14, %c0_15] : memref<16x8x64xf32, #tpu.memory_space<vmem>>, vector<16x8x64xf32>
    tpu.vector_store %arg10[%c0_13, %c0_14, %c0_15], %22 {strides = array<i32>} : memref<16x8x64xf32, #tpu.memory_space<vmem>>, vector<16x8x64xf32>,
    %c0_16 = arith.constant 0 : index
    %c0_17 = arith.constant 0 : index
    %24 = vector.load %arg12[%c0_16, %c0_17] : memref<8x16xf32, #tpu.memory_space<vmem>>, vector<8x16xf32>
    %c0_18 = arith.constant 0 : index
    %c0_19 = arith.constant 0 : index
    %25 = vector.load %arg13[%c0_18, %c0_19] : memref<8x16xf32, #tpu.memory_space<vmem>>, vector<8x16xf32>
    %c0_i32_20 = arith.constant 0 : i32
    %c2_i32 = arith.constant 2 : i32
    %26 = arith.addi %c0_i32_20, %c2_i32 : i32
    %c1_i32 = arith.constant 1 : i32
    %27:2 = scf.for %arg14 = %c0_i32_20 to %26 step %c1_i32 iter_args(%arg15 = %24, %arg16 = %25) -> (vector<8x16xf32>, vector<8x16xf32>)  : i32 {
      %c8_i32 = arith.constant 8 : i32
      %40 = arith.muli %arg14, %c8_i32 : i32
      %41 = tpu.assume_multiple %40, 8 : i32
      %c0_i32_37 = arith.constant 0 : i32
      %42 = arith.addi %41, %c0_i32_37 : i32
      %43 = arith.index_cast %42 : i32 to index
      %c0_38 = arith.constant 0 : index
      %c0_39 = arith.constant 0 : index
      %44 = vector.load %arg10[%43, %c0_38, %c0_39] : memref<16x8x64xf32, #tpu.memory_space<vmem>>, vector<1x8x64xf32>
      %45 = vector.shape_cast %44 : vector<1x8x64xf32> to vector<8x64xf32>
      %c0_40 = arith.constant 0 : index
      %c0_41 = arith.constant 0 : index
      %46 = vector.load %arg5[%c0_40, %c0_41] : memref<16x64xf32, #tpu.memory_space<vmem>>, vector<16x64xf32>
      %cst_42 = arith.constant dense<0.000000e+00> : vector<8x64xf32>
      %47 = tpu.matmul %arg15, %46, %cst_42 {dimension_numbers = #tpu.dot_dimension_numbers<[1], [0], [0], [1], [0, 0, 1, 1], [], []>} : vector<8x16xf32>, vector<16x64xf32>, vector<8x64xf32> -> vector<8x64xf32>
      %48 = arith.addf %45, %47 : vector<8x64xf32>
      %49 = vector.extract_strided_slice %48 {offsets = [0, 0], sizes = [8, 16], strides = [1, 1]} : vector<8x64xf32> to vector<8x16xf32>
      %50 = arith.negf %49 : vector<8x16xf32>
      %51 = math.exp %50 : vector<8x16xf32>
      %cst_43 = arith.constant 1.000000e+00 : f32
      %52 = vector.broadcast %cst_43 : f32 to vector<8x16xf32>
      %53 = arith.addf %52, %51 : vector<8x16xf32>
      %54 = arith.divf %52, %53 : vector<8x16xf32>
      %55 = vector.extract_strided_slice %48 {offsets = [0, 16], sizes = [8, 16], strides = [1, 1]} : vector<8x64xf32> to vector<8x16xf32>
      %56 = arith.negf %55 : vector<8x16xf32>
      %57 = math.exp %56 : vector<8x16xf32>
      %cst_44 = arith.constant 1.000000e+00 : f32
      %58 = vector.broadcast %cst_44 : f32 to vector<8x16xf32>
      %59 = arith.addf %58, %57 : vector<8x16xf32>
      %60 = arith.divf %58, %59 : vector<8x16xf32>
      %61 = vector.extract_strided_slice %48 {offsets = [0, 32], sizes = [8, 16], strides = [1, 1]} : vector<8x64xf32> to vector<8x16xf32>
      %62 = math.tanh %61 : vector<8x16xf32>
      %63 = vector.extract_strided_slice %48 {offsets = [0, 48], sizes = [8, 16], strides = [1, 1]} : vector<8x64xf32> to vector<8x16xf32>
      %64 = arith.negf %63 : vector<8x16xf32>
      %65 = math.exp %64 : vector<8x16xf32>
      %cst_45 = arith.constant 1.000000e+00 : f32
      %66 = vector.broadcast %cst_45 : f32 to vector<8x16xf32>
      %67 = arith.addf %66, %65 : vector<8x16xf32>
      %68 = arith.divf %66, %67 : vector<8x16xf32>
      %69 = arith.mulf %60, %arg16 : vector<8x16xf32>
      %70 = arith.mulf %54, %62 : vector<8x16xf32>
      %71 = arith.addf %69, %70 : vector<8x16xf32>
      %72 = math.tanh %71 : vector<8x16xf32>
      %73 = arith.mulf %68, %72 : vector<8x16xf32>
      %74 = arith.index_cast %42 : i32 to index
      %c0_46 = arith.constant 0 : index
      %c0_47 = arith.constant 0 : index
      %75 = vector.load %arg11[%74, %c0_46, %c0_47] : memref<16x8x16xf32, #tpu.memory_space<vmem>>, vector<1x8x16xf32>
      %76 = vector.shape_cast %75 : vector<1x8x16xf32> to vector<8x16xf32>
      %77 = vector.shape_cast %73 : vector<8x16xf32> to vector<1x8x16xf32>
      tpu.vector_store %arg11[%74, %c0_46, %c0_47], %77 {strides = array<i32>} : memref<16x8x16xf32, #tpu.memory_space<vmem>>, vector<1x8x16xf32>,
      %c1_i32_48 = arith.constant 1 : i32
      %78 = arith.addi %41, %c1_i32_48 : i32
      %79 = arith.index_cast %78 : i32 to index
      %c0_49 = arith.constant 0 : index
      %c0_50 = arith.constant 0 : index
      %80 = vector.load %arg10[%79, %c0_49, %c0_50] : memref<16x8x64xf32, #tpu.memory_space<vmem>>, vector<1x8x64xf32>
      %81 = vector.shape_cast %80 : vector<1x8x64xf32> to vector<8x64xf32>
      %c0_51 = arith.constant 0 : index
      %c0_52 = arith.constant 0 : index
      %82 = vector.load %arg5[%c0_51, %c0_52] : memref<16x64xf32, #tpu.memory_space<vmem>>, vector<16x64xf32>
      %cst_53 = arith.constant dense<0.000000e+00> : vector<8x64xf32>
      %83 = tpu.matmul %73, %82, %cst_53 {dimension_numbers = #tpu.dot_dimension_numbers<[1], [0], [0], [1], [0, 0, 1, 1], [], []>} : vector<8x16xf32>, vector<16x64xf32>, vector<8x64xf32> -> vector<8x64xf32>
      %84 = arith.addf %81, %83 : vector<8x64xf32>
      %85 = vector.extract_strided_slice %84 {offsets = [0, 0], sizes = [8, 16], strides = [1, 1]} : vector<8x64xf32> to vector<8x16xf32>
      %86 = arith.negf %85 : vector<8x16xf32>
      %87 = math.exp %86 : vector<8x16xf32>
      %cst_54 = arith.constant 1.000000e+00 : f32
      %88 = vector.broadcast %cst_54 : f32 to vector<8x16xf32>
      %89 = arith.addf %88, %87 : vector<8x16xf32>
      %90 = arith.divf %88, %89 : vector<8x16xf32>
      %91 = vector.extract_strided_slice %84 {offsets = [0, 16], sizes = [8, 16], strides = [1, 1]} : vector<8x64xf32> to vector<8x16xf32>
      %92 = arith.negf %91 : vector<8x16xf32>
      %93 = math.exp %92 : vector<8x16xf32>
      %cst_55 = arith.constant 1.000000e+00 : f32
      %94 = vector.broadcast %cst_55 : f32 to vector<8x16xf32>
      %95 = arith.addf %94, %93 : vector<8x16xf32>
      %96 = arith.divf %94, %95 : vector<8x16xf32>
      %97 = vector.extract_strided_slice %84 {offsets = [0, 32], sizes = [8, 16], strides = [1, 1]} : vector<8x64xf32> to vector<8x16xf32>
      %98 = math.tanh %97 : vector<8x16xf32>
      %99 = vector.extract_strided_slice %84 {offsets = [0, 48], sizes = [8, 16], strides = [1, 1]} : vector<8x64xf32> to vector<8x16xf32>
      %100 = arith.negf %99 : vector<8x16xf32>
      %101 = math.exp %100 : vector<8x16xf32>
      %cst_56 = arith.constant 1.000000e+00 : f32
      %102 = vector.broadcast %cst_56 : f32 to vector<8x16xf32>
      %103 = arith.addf %102, %101 : vector<8x16xf32>
      %104 = arith.divf %102, %103 : vector<8x16xf32>
      %105 = arith.mulf %96, %71 : vector<8x16xf32>
      %106 = arith.mulf %90, %98 : vector<8x16xf32>
      %107 = arith.addf %105, %106 : vector<8x16xf32>
      %108 = math.tanh %107 : vector<8x16xf32>
      %109 = arith.mulf %104, %108 : vector<8x16xf32>
      %110 = arith.index_cast %78 : i32 to index
      %c0_57 = arith.constant 0 : index
      %c0_58 = arith.constant 0 : index
      %111 = vector.load %arg11[%110, %c0_57, %c0_58] : memref<16x8x16xf32, #tpu.memory_space<vmem>>, vector<1x8x16xf32>
      %112 = vector.shape_cast %111 : vector<1x8x16xf32> to vector<8x16xf32>
      %113 = vector.shape_cast %109 : vector<8x16xf32> to vector<1x8x16xf32>
      tpu.vector_store %arg11[%110, %c0_57, %c0_58], %113 {strides = array<i32>} : memref<16x8x16xf32, #tpu.memory_space<vmem>>, vector<1x8x16xf32>,
      %c2_i32_59 = arith.constant 2 : i32
      %114 = arith.addi %41, %c2_i32_59 : i32
      %115 = arith.index_cast %114 : i32 to index
      %c0_60 = arith.constant 0 : index
      %c0_61 = arith.constant 0 : index
      %116 = vector.load %arg10[%115, %c0_60, %c0_61] : memref<16x8x64xf32, #tpu.memory_space<vmem>>, vector<1x8x64xf32>
      %117 = vector.shape_cast %116 : vector<1x8x64xf32> to vector<8x64xf32>
      %c0_62 = arith.constant 0 : index
      %c0_63 = arith.constant 0 : index
      %118 = vector.load %arg5[%c0_62, %c0_63] : memref<16x64xf32, #tpu.memory_space<vmem>>, vector<16x64xf32>
      %cst_64 = arith.constant dense<0.000000e+00> : vector<8x64xf32>
      %119 = tpu.matmul %109, %118, %cst_64 {dimension_numbers = #tpu.dot_dimension_numbers<[1], [0], [0], [1], [0, 0, 1, 1], [], []>} : vector<8x16xf32>, vector<16x64xf32>, vector<8x64xf32> -> vector<8x64xf32>
      %120 = arith.addf %117, %119 : vector<8x64xf32>
      %121 = vector.extract_strided_slice %120 {offsets = [0, 0], sizes = [8, 16], strides = [1, 1]} : vector<8x64xf32> to vector<8x16xf32>
      %122 = arith.negf %121 : vector<8x16xf32>
      %123 = math.exp %122 : vector<8x16xf32>
      %cst_65 = arith.constant 1.000000e+00 : f32
      %124 = vector.broadcast %cst_65 : f32 to vector<8x16xf32>
      %125 = arith.addf %124, %123 : vector<8x16xf32>
      %126 = arith.divf %124, %125 : vector<8x16xf32>
      %127 = vector.extract_strided_slice %120 {offsets = [0, 16], sizes = [8, 16], strides = [1, 1]} : vector<8x64xf32> to vector<8x16xf32>
      %128 = arith.negf %127 : vector<8x16xf32>
      %129 = math.exp %128 : vector<8x16xf32>
      %cst_66 = arith.constant 1.000000e+00 : f32
      %130 = vector.broadcast %cst_66 : f32 to vector<8x16xf32>
      %131 = arith.addf %130, %129 : vector<8x16xf32>
      %132 = arith.divf %130, %131 : vector<8x16xf32>
      %133 = vector.extract_strided_slice %120 {offsets = [0, 32], sizes = [8, 16], strides = [1, 1]} : vector<8x64xf32> to vector<8x16xf32>
      %134 = math.tanh %133 : vector<8x16xf32>
      %135 = vector.extract_strided_slice %120 {offsets = [0, 48], sizes = [8, 16], strides = [1, 1]} : vector<8x64xf32> to vector<8x16xf32>
      %136 = arith.negf %135 : vector<8x16xf32>
      %137 = math.exp %136 : vector<8x16xf32>
      %cst_67 = arith.constant 1.000000e+00 : f32
      %138 = vector.broadcast %cst_67 : f32 to vector<8x16xf32>
      %139 = arith.addf %138, %137 : vector<8x16xf32>
      %140 = arith.divf %138, %139 : vector<8x16xf32>
      %141 = arith.mulf %132, %107 : vector<8x16xf32>
      %142 = arith.mulf %126, %134 : vector<8x16xf32>
      %143 = arith.addf %141, %142 : vector<8x16xf32>
      %144 = math.tanh %143 : vector<8x16xf32>
      %145 = arith.mulf %140, %144 : vector<8x16xf32>
      %146 = arith.index_cast %114 : i32 to index
      %c0_68 = arith.constant 0 : index
      %c0_69 = arith.constant 0 : index
      %147 = vector.load %arg11[%146, %c0_68, %c0_69] : memref<16x8x16xf32, #tpu.memory_space<vmem>>, vector<1x8x16xf32>
      %148 = vector.shape_cast %147 : vector<1x8x16xf32> to vector<8x16xf32>
      %149 = vector.shape_cast %145 : vector<8x16xf32> to vector<1x8x16xf32>
      tpu.vector_store %arg11[%146, %c0_68, %c0_69], %149 {strides = array<i32>} : memref<16x8x16xf32, #tpu.memory_space<vmem>>, vector<1x8x16xf32>,
      %c3_i32 = arith.constant 3 : i32
      %150 = arith.addi %41, %c3_i32 : i32
      %151 = arith.index_cast %150 : i32 to index
      %c0_70 = arith.constant 0 : index
      %c0_71 = arith.constant 0 : index
      %152 = vector.load %arg10[%151, %c0_70, %c0_71] : memref<16x8x64xf32, #tpu.memory_space<vmem>>, vector<1x8x64xf32>
      %153 = vector.shape_cast %152 : vector<1x8x64xf32> to vector<8x64xf32>
      %c0_72 = arith.constant 0 : index
      %c0_73 = arith.constant 0 : index
      %154 = vector.load %arg5[%c0_72, %c0_73] : memref<16x64xf32, #tpu.memory_space<vmem>>, vector<16x64xf32>
      %cst_74 = arith.constant dense<0.000000e+00> : vector<8x64xf32>
      %155 = tpu.matmul %145, %154, %cst_74 {dimension_numbers = #tpu.dot_dimension_numbers<[1], [0], [0], [1], [0, 0, 1, 1], [], []>} : vector<8x16xf32>, vector<16x64xf32>, vector<8x64xf32> -> vector<8x64xf32>
      %156 = arith.addf %153, %155 : vector<8x64xf32>
      %157 = vector.extract_strided_slice %156 {offsets = [0, 0], sizes = [8, 16], strides = [1, 1]} : vector<8x64xf32> to vector<8x16xf32>
      %158 = arith.negf %157 : vector<8x16xf32>
      %159 = math.exp %158 : vector<8x16xf32>
      %cst_75 = arith.constant 1.000000e+00 : f32
      %160 = vector.broadcast %cst_75 : f32 to vector<8x16xf32>
      %161 = arith.addf %160, %159 : vector<8x16xf32>
      %162 = arith.divf %160, %161 : vector<8x16xf32>
      %163 = vector.extract_strided_slice %156 {offsets = [0, 16], sizes = [8, 16], strides = [1, 1]} : vector<8x64xf32> to vector<8x16xf32>
      %164 = arith.negf %163 : vector<8x16xf32>
      %165 = math.exp %164 : vector<8x16xf32>
      %cst_76 = arith.constant 1.000000e+00 : f32
      %166 = vector.broadcast %cst_76 : f32 to vector<8x16xf32>
      %167 = arith.addf %166, %165 : vector<8x16xf32>
      %168 = arith.divf %166, %167 : vector<8x16xf32>
      %169 = vector.extract_strided_slice %156 {offsets = [0, 32], sizes = [8, 16], strides = [1, 1]} : vector<8x64xf32> to vector<8x16xf32>
      %170 = math.tanh %169 : vector<8x16xf32>
      %171 = vector.extract_strided_slice %156 {offsets = [0, 48], sizes = [8, 16], strides = [1, 1]} : vector<8x64xf32> to vector<8x16xf32>
      %172 = arith.negf %171 : vector<8x16xf32>
      %173 = math.exp %172 : vector<8x16xf32>
      %cst_77 = arith.constant 1.000000e+00 : f32
      %174 = vector.broadcast %cst_77 : f32 to vector<8x16xf32>
      %175 = arith.addf %174, %173 : vector<8x16xf32>
      %176 = arith.divf %174, %175 : vector<8x16xf32>
      %177 = arith.mulf %168, %143 : vector<8x16xf32>
      %178 = arith.mulf %162, %170 : vector<8x16xf32>
      %179 = arith.addf %177, %178 : vector<8x16xf32>
      %180 = math.tanh %179 : vector<8x16xf32>
      %181 = arith.mulf %176, %180 : vector<8x16xf32>
      %182 = arith.index_cast %150 : i32 to index
      %c0_78 = arith.constant 0 : index
      %c0_79 = arith.constant 0 : index
      %183 = vector.load %arg11[%182, %c0_78, %c0_79] : memref<16x8x16xf32, #tpu.memory_space<vmem>>, vector<1x8x16xf32>
      %184 = vector.shape_cast %183 : vector<1x8x16xf32> to vector<8x16xf32>
      %185 = vector.shape_cast %181 : vector<8x16xf32> to vector<1x8x16xf32>
      tpu.vector_store %arg11[%182, %c0_78, %c0_79], %185 {strides = array<i32>} : memref<16x8x16xf32, #tpu.memory_space<vmem>>, vector<1x8x16xf32>,
      %c4_i32 = arith.constant 4 : i32
      %186 = arith.addi %41, %c4_i32 : i32
      %187 = arith.index_cast %186 : i32 to index
      %c0_80 = arith.constant 0 : index
      %c0_81 = arith.constant 0 : index
      %188 = vector.load %arg10[%187, %c0_80, %c0_81] : memref<16x8x64xf32, #tpu.memory_space<vmem>>, vector<1x8x64xf32>
      %189 = vector.shape_cast %188 : vector<1x8x64xf32> to vector<8x64xf32>
      %c0_82 = arith.constant 0 : index
      %c0_83 = arith.constant 0 : index
      %190 = vector.load %arg5[%c0_82, %c0_83] : memref<16x64xf32, #tpu.memory_space<vmem>>, vector<16x64xf32>
      %cst_84 = arith.constant dense<0.000000e+00> : vector<8x64xf32>
      %191 = tpu.matmul %181, %190, %cst_84 {dimension_numbers = #tpu.dot_dimension_numbers<[1], [0], [0], [1], [0, 0, 1, 1], [], []>} : vector<8x16xf32>, vector<16x64xf32>, vector<8x64xf32> -> vector<8x64xf32>
      %192 = arith.addf %189, %191 : vector<8x64xf32>
      %193 = vector.extract_strided_slice %192 {offsets = [0, 0], sizes = [8, 16], strides = [1, 1]} : vector<8x64xf32> to vector<8x16xf32>
      %194 = arith.negf %193 : vector<8x16xf32>
      %195 = math.exp %194 : vector<8x16xf32>
      %cst_85 = arith.constant 1.000000e+00 : f32
      %196 = vector.broadcast %cst_85 : f32 to vector<8x16xf32>
      %197 = arith.addf %196, %195 : vector<8x16xf32>
      %198 = arith.divf %196, %197 : vector<8x16xf32>
      %199 = vector.extract_strided_slice %192 {offsets = [0, 16], sizes = [8, 16], strides = [1, 1]} : vector<8x64xf32> to vector<8x16xf32>
      %200 = arith.negf %199 : vector<8x16xf32>
      %201 = math.exp %200 : vector<8x16xf32>
      %cst_86 = arith.constant 1.000000e+00 : f32
      %202 = vector.broadcast %cst_86 : f32 to vector<8x16xf32>
      %203 = arith.addf %202, %201 : vector<8x16xf32>
      %204 = arith.divf %202, %203 : vector<8x16xf32>
      %205 = vector.extract_strided_slice %192 {offsets = [0, 32], sizes = [8, 16], strides = [1, 1]} : vector<8x64xf32> to vector<8x16xf32>
      %206 = math.tanh %205 : vector<8x16xf32>
      %207 = vector.extract_strided_slice %192 {offsets = [0, 48], sizes = [8, 16], strides = [1, 1]} : vector<8x64xf32> to vector<8x16xf32>
      %208 = arith.negf %207 : vector<8x16xf32>
      %209 = math.exp %208 : vector<8x16xf32>
      %cst_87 = arith.constant 1.000000e+00 : f32
      %210 = vector.broadcast %cst_87 : f32 to vector<8x16xf32>
      %211 = arith.addf %210, %209 : vector<8x16xf32>
      %212 = arith.divf %210, %211 : vector<8x16xf32>
      %213 = arith.mulf %204, %179 : vector<8x16xf32>
      %214 = arith.mulf %198, %206 : vector<8x16xf32>
      %215 = arith.addf %213, %214 : vector<8x16xf32>
      %216 = math.tanh %215 : vector<8x16xf32>
      %217 = arith.mulf %212, %216 : vector<8x16xf32>
      %218 = arith.index_cast %186 : i32 to index
      %c0_88 = arith.constant 0 : index
      %c0_89 = arith.constant 0 : index
      %219 = vector.load %arg11[%218, %c0_88, %c0_89] : memref<16x8x16xf32, #tpu.memory_space<vmem>>, vector<1x8x16xf32>
      %220 = vector.shape_cast %219 : vector<1x8x16xf32> to vector<8x16xf32>
      %221 = vector.shape_cast %217 : vector<8x16xf32> to vector<1x8x16xf32>
      tpu.vector_store %arg11[%218, %c0_88, %c0_89], %221 {strides = array<i32>} : memref<16x8x16xf32, #tpu.memory_space<vmem>>, vector<1x8x16xf32>,
      %c5_i32 = arith.constant 5 : i32
      %222 = arith.addi %41, %c5_i32 : i32
      %223 = arith.index_cast %222 : i32 to index
      %c0_90 = arith.constant 0 : index
      %c0_91 = arith.constant 0 : index
      %224 = vector.load %arg10[%223, %c0_90, %c0_91] : memref<16x8x64xf32, #tpu.memory_space<vmem>>, vector<1x8x64xf32>
      %225 = vector.shape_cast %224 : vector<1x8x64xf32> to vector<8x64xf32>
      %c0_92 = arith.constant 0 : index
      %c0_93 = arith.constant 0 : index
      %226 = vector.load %arg5[%c0_92, %c0_93] : memref<16x64xf32, #tpu.memory_space<vmem>>, vector<16x64xf32>
      %cst_94 = arith.constant dense<0.000000e+00> : vector<8x64xf32>
      %227 = tpu.matmul %217, %226, %cst_94 {dimension_numbers = #tpu.dot_dimension_numbers<[1], [0], [0], [1], [0, 0, 1, 1], [], []>} : vector<8x16xf32>, vector<16x64xf32>, vector<8x64xf32> -> vector<8x64xf32>
      %228 = arith.addf %225, %227 : vector<8x64xf32>
      %229 = vector.extract_strided_slice %228 {offsets = [0, 0], sizes = [8, 16], strides = [1, 1]} : vector<8x64xf32> to vector<8x16xf32>
      %230 = arith.negf %229 : vector<8x16xf32>
      %231 = math.exp %230 : vector<8x16xf32>
      %cst_95 = arith.constant 1.000000e+00 : f32
      %232 = vector.broadcast %cst_95 : f32 to vector<8x16xf32>
      %233 = arith.addf %232, %231 : vector<8x16xf32>
      %234 = arith.divf %232, %233 : vector<8x16xf32>
      %235 = vector.extract_strided_slice %228 {offsets = [0, 16], sizes = [8, 16], strides = [1, 1]} : vector<8x64xf32> to vector<8x16xf32>
      %236 = arith.negf %235 : vector<8x16xf32>
      %237 = math.exp %236 : vector<8x16xf32>
      %cst_96 = arith.constant 1.000000e+00 : f32
      %238 = vector.broadcast %cst_96 : f32 to vector<8x16xf32>
      %239 = arith.addf %238, %237 : vector<8x16xf32>
      %240 = arith.divf %238, %239 : vector<8x16xf32>
      %241 = vector.extract_strided_slice %228 {offsets = [0, 32], sizes = [8, 16], strides = [1, 1]} : vector<8x64xf32> to vector<8x16xf32>
      %242 = math.tanh %241 : vector<8x16xf32>
      %243 = vector.extract_strided_slice %228 {offsets = [0, 48], sizes = [8, 16], strides = [1, 1]} : vector<8x64xf32> to vector<8x16xf32>
      %244 = arith.negf %243 : vector<8x16xf32>
      %245 = math.exp %244 : vector<8x16xf32>
      %cst_97 = arith.constant 1.000000e+00 : f32
      %246 = vector.broadcast %cst_97 : f32 to vector<8x16xf32>
      %247 = arith.addf %246, %245 : vector<8x16xf32>
      %248 = arith.divf %246, %247 : vector<8x16xf32>
      %249 = arith.mulf %240, %215 : vector<8x16xf32>
      %250 = arith.mulf %234, %242 : vector<8x16xf32>
      %251 = arith.addf %249, %250 : vector<8x16xf32>
      %252 = math.tanh %251 : vector<8x16xf32>
      %253 = arith.mulf %248, %252 : vector<8x16xf32>
      %254 = arith.index_cast %222 : i32 to index
      %c0_98 = arith.constant 0 : index
      %c0_99 = arith.constant 0 : index
      %255 = vector.load %arg11[%254, %c0_98, %c0_99] : memref<16x8x16xf32, #tpu.memory_space<vmem>>, vector<1x8x16xf32>
      %256 = vector.shape_cast %255 : vector<1x8x16xf32> to vector<8x16xf32>
      %257 = vector.shape_cast %253 : vector<8x16xf32> to vector<1x8x16xf32>
      tpu.vector_store %arg11[%254, %c0_98, %c0_99], %257 {strides = array<i32>} : memref<16x8x16xf32, #tpu.memory_space<vmem>>, vector<1x8x16xf32>,
      %c6_i32 = arith.constant 6 : i32
      %258 = arith.addi %41, %c6_i32 : i32
      %259 = arith.index_cast %258 : i32 to index
      %c0_100 = arith.constant 0 : index
      %c0_101 = arith.constant 0 : index
      %260 = vector.load %arg10[%259, %c0_100, %c0_101] : memref<16x8x64xf32, #tpu.memory_space<vmem>>, vector<1x8x64xf32>
      %261 = vector.shape_cast %260 : vector<1x8x64xf32> to vector<8x64xf32>
      %c0_102 = arith.constant 0 : index
      %c0_103 = arith.constant 0 : index
      %262 = vector.load %arg5[%c0_102, %c0_103] : memref<16x64xf32, #tpu.memory_space<vmem>>, vector<16x64xf32>
      %cst_104 = arith.constant dense<0.000000e+00> : vector<8x64xf32>
      %263 = tpu.matmul %253, %262, %cst_104 {dimension_numbers = #tpu.dot_dimension_numbers<[1], [0], [0], [1], [0, 0, 1, 1], [], []>} : vector<8x16xf32>, vector<16x64xf32>, vector<8x64xf32> -> vector<8x64xf32>
      %264 = arith.addf %261, %263 : vector<8x64xf32>
      %265 = vector.extract_strided_slice %264 {offsets = [0, 0], sizes = [8, 16], strides = [1, 1]} : vector<8x64xf32> to vector<8x16xf32>
      %266 = arith.negf %265 : vector<8x16xf32>
      %267 = math.exp %266 : vector<8x16xf32>
      %cst_105 = arith.constant 1.000000e+00 : f32
      %268 = vector.broadcast %cst_105 : f32 to vector<8x16xf32>
      %269 = arith.addf %268, %267 : vector<8x16xf32>
      %270 = arith.divf %268, %269 : vector<8x16xf32>
      %271 = vector.extract_strided_slice %264 {offsets = [0, 16], sizes = [8, 16], strides = [1, 1]} : vector<8x64xf32> to vector<8x16xf32>
      %272 = arith.negf %271 : vector<8x16xf32>
      %273 = math.exp %272 : vector<8x16xf32>
      %cst_106 = arith.constant 1.000000e+00 : f32
      %274 = vector.broadcast %cst_106 : f32 to vector<8x16xf32>
      %275 = arith.addf %274, %273 : vector<8x16xf32>
      %276 = arith.divf %274, %275 : vector<8x16xf32>
      %277 = vector.extract_strided_slice %264 {offsets = [0, 32], sizes = [8, 16], strides = [1, 1]} : vector<8x64xf32> to vector<8x16xf32>
      %278 = math.tanh %277 : vector<8x16xf32>
      %279 = vector.extract_strided_slice %264 {offsets = [0, 48], sizes = [8, 16], strides = [1, 1]} : vector<8x64xf32> to vector<8x16xf32>
      %280 = arith.negf %279 : vector<8x16xf32>
      %281 = math.exp %280 : vector<8x16xf32>
      %cst_107 = arith.constant 1.000000e+00 : f32
      %282 = vector.broadcast %cst_107 : f32 to vector<8x16xf32>
      %283 = arith.addf %282, %281 : vector<8x16xf32>
      %284 = arith.divf %282, %283 : vector<8x16xf32>
      %285 = arith.mulf %276, %251 : vector<8x16xf32>
      %286 = arith.mulf %270, %278 : vector<8x16xf32>
      %287 = arith.addf %285, %286 : vector<8x16xf32>
      %288 = math.tanh %287 : vector<8x16xf32>
      %289 = arith.mulf %284, %288 : vector<8x16xf32>
      %290 = arith.index_cast %258 : i32 to index
      %c0_108 = arith.constant 0 : index
      %c0_109 = arith.constant 0 : index
      %291 = vector.load %arg11[%290, %c0_108, %c0_109] : memref<16x8x16xf32, #tpu.memory_space<vmem>>, vector<1x8x16xf32>
      %292 = vector.shape_cast %291 : vector<1x8x16xf32> to vector<8x16xf32>
      %293 = vector.shape_cast %289 : vector<8x16xf32> to vector<1x8x16xf32>
      tpu.vector_store %arg11[%290, %c0_108, %c0_109], %293 {strides = array<i32>} : memref<16x8x16xf32, #tpu.memory_space<vmem>>, vector<1x8x16xf32>,
      %c7_i32 = arith.constant 7 : i32
      %294 = arith.addi %41, %c7_i32 : i32
      %295 = arith.index_cast %294 : i32 to index
      %c0_110 = arith.constant 0 : index
      %c0_111 = arith.constant 0 : index
      %296 = vector.load %arg10[%295, %c0_110, %c0_111] : memref<16x8x64xf32, #tpu.memory_space<vmem>>, vector<1x8x64xf32>
      %297 = vector.shape_cast %296 : vector<1x8x64xf32> to vector<8x64xf32>
      %c0_112 = arith.constant 0 : index
      %c0_113 = arith.constant 0 : index
      %298 = vector.load %arg5[%c0_112, %c0_113] : memref<16x64xf32, #tpu.memory_space<vmem>>, vector<16x64xf32>
      %cst_114 = arith.constant dense<0.000000e+00> : vector<8x64xf32>
      %299 = tpu.matmul %289, %298, %cst_114 {dimension_numbers = #tpu.dot_dimension_numbers<[1], [0], [0], [1], [0, 0, 1, 1], [], []>} : vector<8x16xf32>, vector<16x64xf32>, vector<8x64xf32> -> vector<8x64xf32>
      %300 = arith.addf %297, %299 : vector<8x64xf32>
      %301 = vector.extract_strided_slice %300 {offsets = [0, 0], sizes = [8, 16], strides = [1, 1]} : vector<8x64xf32> to vector<8x16xf32>
      %302 = arith.negf %301 : vector<8x16xf32>
      %303 = math.exp %302 : vector<8x16xf32>
      %cst_115 = arith.constant 1.000000e+00 : f32
      %304 = vector.broadcast %cst_115 : f32 to vector<8x16xf32>
      %305 = arith.addf %304, %303 : vector<8x16xf32>
      %306 = arith.divf %304, %305 : vector<8x16xf32>
      %307 = vector.extract_strided_slice %300 {offsets = [0, 16], sizes = [8, 16], strides = [1, 1]} : vector<8x64xf32> to vector<8x16xf32>
      %308 = arith.negf %307 : vector<8x16xf32>
      %309 = math.exp %308 : vector<8x16xf32>
      %cst_116 = arith.constant 1.000000e+00 : f32
      %310 = vector.broadcast %cst_116 : f32 to vector<8x16xf32>
      %311 = arith.addf %310, %309 : vector<8x16xf32>
      %312 = arith.divf %310, %311 : vector<8x16xf32>
      %313 = vector.extract_strided_slice %300 {offsets = [0, 32], sizes = [8, 16], strides = [1, 1]} : vector<8x64xf32> to vector<8x16xf32>
      %314 = math.tanh %313 : vector<8x16xf32>
      %315 = vector.extract_strided_slice %300 {offsets = [0, 48], sizes = [8, 16], strides = [1, 1]} : vector<8x64xf32> to vector<8x16xf32>
      %316 = arith.negf %315 : vector<8x16xf32>
      %317 = math.exp %316 : vector<8x16xf32>
      %cst_117 = arith.constant 1.000000e+00 : f32
      %318 = vector.broadcast %cst_117 : f32 to vector<8x16xf32>
      %319 = arith.addf %318, %317 : vector<8x16xf32>
      %320 = arith.divf %318, %319 : vector<8x16xf32>
      %321 = arith.mulf %312, %287 : vector<8x16xf32>
      %322 = arith.mulf %306, %314 : vector<8x16xf32>
      %323 = arith.addf %321, %322 : vector<8x16xf32>
      %324 = math.tanh %323 : vector<8x16xf32>
      %325 = arith.mulf %320, %324 : vector<8x16xf32>
      %326 = arith.index_cast %294 : i32 to index
      %c0_118 = arith.constant 0 : index
      %c0_119 = arith.constant 0 : index
      %327 = vector.load %arg11[%326, %c0_118, %c0_119] : memref<16x8x16xf32, #tpu.memory_space<vmem>>, vector<1x8x16xf32>
      %328 = vector.shape_cast %327 : vector<1x8x16xf32> to vector<8x16xf32>
      %329 = vector.shape_cast %325 : vector<8x16xf32> to vector<1x8x16xf32>
      tpu.vector_store %arg11[%326, %c0_118, %c0_119], %329 {strides = array<i32>} : memref<16x8x16xf32, #tpu.memory_space<vmem>>, vector<1x8x16xf32>,
      scf.yield %325, %323 : vector<8x16xf32>, vector<8x16xf32>
    }
    %c2_i32_21 = arith.constant 2 : i32
    %c0_22 = arith.constant 0 : index
    %c0_23 = arith.constant 0 : index
    %28 = vector.load %arg12[%c0_22, %c0_23] : memref<8x16xf32, #tpu.memory_space<vmem>>, vector<8x16xf32>
    tpu.vector_store %arg12[%c0_22, %c0_23], %27#0 {strides = array<i32>} : memref<8x16xf32, #tpu.memory_space<vmem>>, vector<8x16xf32>,
    %c0_24 = arith.constant 0 : index
    %c0_25 = arith.constant 0 : index
    %29 = vector.load %arg13[%c0_24, %c0_25] : memref<8x16xf32, #tpu.memory_space<vmem>>, vector<8x16xf32>
    tpu.vector_store %arg13[%c0_24, %c0_25], %27#1 {strides = array<i32>} : memref<8x16xf32, #tpu.memory_space<vmem>>, vector<8x16xf32>,
    %c0_26 = arith.constant 0 : index
    %c0_27 = arith.constant 0 : index
    %c0_28 = arith.constant 0 : index
    %30 = vector.load %arg11[%c0_26, %c0_27, %c0_28] : memref<16x8x16xf32, #tpu.memory_space<vmem>>, vector<16x8x16xf32>
    %31 = vector.shape_cast %30 : vector<16x8x16xf32> to vector<128x16xf32>
    %32 = arith.truncf %31 : vector<128x16xf32> to vector<128x16xbf16>
    %c0_29 = arith.constant 0 : index
    %c0_30 = arith.constant 0 : index
    %33 = vector.load %arg7[%c0_29, %c0_30] : memref<16x16xbf16, #tpu.memory_space<vmem>>, vector<16x16xbf16>
    %cst_31 = arith.constant dense<0.000000e+00> : vector<128x16xf32>
    %34 = tpu.matmul %32, %33, %cst_31 {dimension_numbers = #tpu.dot_dimension_numbers<[1], [0], [0], [1], [0, 0, 1, 1], [], []>} : vector<128x16xbf16>, vector<16x16xbf16>, vector<128x16xf32> -> vector<128x16xf32>
    %c0_32 = arith.constant 0 : index
    %c0_33 = arith.constant 0 : index
    %35 = vector.load %arg8[%c0_32, %c0_33] : memref<1x16xf32, #tpu.memory_space<vmem>>, vector<1x16xf32>
    %36 = vector.broadcast %35 : vector<1x16xf32> to vector<128x16xf32>
    %37 = arith.addf %34, %36 : vector<128x16xf32>
    %38 = vector.shape_cast %37 : vector<128x16xf32> to vector<16x8x16xf32>
    %c0_34 = arith.constant 0 : index
    %c0_35 = arith.constant 0 : index
    %c0_36 = arith.constant 0 : index
    %39 = vector.load %arg9[%c0_34, %c0_35, %c0_36] : memref<16x8x16xf32, #tpu.memory_space<vmem>>, vector<16x8x16xf32>
    tpu.vector_store %arg9[%c0_34, %c0_35, %c0_36], %38 {strides = array<i32>} : memref<16x8x16xf32, #tpu.memory_space<vmem>>, vector<16x8x16xf32>,
    return
  }
  func.func @transform_0(%arg0: i32) -> (i32, i32, i32) {
    %c0_i32 = arith.constant 0 : i32
    %c0_i32_0 = arith.constant 0 : i32
    %c0_i32_1 = arith.constant 0 : i32
    return %arg0, %c0_i32, %c0_i32_0 : i32, i32, i32
  }
  func.func @transform_1(%arg0: i32) -> (i32, i32, i32) {
    %c0_i32 = arith.constant 0 : i32
    %c0_i32_0 = arith.constant 0 : i32
    %c0_i32_1 = arith.constant 0 : i32
    return %arg0, %c0_i32, %c0_i32_0 : i32, i32, i32
  }
  func.func @transform_2(%arg0: i32) -> (i32, i32) {
    %c0_i32 = arith.constant 0 : i32
    %c0_i32_0 = arith.constant 0 : i32
    %c0_i32_1 = arith.constant 0 : i32
    return %c0_i32, %c0_i32_0 : i32, i32
  }
  func.func @transform_3(%arg0: i32) -> (i32, i32) {
    %c0_i32 = arith.constant 0 : i32
    %c0_i32_0 = arith.constant 0 : i32
    %c0_i32_1 = arith.constant 0 : i32
    return %c0_i32, %c0_i32_0 : i32, i32
  }
  func.func @transform_4(%arg0: i32) -> (i32, i32) {
    %c0_i32 = arith.constant 0 : i32
    %c0_i32_0 = arith.constant 0 : i32
    %c0_i32_1 = arith.constant 0 : i32
    return %c0_i32, %c0_i32_0 : i32, i32
  }
  func.func @transform_5(%arg0: i32) -> (i32, i32) {
    %c0_i32 = arith.constant 0 : i32
    %c0_i32_0 = arith.constant 0 : i32
    %c0_i32_1 = arith.constant 0 : i32
    return %c0_i32, %c0_i32_0 : i32, i32
  }
  func.func @transform_6(%arg0: i32) -> (i32, i32) {
    %c0_i32 = arith.constant 0 : i32
    %c0_i32_0 = arith.constant 0 : i32
    %c0_i32_1 = arith.constant 0 : i32
    return %c0_i32, %c0_i32_0 : i32, i32
  }
  func.func @transform_7(%arg0: i32) -> (i32, i32) {
    %c0_i32 = arith.constant 0 : i32
    %c0_i32_0 = arith.constant 0 : i32
    %c0_i32_1 = arith.constant 0 : i32
    return %c0_i32, %c0_i32_0 : i32, i32
  }
  func.func @transform_8(%arg0: i32) -> (i32, i32, i32) {
    %c0_i32 = arith.constant 0 : i32
    %c0_i32_0 = arith.constant 0 : i32
    %c0_i32_1 = arith.constant 0 : i32
    return %arg0, %c0_i32, %c0_i32_0 : i32, i32, i32
  }
}

</mosaic_0001>

<llo_original>
// kernel: generator_forward.5
$region0: #{generator_forward.5}
  #allocation0 [shape = 'u32[]', space=smem, size = 0x4, offset = 0x4, fixed_abs, tag = 'smem constant byte address 0x4 - core index']
  #allocation1 [shape = 'u32[144,128]{1,0:T(1,128)}', space=vmem, size = 0x12000, scoped, tag = 'internal scratch']
  %s0 = inlined_call_operand.vmem [shape: f32[2,16,16], index: 0, kind: input, shape index: {}]
  %s1 = inlined_call_operand.vmem [shape: bf16[80,12], index: 1, kind: input, shape index: {}]
  %s2 = inlined_call_operand.vmem [shape: f32[1,12], index: 2, kind: input, shape index: {}]
  %s3 = inlined_call_operand.vmem [shape: f32[2,2,12], index: 3, kind: output, shape index: {}]
  %s4 = sld [smem:[#allocation0]]
  $region45: #{generator_forward.5} parent=0
    _
  %s6 = ssub.s32 1, %s4
  %s7 = scalar_select 0, %s6, %s4
  loop: start=0, step=1, limit=4
  $region2: #{generator_forward.5} parent=0 // loop_pre_header
    _
  $region3: #{generator_forward.5} parent=0 // loop_header
    %s9 = sphi 0, %s13
    %p10 = scmp.ge.s32.totalorder %s9, 4
    %s19 = sphi 0, %s21
    %s22 = sphi 0, %s19
    %s23 = sphi 0, %s22
    %s39 = sphi 0, %s23
    %s43 = sphi 0, %s43
    %s45 = sphi 0, %s43
    %s46 = sphi 0, %s45
    %s60 = sphi 0, %s46
    %s64 = sphi 0, %s64
    %s66 = sphi 0, %s64
    %s67 = sphi 0, %s66
    %s81 = sphi 0, %s67
    %s87 = sphi 0, %s89
    %s90 = sphi 0, %s87
    %s91 = sphi 0, %s90
    %s107 = sphi 0, %s91
  $region4: #{generator_forward.5} parent=0 // loop_header_branch
    %12 = sbr.rel (%p10) target = $region8
  $region5: #{generator_forward.5} parent=0 // loop_body
    %s14 = ssub.s32 %s9, 1
    %s15 = ssub.s32 %s9, 2
    %s16 = sadd.s32 %s9, 1
    %s17 = ssub.s32 %s9, %s16
    %p18 = scmp.eq.s32.totalorder %s17, 0
    %s20 = sadd.s32 %s19, 1
    %s21 = scalar_select %p18, %s19, %s20
    %p24 = pneg %p18
    %p25 = scmp.eq.s32.totalorder %s9, 1
    %p26 = por %p24, %p25
    %p27 = scmp.ne.s32.totalorder %s19, %s22
    %p28 = scmp.eq.s32.totalorder %s9, 0
    %p29 = por %p27, %p28
    %p30 = scmp.ne.s32.totalorder %s19, %s22
    %p31 = scmp.eq.s32.totalorder %s14, 1
    %p32 = por %p30, %p31
    %p33 = scmp.ne.s32.totalorder %s22, %s23
    %p34 = scmp.eq.s32.totalorder %s14, 0
    %p35 = por %p33, %p34
    %p36 = scmp.ne.s32.totalorder %s22, %s23
    %p37 = scmp.eq.s32.totalorder %s15, 1
    %p38 = por %p36, %p37
    %p40 = scmp.ne.s32.totalorder %s23, %s39
    %p41 = scmp.eq.s32.totalorder %s15, 0
    %p42 = por %p40, %p41
    %s44 = sadd.s32 %s43, 1
    %p47 = scmp.eq.s32.totalorder %s9, 1
    %p48 = scmp.ne.s32.totalorder %s43, %s45
    %p49 = scmp.eq.s32.totalorder %s9, 0
    %p50 = por %p48, %p49
    %p51 = scmp.ne.s32.totalorder %s43, %s45
    %p52 = scmp.eq.s32.totalorder %s14, 1
    %p53 = por %p51, %p52
    %p54 = scmp.ne.s32.totalorder %s45, %s46
    %p55 = scmp.eq.s32.totalorder %s14, 0
    %p56 = por %p54, %p55
    %p57 = scmp.ne.s32.totalorder %s45, %s46
    %p58 = scmp.eq.s32.totalorder %s15, 1
    %p59 = por %p57, %p58
    %p61 = scmp.ne.s32.totalorder %s46, %s60
    %p62 = scmp.eq.s32.totalorder %s15, 0
    %p63 = por %p61, %p62
    %s65 = sadd.s32 %s64, 1
    %p68 = scmp.eq.s32.totalorder %s9, 1
    %p69 = scmp.ne.s32.totalorder %s64, %s66
    %p70 = scmp.eq.s32.totalorder %s9, 0
    %p71 = por %p69, %p70
    %p72 = scmp.ne.s32.totalorder %s64, %s66
    %p73 = scmp.eq.s32.totalorder %s14, 1
    %p74 = por %p72, %p73
    %p75 = scmp.ne.s32.totalorder %s66, %s67
    %p76 = scmp.eq.s32.totalorder %s14, 0
    %p77 = por %p75, %p76
    %p78 = scmp.ne.s32.totalorder %s66, %s67
    %p79 = scmp.eq.s32.totalorder %s15, 1
    %p80 = por %p78, %p79
    %p82 = scmp.ne.s32.totalorder %s67, %s81
    %p83 = scmp.eq.s32.totalorder %s15, 0
    %p84 = por %p82, %p83
    %s85 = ssub.s32 %s9, %s16
    %p86 = scmp.eq.s32.totalorder %s85, 0
    %s88 = sadd.s32 %s87, 1
    %s89 = scalar_select %p86, %s87, %s88
    %p92 = pneg %p86
    %p93 = scmp.eq.s32.totalorder %s9, 1
    %p94 = por %p92, %p93
    %p95 = scmp.ne.s32.totalorder %s87, %s90
    %p96 = scmp.eq.s32.totalorder %s9, 0
    %p97 = por %p95, %p96
    %p98 = scmp.ne.s32.totalorder %s87, %s90
    %p99 = scmp.eq.s32.totalorder %s14, 1
    %p100 = por %p98, %p99
    %p101 = scmp.ne.s32.totalorder %s90, %s91
    %p102 = scmp.eq.s32.totalorder %s14, 0
    %p103 = por %p101, %p102
    %p104 = scmp.ne.s32.totalorder %s90, %s91
    %p105 = scmp.eq.s32.totalorder %s15, 1
    %p106 = por %p104, %p105
    %p108 = scmp.ne.s32.totalorder %s91, %s107
    %p109 = scmp.eq.s32.totalorder %s15, 0
    %p110 = por %p108, %p109
    %p111 = scmp.le.s32.totalorder 1, %s9
    %p112 = scmp.lt.s32.totalorder %s9, 3
    %p113 = pnand %p111, %p112
    %p114 = pneg %p113
    // Predicated region
    $region9: #{generator_forward.5} parent=5 // pred_check
      _
    $region10: #{generator_forward.5} parent=5 // pred_check_branch
      %116 = sbr.rel (%p113) target = $region12
    $region11: #{generator_forward.5} parent=5 // pred_region
      %s117 = ssub.s32 %s9, 1
      // Predicated region
      $region13: #{generator_forward.5} parent=11 // pred_check
        %p118 = pneg %p56
      $region14: #{generator_forward.5} parent=11 // pred_check_branch
        %120 = sbr.rel (%p118) target = $region16
      $region15: #{generator_forward.5} parent=11 // pred_region
        _
      $region16: #{generator_forward.5} parent=11 // pred_fallthru
        _
      // Predicated region
      $region17: #{generator_forward.5} parent=11 // pred_check
        %p121 = pneg %p77
      $region18: #{generator_forward.5} parent=11 // pred_check_branch
        %123 = sbr.rel (%p121) target = $region20
      $region19: #{generator_forward.5} parent=11 // pred_region
        _
      $region20: #{generator_forward.5} parent=11 // pred_fallthru
        _
    $region12: #{generator_forward.5} parent=5 // pred_fallthru
      _
    %p124 = scmp.lt.s32.totalorder %s9, 2
    // Predicated region
    $region21: #{generator_forward.5} parent=5 // pred_check
      %p125 = pneg %p124
    $region22: #{generator_forward.5} parent=5 // pred_check_branch
      %127 = sbr.rel (%p125) target = $region24
    $region23: #{generator_forward.5} parent=5 // pred_region
      // Predicated region
      $region25: #{generator_forward.5} parent=23 // pred_check
        %p128 = pneg %p29
      $region26: #{generator_forward.5} parent=23 // pred_check_branch
        %130 = sbr.rel (%p128) target = $region28
      $region27: #{generator_forward.5} parent=23 // pred_region
        %p131 = scmp.lt.s32.totalorder %s9, 1
        %s132 = scalar_select %p131, %s9, 1
        %s133 = smul.addr %s132, 2
        %s134 = smul.addr %s133, 8
        %s135 = scalar_lea.vmem %s0, %s134
      $region28: #{generator_forward.5} parent=23 // pred_fallthru
        _
    $region24: #{generator_forward.5} parent=5 // pred_fallthru
      _
    %p136 = scmp.le.s32.totalorder 1, %s9
    %p137 = scmp.lt.s32.totalorder %s9, 3
    %p138 = pnand %p136, %p137
    %p139 = pneg %p138
    // Predicated region
    $region29: #{generator_forward.5} parent=5 // pred_check
      _
    $region30: #{generator_forward.5} parent=5 // pred_check_branch
      %141 = sbr.rel (%p138) target = $region32
    $region31: #{generator_forward.5} parent=5 // pred_region
      %s142 = ssub.s32 %s9, 1
      %p143 = scmp.lt.s32.totalorder %s14, 1
      %s144 = scalar_select %p143, %s14, 1
      %s145 = smul.addr %s144, 2
      %s146 = smul.addr %s145, 8
      %s147 = scalar_lea.vmem %s0, %s146
      %p148 = pneg %p35
      %p149 = pneg %p32
      %p150 = pneg %p56
      %p151 = pneg %p53
      %p152 = pneg %p77
      %p153 = pneg %p74
      %p154 = pneg %p103
      %p155 = pneg %p100
      %p156 = scmp.lt.s32.totalorder %s14, 1
      %s157 = scalar_select %p156, %s14, 1
      %s158 = smul.addr %s157, 2
      %s159 = scalar_lea.vmem %s3, %s158
      %p160 = scmp.lt.s32.totalorder %s14, 1
      %s161 = scalar_select %p160, %s14, 1
      %s162 = smul.addr %s161, 2
      %s163 = smul.addr %s162, 8
      %s164 = scalar_lea.vmem %s0, %s163
      %p165 = scmp.lt.s32.totalorder %s14, 1
      %s166 = scalar_select %p165, %s14, 1
      %s167 = smul.addr %s166, 2
      %s168 = scalar_lea.vmem %s3, %s167
      %s170 = scalar_lea.vmem %s164, 6
      %v171 = vld [vmem:[%s170] ss:$8 sm:$0x1]
      %v173 = vrot.slane %v171, 7
      %vm175 = vcmask 1040384
      %v176 = vsel %vm175, 0.0, %v173
      %s177 = scalar_lea.vmem %s164, 7
      %v178 = vld [vmem:[%s177] ss:$8 sm:$0x1]
      %v180 = vrot.slane %v178, 7
      %v182 = vsel %vm175, 0.0, %v180
      %v183 = vld [vmem:[%s164] ss:$8 sm:$0x3]
      %s184 = scalar_lea.vmem %s164, 1
      %v185 = vld [vmem:[%s184] ss:$8 sm:$0x3]
      %s186 = scalar_lea.vmem %s164, 2
      %v187 = vld [vmem:[%s186] ss:$8 sm:$0x3]
      %189 = vrot.lane.b32.xlu0 %v182, 16
      %v190 = vpop.permute.xlu0 %189
      %193 = vrot.lane.b32.xlu0 %v183, 32
      %v194 = vpop.permute.xlu0 %193
      %197 = vrot.lane.b32.xlu0 %v185, 48
      %v198 = vpop.permute.xlu0 %197
      %201 = vrot.lane.b32.xlu0 %v187, 64
      %v202 = vpop.permute.xlu0 %201
      %vm204 = vcmask 130048
      %v205 = vsel %vm204, %v176, %v190
      %vm206 = vcmask 261120
      %v207 = vsel %vm206, %v205, %v194
      %vm208 = vcmask 392192
      %v209 = vsel %vm208, %v207, %v198
      %vm210 = vcmask 523264
      %v211 = vsel %vm210, %v209, %v202
      %v212 = vpack.c.bf16 %v211, %v211
      %v213 = vld [vmem:[%s1] sm:$0xf]
      %v214 = vld [vmem:[%s1 + $0x4] sm:$0xf]
      %v215 = vld [vmem:[%s1 + $0x8] sm:$0xf]
      %v216 = vld [vmem:[%s1 + $0xc] sm:$0xf]
      %v217 = vld [vmem:[%s1 + $0x10] sm:$0xf]
      %v218 = vld [vmem:[%s1 + $0x14] sm:$0xf]
      %v219 = vld [vmem:[%s1 + $0x18] sm:$0xf]
      %v220 = vld [vmem:[%s1 + $0x1c] sm:$0xf]
      %v221 = vld [vmem:[%s1 + $0x20] sm:$0xf]
      %v222 = vld [vmem:[%s1 + $0x24] sm:$0xf]
      %v223 = vld [vmem:[%s2] sm:$0x1]
      %v225 = vlaneseq
      %v226 = vshrl.u32 %v225, 7
      %v227 = vsub.s32 0, %v226
      %v228 = vrot.slane %v223, %v227
      %v240 = vunpack.c.l.b16 %v213
      %v241 = vunpack.c.l.b16 %v214
      %v242 = vunpack.c.l.b16 %v215
      %v243 = vunpack.c.l.b16 %v216
      %v244 = vunpack.c.l.b16 %v217
      %v245 = vunpack.c.l.b16 %v218
      %v246 = vunpack.c.l.b16 %v219
      %v247 = vunpack.c.l.b16 %v220
      %v248 = vunpack.c.l.b16 %v221
      %v249 = vunpack.c.l.b16 %v222
      %v250 = vpack.c.b16 %v241, %v240
      %v251 = vpack.c.b16 %v243, %v242
      %v252 = vpack.c.b16 %v245, %v244
      %v253 = vpack.c.b16 %v247, %v246
      %v254 = vpack.c.b16 %v249, %v248
      %vm260 = vcmask 654336
      %v262 = vsel %vm260, %v212, 0
      %264 = vmatprep.subr.bf16.mxu0 0
      %265 = vmatpush1.bf16.msra.mxu0 %v250
      %266 = vmatprep.subr.bf16.mxu0 0
      %267 = vmatpush1.bf16.msra.mxu0 %v251
      %268 = vmatprep.subr.bf16.mxu0 0
      %269 = vmatpush1.bf16.msra.mxu0 %v252
      %270 = vmatprep.subr.bf16.mxu0 0
      %271 = vmatpush1.bf16.msra.mxu0 %v253
      %272 = vmatprep.subr.bf16.mxu0 0
      %273 = vmatpush1.bf16.msra.mxu0 %v254
      %274 = vmatprep.subr.bf16.mxu0 0
      %275 = vmatpush1.bf16.msra.mxu0 0
      %276 = vmatprep.subr.bf16.mxu0 0
      %277 = vmatpush1.bf16.msra.mxu0 0
      %278 = vmatprep.subr.bf16.mxu0 0
      %279 = vmatpush1.bf16.msra.mxu0 0
      %280 = vmatprep.subr.bf16.mxu0 0
      %281 = vmatpush1.bf16.msra.mxu0 0
      %282 = vmatprep.subr.bf16.mxu0 0
      %283 = vmatpush1.bf16.msra.mxu0 0
      %284 = vmatprep.subr.bf16.mxu0 0
      %285 = vmatpush1.bf16.msra.mxu0 0
      %286 = vmatprep.subr.bf16.mxu0 0
      %287 = vmatpush1.bf16.msra.mxu0 0
      %288 = vmatprep.subr.bf16.mxu0 0
      %289 = vmatpush1.bf16.msra.mxu0 0
      %290 = vmatprep.subr.bf16.mxu0 0
      %291 = vmatpush1.bf16.msra.mxu0 0
      %292 = vmatprep.subr.bf16.mxu0 0
      %293 = vmatpush1.bf16.msra.mxu0 0
      %294 = vmatprep.subr.bf16.mxu0 0
      %295 = vmatpush1.bf16.msra.mxu0 0
      %296 = vmatprep.mubr.bf16.mxu0 0
      %297 = vmatmul.mubr.bf16.gmra.mrb[0].mxu0 %v262
      %v298 = vpop.f32.mrb[0].mxu0
      %v299 = vadd.f32 %v228, %v298
      %v300 = vpop.f32.mrb[0].mxu0
      %v301 = vpop.f32.mrb[0].mxu0
      %v302 = vpop.f32.mrb[0].mxu0
      %303 = vdwg.mxu0
      %v304 = vmax.f32 %v299, 0.0
      %vm305 = vcmask 91136
      %306 = vst.msk [vmem:[%s168] sm:$0x3] %vm305, %v304
      %p307 = scmp.lt.s32.totalorder %s14, 1
      %s308 = scalar_select %p307, %s14, 1
      %s309 = smul.addr %s308, 2
      %s310 = scalar_lea.vmem %s3, %s309
      // Predicated region
      $region33: #{generator_forward.5} parent=31 // pred_check
        %p311 = pneg %p100
      $region34: #{generator_forward.5} parent=31 // pred_check_branch
        %313 = sbr.rel (%p311) target = $region36
      $region35: #{generator_forward.5} parent=31 // pred_region
        _
      $region36: #{generator_forward.5} parent=31 // pred_fallthru
        _
    $region32: #{generator_forward.5} parent=5 // pred_fallthru
      _
    %p314 = scmp.le.s32.totalorder 2, %s9
    // Predicated region
    $region37: #{generator_forward.5} parent=5 // pred_check
      %p315 = pneg %p314
    $region38: #{generator_forward.5} parent=5 // pred_check_branch
      %317 = sbr.rel (%p315) target = $region40
    $region39: #{generator_forward.5} parent=5 // pred_region
      %s318 = ssub.s32 %s9, 2
      // Predicated region
      $region41: #{generator_forward.5} parent=39 // pred_check
        %p319 = pneg %p106
      $region42: #{generator_forward.5} parent=39 // pred_check_branch
        %321 = sbr.rel (%p319) target = $region44
      $region43: #{generator_forward.5} parent=39 // pred_region
        %p322 = scmp.lt.s32.totalorder %s15, 1
        %s323 = scalar_select %p322, %s15, 1
        %s324 = smul.addr %s323, 2
        %s325 = scalar_lea.vmem %s3, %s324
      $region44: #{generator_forward.5} parent=39 // pred_fallthru
        _
    $region40: #{generator_forward.5} parent=5 // pred_fallthru
      _
  $region6: #{generator_forward.5} parent=0 // loop_footer
    %s13 = sadd.s32 1, %s9
  $region7: #{generator_forward.5} parent=0 // loop_footer_branch
    %8 = sbr.rel target = $region3
  $region8: #{generator_forward.5} parent=0 // loop_exit
    _

// kernel: generator_forward.6
$region0: #{generator_forward.6}
  #allocation0 [shape = 'u32[]', space=smem, size = 0x4, offset = 0x4, fixed_abs, tag = 'smem constant byte address 0x4 - core index']
  #allocation1 [shape = 'u32[144,128]{1,0:T(1,128)}', space=vmem, size = 0x12000, scoped, tag = 'internal scratch']
  #allocation2 [shape = 'f32[16,8,64]{2,1,0:T(8,128)}', space=vmem, size = 0x10000, scoped, tag = 'scratch operand']
  #allocation3 [shape = 'f32[16,8,16]{2,1,0:T(8,128)}', space=vmem, size = 0x10000, scoped, tag = 'scratch operand']
  #allocation4 [shape = 'f32[8,16]{1,0:T(8,128)}', space=vmem, size = 0x1000, scoped, tag = 'scratch operand']
  #allocation5 [shape = 'f32[8,16]{1,0:T(8,128)}', space=vmem, size = 0x1000, scoped, tag = 'scratch operand']
  %s0 = inlined_call_operand.vmem [shape: f32[2,8,12], index: 0, kind: input, shape index: {}]
  %s1 = inlined_call_operand.vmem [shape: f32[1,8,8], index: 1, kind: input, shape index: {}]
  %s2 = inlined_call_operand.vmem [shape: bf16[12,64], index: 2, kind: input, shape index: {}]
  %s3 = inlined_call_operand.vmem [shape: bf16[8,64], index: 3, kind: input, shape index: {}]
  %s4 = inlined_call_operand.vmem [shape: f32[16,64], index: 4, kind: input, shape index: {}]
  %s5 = inlined_call_operand.vmem [shape: f32[1,64], index: 5, kind: input, shape index: {}]
  %s6 = inlined_call_operand.vmem [shape: bf16[16,4], index: 6, kind: input, shape index: {}]
  %s7 = inlined_call_operand.vmem [shape: f32[1,4], index: 7, kind: input, shape index: {}]
  %s8 = inlined_call_operand.vmem [shape: f32[16,8,4], index: 8, kind: output, shape index: {}]
  %s9 = sld [smem:[#allocation0]]
  $region53: #{generator_forward.6} parent=0
    _
  %s11 = ssub.s32 1, %s9
  %s12 = scalar_select 0, %s11, %s9
  // Predicated region
  $region2: #{generator_forward.6} parent=0 // pred_check
    _
  $region3: #{generator_forward.6} parent=0 // pred_check_branch
    %14 = sbr.rel (0) target = $region5
  $region4: #{generator_forward.6} parent=0 // pred_region
    _
  $region5: #{generator_forward.6} parent=0 // pred_fallthru
    _
  // Predicated region
  $region6: #{generator_forward.6} parent=0 // pred_check
    _
  $region7: #{generator_forward.6} parent=0 // pred_check_branch
    %16 = sbr.rel (0) target = $region9
  $region8: #{generator_forward.6} parent=0 // pred_region
    _
  $region9: #{generator_forward.6} parent=0 // pred_fallthru
    _
  // Predicated region
  $region10: #{generator_forward.6} parent=0 // pred_check
    _
  $region11: #{generator_forward.6} parent=0 // pred_check_branch
    %18 = sbr.rel (0) target = $region13
  $region12: #{generator_forward.6} parent=0 // pred_region
    _
  $region13: #{generator_forward.6} parent=0 // pred_fallthru
    _
  // Predicated region
  $region14: #{generator_forward.6} parent=0 // pred_check
    _
  $region15: #{generator_forward.6} parent=0 // pred_check_branch
    %20 = sbr.rel (0) target = $region17
  $region16: #{generator_forward.6} parent=0 // pred_region
    _
  $region17: #{generator_forward.6} parent=0 // pred_fallthru
    _
  // Predicated region
  $region18: #{generator_forward.6} parent=0 // pred_check
    _
  $region19: #{generator_forward.6} parent=0 // pred_check_branch
    %22 = sbr.rel (0) target = $region21
  $region20: #{generator_forward.6} parent=0 // pred_region
    _
  $region21: #{generator_forward.6} parent=0 // pred_fallthru
    _
  // Predicated region
  $region22: #{generator_forward.6} parent=0 // pred_check
    _
  $region23: #{generator_forward.6} parent=0 // pred_check_branch
    %24 = sbr.rel (0) target = $region25
  $region24: #{generator_forward.6} parent=0 // pred_region
    _
  $region25: #{generator_forward.6} parent=0 // pred_fallthru
    _
  // Predicated region
  $region26: #{generator_forward.6} parent=0 // pred_check
    _
  $region27: #{generator_forward.6} parent=0 // pred_check_branch
    %26 = sbr.rel (0) target = $region29
  $region28: #{generator_forward.6} parent=0 // pred_region
    _
  $region29: #{generator_forward.6} parent=0 // pred_fallthru
    _
  // Predicated region
  $region30: #{generator_forward.6} parent=0 // pred_check
    _
  $region31: #{generator_forward.6} parent=0 // pred_check_branch
    %28 = sbr.rel (0) target = $region33
  $region32: #{generator_forward.6} parent=0 // pred_region
    _
  $region33: #{generator_forward.6} parent=0 // pred_fallthru
    _
  %p30 = scmp.eq.s32.totalorder 0, 0
  // Predicated region
  $region34: #{generator_forward.6} parent=0 // pred_check
    %p31 = pneg %p30
  $region35: #{generator_forward.6} parent=0 // pred_check_branch
    %33 = sbr.rel (%p31) target = $region37
  $region36: #{generator_forward.6} parent=0 // pred_region
    %vm34 = vcmask 130048
    %35 = vst.msk [vmem:[#allocation4] sm:$0xff] %vm34, 0.0
    %36 = vst.msk [vmem:[#allocation5] sm:$0xff] %vm34, 0.0
  $region37: #{generator_forward.6} parent=0 // pred_fallthru
    _
  %v37 = vld [vmem:[%s0] sm:$0xff]
  %v38 = vld [vmem:[%s0 + $0x8] sm:$0xff]
  %v39 = vpack.c.bf16 %v38, %v37
  %v40 = vld [vmem:[%s2] sm:$0xf]
  %v41 = vld [vmem:[%s2 + $0x4] sm:$0x3]
  %v44 = vunpack.c.l.b16 %v40
  %v45 = vunpack.c.l.b16 %v41
  %v46 = vpack.c.b16 %v45, %v44
  %vm47 = vcmask 97280
  %v49 = vsel %vm47, %v39, 0
  %vm51 = vcmask 1045504
  %v53 = vsel %vm51, %v46, 0
  %55 = vmatprep.subr.bf16.mxu0 0
  %56 = vmatpush1.bf16.msra.mxu0 %v53
  %57 = vmatprep.subr.bf16.mxu0 0
  %58 = vmatpush1.bf16.msra.mxu0 0
  %59 = vmatprep.subr.bf16.mxu0 0
  %60 = vmatpush1.bf16.msra.mxu0 0
  %61 = vmatprep.subr.bf16.mxu0 0
  %62 = vmatpush1.bf16.msra.mxu0 0
  %63 = vmatprep.subr.bf16.mxu0 0
  %64 = vmatpush1.bf16.msra.mxu0 0
  %65 = vmatprep.subr.bf16.mxu0 0
  %66 = vmatpush1.bf16.msra.mxu0 0
  %67 = vmatprep.subr.bf16.mxu0 0
  %68 = vmatpush1.bf16.msra.mxu0 0
  %69 = vmatprep.subr.bf16.mxu0 0
  %70 = vmatpush1.bf16.msra.mxu0 0
  %71 = vmatprep.subr.bf16.mxu0 0
  %72 = vmatpush1.bf16.msra.mxu0 0
  %73 = vmatprep.subr.bf16.mxu0 0
  %74 = vmatpush1.bf16.msra.mxu0 0
  %75 = vmatprep.subr.bf16.mxu0 0
  %76 = vmatpush1.bf16.msra.mxu0 0
  %77 = vmatprep.subr.bf16.mxu0 0
  %78 = vmatpush1.bf16.msra.mxu0 0
  %79 = vmatprep.subr.bf16.mxu0 0
  %80 = vmatpush1.bf16.msra.mxu0 0
  %81 = vmatprep.subr.bf16.mxu0 0
  %82 = vmatpush1.bf16.msra.mxu0 0
  %83 = vmatprep.subr.bf16.mxu0 0
  %84 = vmatpush1.bf16.msra.mxu0 0
  %85 = vmatprep.subr.bf16.mxu0 0
  %86 = vmatpush1.bf16.msra.mxu0 0
  %87 = vmatprep.mubr.bf16.mxu0 0
  %88 = vmatmul.mubr.bf16.gmra.mrb[0].mxu0 %v49
  %v89 = vpop.f32.mrb[0].mxu0
  %v90 = vadd.f32 0.0, %v89
  %v91 = vpop.f32.mrb[0].mxu0
  %v92 = vpop.f32.mrb[0].mxu0
  %v93 = vadd.f32 0.0, %v92
  %v94 = vpop.f32.mrb[0].mxu0
  %95 = vdwg.mxu0
  %v96 = vld [vmem:[%s1] sm:$0xff]
  %v97 = vpack.c.bf16 %v96, %v96
  %v98 = vld [vmem:[%s3] sm:$0xf]
  %v99 = vld [vmem:[%s5] sm:$0x1]
  %v101 = vlaneseq
  %v102 = vshrl.u32 %v101, 7
  %v103 = vsub.s32 0, %v102
  %v104 = vrot.slane %v99, %v103
  %vm106 = vcmask 64512
  %v108 = vsel %vm106, %v97, 0
  %vm110 = vcmask 1043456
  %v112 = vsel %vm110, %v98, 0
  %114 = vmatprep.subr.bf16.mxu0 0
  %115 = vmatpush1.bf16.msra.mxu0 %v112
  %116 = vmatprep.subr.bf16.mxu0 0
  %117 = vmatpush1.bf16.msra.mxu0 0
  %118 = vmatprep.subr.bf16.mxu0 0
  %119 = vmatpush1.bf16.msra.mxu0 0
  %120 = vmatprep.subr.bf16.mxu0 0
  %121 = vmatpush1.bf16.msra.mxu0 0
  %122 = vmatprep.subr.bf16.mxu0 0
  %123 = vmatpush1.bf16.msra.mxu0 0
  %124 = vmatprep.subr.bf16.mxu0 0
  %125 = vmatpush1.bf16.msra.mxu0 0
  %126 = vmatprep.subr.bf16.mxu0 0
  %127 = vmatpush1.bf16.msra.mxu0 0
  %128 = vmatprep.subr.bf16.mxu0 0
  %129 = vmatpush1.bf16.msra.mxu0 0
  %130 = vmatprep.subr.bf16.mxu0 0
  %131 = vmatpush1.bf16.msra.mxu0 0
  %132 = vmatprep.subr.bf16.mxu0 0
  %133 = vmatpush1.bf16.msra.mxu0 0
  %134 = vmatprep.subr.bf16.mxu0 0
  %135 = vmatpush1.bf16.msra.mxu0 0
  %136 = vmatprep.subr.bf16.mxu0 0
  %137 = vmatpush1.bf16.msra.mxu0 0
  %138 = vmatprep.subr.bf16.mxu0 0
  %139 = vmatpush1.bf16.msra.mxu0 0
  %140 = vmatprep.subr.bf16.mxu0 0
  %141 = vmatpush1.bf16.msra.mxu0 0
  %142 = vmatprep.subr.bf16.mxu0 0
  %143 = vmatpush1.bf16.msra.mxu0 0
  %144 = vmatprep.subr.bf16.mxu0 0
  %145 = vmatpush1.bf16.msra.mxu0 0
  %146 = vmatprep.mubr.bf16.mxu0 0
  %147 = vmatmul.mubr.bf16.gmra.mrb[0].mxu0 %v108
  %v148 = vpop.f32.mrb[0].mxu0
  %v149 = vadd.f32 %v104, %v148
  %v150 = vpop.f32.mrb[0].mxu0
  %v151 = vpop.f32.mrb[0].mxu0
  %v152 = vpop.f32.mrb[0].mxu0
  %153 = vdwg.mxu0
  %v154 = vadd.f32 %v90, %v149
  %v155 = vadd.f32 %v93, %v149
  %vm156 = vcmask 523264
  %157 = vst.msk [vmem:[#allocation2] sm:$0xff] %vm156, %v154
  %158 = vst.msk [vmem:[#allocation2 + $0x8] sm:$0xff] %vm156, %v154
  %159 = vst.msk [vmem:[#allocation2 + $0x10] sm:$0xff] %vm156, %v154
  %160 = vst.msk [vmem:[#allocation2 + $0x18] sm:$0xff] %vm156, %v154
  %161 = vst.msk [vmem:[#allocation2 + $0x20] sm:$0xff] %vm156, %v154
  %162 = vst.msk [vmem:[#allocation2 + $0x28] sm:$0xff] %vm156, %v154
  %163 = vst.msk [vmem:[#allocation2 + $0x30] sm:$0xff] %vm156, %v154
  %164 = vst.msk [vmem:[#allocation2 + $0x38] sm:$0xff] %vm156, %v154
  %165 = vst.msk [vmem:[#allocation2 + $0x40] sm:$0xff] %vm156, %v155
  %166 = vst.msk [vmem:[#allocation2 + $0x48] sm:$0xff] %vm156, %v155
  %167 = vst.msk [vmem:[#allocation2 + $0x50] sm:$0xff] %vm156, %v155
  %168 = vst.msk [vmem:[#allocation2 + $0x58] sm:$0xff] %vm156, %v155
  %169 = vst.msk [vmem:[#allocation2 + $0x60] sm:$0xff] %vm156, %v155
  %170 = vst.msk [vmem:[#allocation2 + $0x68] sm:$0xff] %vm156, %v155
  %171 = vst.msk [vmem:[#allocation2 + $0x70] sm:$0xff] %vm156, %v155
  %172 = vst.msk [vmem:[#allocation2 + $0x78] sm:$0xff] %vm156, %v155
  %v173 = vld [vmem:[#allocation4] sm:$0xff]
  %v174 = vld [vmem:[#allocation5] sm:$0xff]
  loop: start=0, step=1, limit=2
  $region38: #{generator_forward.6} parent=0 // loop_pre_header
    _
  $region39: #{generator_forward.6} parent=0 // loop_header
    %s176 = sphi 0, %s180
    %p177 = scmp.ge.s32.totalorder %s176, 2
    %v181 = vphi %v173, %v1057
    %v182 = vphi %v174, %v1063
  $region40: #{generator_forward.6} parent=0 // loop_header_branch
    %179 = sbr.rel (%p177) target = $region44
  $region41: #{generator_forward.6} parent=0 // loop_body
    %s183 = smul.u32 %s176, 8
    %s184 = smul.u32 %s183, 8
    %s185 = scalar_lea.vmem [#allocation2], %s184
    %v186 = vld [vmem:[%s185] sm:$0xff]
    %v187 = vld [vmem:[%s4] sm:$0xff]
    %v188 = vld [vmem:[%s4 + $0x8] sm:$0xff]
    %vm189 = vcmask 130048
    %v191 = vsel %vm189, %v181, 0
    %193 = vmatprep.subr.mxu0 0.0
    %194 = vmatpush1.msra.mxu0 %v187
    %195 = vmatprep.subr.mxu0 0.0
    %196 = vmatpush1.msra.mxu0 %v188
    %197 = vmatprep.subr.mxu0 0.0
    %198 = vmatpush1.msra.mxu0 0.0
    %199 = vmatprep.subr.mxu0 0.0
    %200 = vmatpush1.msra.mxu0 0.0
    %201 = vmatprep.subr.mxu0 0.0
    %202 = vmatpush1.msra.mxu0 0.0
    %203 = vmatprep.subr.mxu0 0.0
    %204 = vmatpush1.msra.mxu0 0.0
    %205 = vmatprep.subr.mxu0 0.0
    %206 = vmatpush1.msra.mxu0 0.0
    %207 = vmatprep.subr.mxu0 0.0
    %208 = vmatpush1.msra.mxu0 0.0
    %209 = vmatprep.subr.mxu0 0.0
    %210 = vmatpush1.msra.mxu0 0.0
    %211 = vmatprep.subr.mxu0 0.0
    %212 = vmatpush1.msra.mxu0 0.0
    %213 = vmatprep.subr.mxu0 0.0
    %214 = vmatpush1.msra.mxu0 0.0
    %215 = vmatprep.subr.mxu0 0.0
    %216 = vmatpush1.msra.mxu0 0.0
    %217 = vmatprep.subr.mxu0 0.0
    %218 = vmatpush1.msra.mxu0 0.0
    %219 = vmatprep.subr.mxu0 0.0
    %220 = vmatpush1.msra.mxu0 0.0
    %221 = vmatprep.subr.mxu0 0.0
    %222 = vmatpush1.msra.mxu0 0.0
    %223 = vmatprep.subr.mxu0 0.0
    %224 = vmatpush1.msra.mxu0 0.0
    %225 = vmatprep.subr.mxu0 0.0
    %226 = vmatpush1.msra.mxu0 0.0
    %227 = vmatprep.subr.mxu0 0.0
    %228 = vmatpush1.msra.mxu0 0.0
    %229 = vmatprep.subr.mxu0 0.0
    %230 = vmatpush1.msra.mxu0 0.0
    %231 = vmatprep.subr.mxu0 0.0
    %232 = vmatpush1.msra.mxu0 0.0
    %233 = vmatprep.subr.mxu0 0.0
    %234 = vmatpush1.msra.mxu0 0.0
    %235 = vmatprep.subr.mxu0 0.0
    %236 = vmatpush1.msra.mxu0 0.0
    %237 = vmatprep.subr.mxu0 0.0
    %238 = vmatpush1.msra.mxu0 0.0
    %239 = vmatprep.subr.mxu0 0.0
    %240 = vmatpush1.msra.mxu0 0.0
    %241 = vmatprep.subr.mxu0 0.0
    %242 = vmatpush1.msra.mxu0 0.0
    %243 = vmatprep.subr.mxu0 0.0
    %244 = vmatpush1.msra.mxu0 0.0
    %245 = vmatprep.subr.mxu0 0.0
    %246 = vmatpush1.msra.mxu0 0.0
    %247 = vmatprep.subr.mxu0 0.0
    %248 = vmatpush1.msra.mxu0 0.0
    %249 = vmatprep.subr.mxu0 0.0
    %250 = vmatpush1.msra.mxu0 0.0
    %251 = vmatprep.subr.mxu0 0.0
    %252 = vmatpush1.msra.mxu0 0.0
    %253 = vmatprep.subr.mxu0 0.0
    %254 = vmatpush1.msra.mxu0 0.0
    %255 = vmatprep.subr.mxu0 0.0
    %256 = vmatpush1.msra.mxu0 0.0
    %257 = vmatprep.mubr.f32.mxu0 0.0
    %258 = vmatmul.mubr.f32.gmra.mrb[0].mxu0 %v191
    %v259 = vpop.f32.mrb[0].mxu0
    %v260 = vadd.f32 0.0, %v259
    %v261 = vpop.f32.mrb[0].mxu0
    %262 = vdwg.mxu0
    %v263 = vadd.f32 %v186, %v260
    %v264 = vxor.u32 %v263, 2147483648
    %v265 = vmul.f32 %v264, 1.442695
    %v266 = vpow.pop %v265
    %v267 = vadd.f32 %v266, 1.0
    %v268 = vrcp.pop %v267
    %v269 = vmul.f32 1.0, %v268
    %v270 = vtanh.pop %v263
    %272 = vrot.lane.b32.xlu0 %v182, 16
    %v273 = vpop.permute.xlu0 %272
    %v275 = vmul.f32 %v269, %v273
    %277 = vrot.lane.b32.xlu0 %v270, 96
    %v278 = vpop.permute.xlu0 %277
    %v280 = vmul.f32 %v269, %v278
    %282 = vrot.lane.b32.xlu0 %v280, 16
    %v283 = vpop.permute.xlu0 %282
    %v285 = vadd.f32 %v275, %v283
    %v286 = vtanh.pop %v285
    %288 = vrot.lane.b32.xlu0 %v286, 32
    %v289 = vpop.permute.xlu0 %288
    %v291 = vmul.f32 %v269, %v289
    %293 = vrot.lane.b32.xlu0 %v291, 80
    %v294 = vpop.permute.xlu0 %293
    %s296 = scalar_lea.vmem [#allocation3], %s184
    %297 = vst.msk [vmem:[%s296] sm:$0xff] %vm189, %v294
    %s298 = sadd.s32 %s183, 1
    %s299 = smul.u32 %s298, 8
    %s300 = scalar_lea.vmem [#allocation2], %s299
    %v301 = vld [vmem:[%s300] sm:$0xff]
    %v302 = vld [vmem:[%s4] sm:$0xff]
    %v303 = vld [vmem:[%s4 + $0x8] sm:$0xff]
    %v304 = vsel %vm189, %v294, 0
    %306 = vmatprep.subr.mxu0 0.0
    %307 = vmatpush1.msra.mxu0 %v302
    %308 = vmatprep.subr.mxu0 0.0
    %309 = vmatpush1.msra.mxu0 %v303
    %310 = vmatprep.subr.mxu0 0.0
    %311 = vmatpush1.msra.mxu0 0.0
    %312 = vmatprep.subr.mxu0 0.0
    %313 = vmatpush1.msra.mxu0 0.0
    %314 = vmatprep.subr.mxu0 0.0
    %315 = vmatpush1.msra.mxu0 0.0
    %316 = vmatprep.subr.mxu0 0.0
    %317 = vmatpush1.msra.mxu0 0.0
    %318 = vmatprep.subr.mxu0 0.0
    %319 = vmatpush1.msra.mxu0 0.0
    %320 = vmatprep.subr.mxu0 0.0
    %321 = vmatpush1.msra.mxu0 0.0
    %322 = vmatprep.subr.mxu0 0.0
    %323 = vmatpush1.msra.mxu0 0.0
    %324 = vmatprep.subr.mxu0 0.0
    %325 = vmatpush1.msra.mxu0 0.0
    %326 = vmatprep.subr.mxu0 0.0
    %327 = vmatpush1.msra.mxu0 0.0
    %328 = vmatprep.subr.mxu0 0.0
    %329 = vmatpush1.msra.mxu0 0.0
    %330 = vmatprep.subr.mxu0 0.0
    %331 = vmatpush1.msra.mxu0 0.0
    %332 = vmatprep.subr.mxu0 0.0
    %333 = vmatpush1.msra.mxu0 0.0
    %334 = vmatprep.subr.mxu0 0.0
    %335 = vmatpush1.msra.mxu0 0.0
    %336 = vmatprep.subr.mxu0 0.0
    %337 = vmatpush1.msra.mxu0 0.0
    %338 = vmatprep.subr.mxu0 0.0
    %339 = vmatpush1.msra.mxu0 0.0
    %340 = vmatprep.subr.mxu0 0.0
    %341 = vmatpush1.msra.mxu0 0.0
    %342 = vmatprep.subr.mxu0 0.0
    %343 = vmatpush1.msra.mxu0 0.0
    %344 = vmatprep.subr.mxu0 0.0
    %345 = vmatpush1.msra.mxu0 0.0
    %346 = vmatprep.subr.mxu0 0.0
    %347 = vmatpush1.msra.mxu0 0.0
    %348 = vmatprep.subr.mxu0 0.0
    %349 = vmatpush1.msra.mxu0 0.0
    %350 = vmatprep.subr.mxu0 0.0
    %351 = vmatpush1.msra.mxu0 0.0
    %352 = vmatprep.subr.mxu0 0.0
    %353 = vmatpush1.msra.mxu0 0.0
    %354 = vmatprep.subr.mxu0 0.0
    %355 = vmatpush1.msra.mxu0 0.0
    %356 = vmatprep.subr.mxu0 0.0
    %357 = vmatpush1.msra.mxu0 0.0
    %358 = vmatprep.subr.mxu0 0.0
    %359 = vmatpush1.msra.mxu0 0.0
    %360 = vmatprep.subr.mxu0 0.0
    %361 = vmatpush1.msra.mxu0 0.0
    %362 = vmatprep.subr.mxu0 0.0
    %363 = vmatpush1.msra.mxu0 0.0
    %364 = vmatprep.subr.mxu0 0.0
    %365 = vmatpush1.msra.mxu0 0.0
    %366 = vmatprep.subr.mxu0 0.0
    %367 = vmatpush1.msra.mxu0 0.0
    %368 = vmatprep.subr.mxu0 0.0
    %369 = vmatpush1.msra.mxu0 0.0
    %370 = vmatprep.mubr.f32.mxu0 0.0
    %371 = vmatmul.mubr.f32.gmra.mrb[0].mxu0 %v304
    %v372 = vpop.f32.mrb[0].mxu0
    %v373 = vadd.f32 0.0, %v372
    %v374 = vpop.f32.mrb[0].mxu0
    %375 = vdwg.mxu0
    %v376 = vadd.f32 %v301, %v373
    %v377 = vxor.u32 %v376, 2147483648
    %v378 = vmul.f32 %v377, 1.442695
    %v379 = vpow.pop %v378
    %v380 = vadd.f32 %v379, 1.0
    %v381 = vrcp.pop %v380
    %v382 = vmul.f32 1.0, %v381
    %v383 = vtanh.pop %v376
    %v384 = vmul.f32 %v382, %v285
    %386 = vrot.lane.b32.xlu0 %v383, 96
    %v387 = vpop.permute.xlu0 %386
    %v389 = vmul.f32 %v382, %v387
    %391 = vrot.lane.b32.xlu0 %v389, 16
    %v392 = vpop.permute.xlu0 %391
    %v394 = vadd.f32 %v384, %v392
    %v395 = vtanh.pop %v394
    %397 = vrot.lane.b32.xlu0 %v395, 32
    %v398 = vpop.permute.xlu0 %397
    %v400 = vmul.f32 %v382, %v398
    %402 = vrot.lane.b32.xlu0 %v400, 80
    %v403 = vpop.permute.xlu0 %402
    %s405 = scalar_lea.vmem [#allocation3], %s299
    %406 = vst.msk [vmem:[%s405] sm:$0xff] %vm189, %v403
    %s407 = sadd.s32 %s183, 2
    %s408 = smul.u32 %s407, 8
    %s409 = scalar_lea.vmem [#allocation2], %s408
    %v410 = vld [vmem:[%s409] sm:$0xff]
    %v411 = vld [vmem:[%s4] sm:$0xff]
    %v412 = vld [vmem:[%s4 + $0x8] sm:$0xff]
    %v413 = vsel %vm189, %v403, 0
    %415 = vmatprep.subr.mxu0 0.0
    %416 = vmatpush1.msra.mxu0 %v411
    %417 = vmatprep.subr.mxu0 0.0
    %418 = vmatpush1.msra.mxu0 %v412
    %419 = vmatprep.subr.mxu0 0.0
    %420 = vmatpush1.msra.mxu0 0.0
    %421 = vmatprep.subr.mxu0 0.0
    %422 = vmatpush1.msra.mxu0 0.0
    %423 = vmatprep.subr.mxu0 0.0
    %424 = vmatpush1.msra.mxu0 0.0
    %425 = vmatprep.subr.mxu0 0.0
    %426 = vmatpush1.msra.mxu0 0.0
    %427 = vmatprep.subr.mxu0 0.0
    %428 = vmatpush1.msra.mxu0 0.0
    %429 = vmatprep.subr.mxu0 0.0
    %430 = vmatpush1.msra.mxu0 0.0
    %431 = vmatprep.subr.mxu0 0.0
    %432 = vmatpush1.msra.mxu0 0.0
    %433 = vmatprep.subr.mxu0 0.0
    %434 = vmatpush1.msra.mxu0 0.0
    %435 = vmatprep.subr.mxu0 0.0
    %436 = vmatpush1.msra.mxu0 0.0
    %437 = vmatprep.subr.mxu0 0.0
    %438 = vmatpush1.msra.mxu0 0.0
    %439 = vmatprep.subr.mxu0 0.0
    %440 = vmatpush1.msra.mxu0 0.0
    %441 = vmatprep.subr.mxu0 0.0
    %442 = vmatpush1.msra.mxu0 0.0
    %443 = vmatprep.subr.mxu0 0.0
    %444 = vmatpush1.msra.mxu0 0.0
    %445 = vmatprep.subr.mxu0 0.0
    %446 = vmatpush1.msra.mxu0 0.0
    %447 = vmatprep.subr.mxu0 0.0
    %448 = vmatpush1.msra.mxu0 0.0
    %449 = vmatprep.subr.mxu0 0.0
    %450 = vmatpush1.msra.mxu0 0.0
    %451 = vmatprep.subr.mxu0 0.0
    %452 = vmatpush1.msra.mxu0 0.0
    %453 = vmatprep.subr.mxu0 0.0
    %454 = vmatpush1.msra.mxu0 0.0
    %455 = vmatprep.subr.mxu0 0.0
    %456 = vmatpush1.msra.mxu0 0.0
    %457 = vmatprep.subr.mxu0 0.0
    %458 = vmatpush1.msra.mxu0 0.0
    %459 = vmatprep.subr.mxu0 0.0
    %460 = vmatpush1.msra.mxu0 0.0
    %461 = vmatprep.subr.mxu0 0.0
    %462 = vmatpush1.msra.mxu0 0.0
    %463 = vmatprep.subr.mxu0 0.0
    %464 = vmatpush1.msra.mxu0 0.0
    %465 = vmatprep.subr.mxu0 0.0
    %466 = vmatpush1.msra.mxu0 0.0
    %467 = vmatprep.subr.mxu0 0.0
    %468 = vmatpush1.msra.mxu0 0.0
    %469 = vmatprep.subr.mxu0 0.0
    %470 = vmatpush1.msra.mxu0 0.0
    %471 = vmatprep.subr.mxu0 0.0
    %472 = vmatpush1.msra.mxu0 0.0
    %473 = vmatprep.subr.mxu0 0.0
    %474 = vmatpush1.msra.mxu0 0.0
    %475 = vmatprep.subr.mxu0 0.0
    %476 = vmatpush1.msra.mxu0 0.0
    %477 = vmatprep.subr.mxu0 0.0
    %478 = vmatpush1.msra.mxu0 0.0
    %479 = vmatprep.mubr.f32.mxu0 0.0
    %480 = vmatmul.mubr.f32.gmra.mrb[0].mxu0 %v413
    %v481 = vpop.f32.mrb[0].mxu0
    %v482 = vadd.f32 0.0, %v481
    %v483 = vpop.f32.mrb[0].mxu0
    %484 = vdwg.mxu0
    %v485 = vadd.f32 %v410, %v482
    %v486 = vxor.u32 %v485, 2147483648
    %v487 = vmul.f32 %v486, 1.442695
    %v488 = vpow.pop %v487
    %v489 = vadd.f32 %v488, 1.0
    %v490 = vrcp.pop %v489
    %v491 = vmul.f32 1.0, %v490
    %v492 = vtanh.pop %v485
    %v493 = vmul.f32 %v491, %v394
    %495 = vrot.lane.b32.xlu0 %v492, 96
    %v496 = vpop.permute.xlu0 %495
    %v498 = vmul.f32 %v491, %v496
    %500 = vrot.lane.b32.xlu0 %v498, 16
    %v501 = vpop.permute.xlu0 %500
    %v503 = vadd.f32 %v493, %v501
    %v504 = vtanh.pop %v503
    %506 = vrot.lane.b32.xlu0 %v504, 32
    %v507 = vpop.permute.xlu0 %506
    %v509 = vmul.f32 %v491, %v507
    %511 = vrot.lane.b32.xlu0 %v509, 80
    %v512 = vpop.permute.xlu0 %511
    %s514 = scalar_lea.vmem [#allocation3], %s408
    %515 = vst.msk [vmem:[%s514] sm:$0xff] %vm189, %v512
    %s516 = sadd.s32 %s183, 3
    %s517 = smul.u32 %s516, 8
    %s518 = scalar_lea.vmem [#allocation2], %s517
    %v519 = vld [vmem:[%s518] sm:$0xff]
    %v520 = vld [vmem:[%s4] sm:$0xff]
    %v521 = vld [vmem:[%s4 + $0x8] sm:$0xff]
    %v522 = vsel %vm189, %v512, 0
    %524 = vmatprep.subr.mxu0 0.0
    %525 = vmatpush1.msra.mxu0 %v520
    %526 = vmatprep.subr.mxu0 0.0
    %527 = vmatpush1.msra.mxu0 %v521
    %528 = vmatprep.subr.mxu0 0.0
    %529 = vmatpush1.msra.mxu0 0.0
    %530 = vmatprep.subr.mxu0 0.0
    %531 = vmatpush1.msra.mxu0 0.0
    %532 = vmatprep.subr.mxu0 0.0
    %533 = vmatpush1.msra.mxu0 0.0
    %534 = vmatprep.subr.mxu0 0.0
    %535 = vmatpush1.msra.mxu0 0.0
    %536 = vmatprep.subr.mxu0 0.0
    %537 = vmatpush1.msra.mxu0 0.0
    %538 = vmatprep.subr.mxu0 0.0
    %539 = vmatpush1.msra.mxu0 0.0
    %540 = vmatprep.subr.mxu0 0.0
    %541 = vmatpush1.msra.mxu0 0.0
    %542 = vmatprep.subr.mxu0 0.0
    %543 = vmatpush1.msra.mxu0 0.0
    %544 = vmatprep.subr.mxu0 0.0
    %545 = vmatpush1.msra.mxu0 0.0
    %546 = vmatprep.subr.mxu0 0.0
    %547 = vmatpush1.msra.mxu0 0.0
    %548 = vmatprep.subr.mxu0 0.0
    %549 = vmatpush1.msra.mxu0 0.0
    %550 = vmatprep.subr.mxu0 0.0
    %551 = vmatpush1.msra.mxu0 0.0
    %552 = vmatprep.subr.mxu0 0.0
    %553 = vmatpush1.msra.mxu0 0.0
    %554 = vmatprep.subr.mxu0 0.0
    %555 = vmatpush1.msra.mxu0 0.0
    %556 = vmatprep.subr.mxu0 0.0
    %557 = vmatpush1.msra.mxu0 0.0
    %558 = vmatprep.subr.mxu0 0.0
    %559 = vmatpush1.msra.mxu0 0.0
    %560 = vmatprep.subr.mxu0 0.0
    %561 = vmatpush1.msra.mxu0 0.0
    %562 = vmatprep.subr.mxu0 0.0
    %563 = vmatpush1.msra.mxu0 0.0
    %564 = vmatprep.subr.mxu0 0.0
    %565 = vmatpush1.msra.mxu0 0.0
    %566 = vmatprep.subr.mxu0 0.0
    %567 = vmatpush1.msra.mxu0 0.0
    %568 = vmatprep.subr.mxu0 0.0
    %569 = vmatpush1.msra.mxu0 0.0
    %570 = vmatprep.subr.mxu0 0.0
    %571 = vmatpush1.msra.mxu0 0.0
    %572 = vmatprep.subr.mxu0 0.0
    %573 = vmatpush1.msra.mxu0 0.0
    %574 = vmatprep.subr.mxu0 0.0
    %575 = vmatpush1.msra.mxu0 0.0
    %576 = vmatprep.subr.mxu0 0.0
    %577 = vmatpush1.msra.mxu0 0.0
    %578 = vmatprep.subr.mxu0 0.0
    %579 = vmatpush1.msra.mxu0 0.0
    %580 = vmatprep.subr.mxu0 0.0
    %581 = vmatpush1.msra.mxu0 0.0
    %582 = vmatprep.subr.mxu0 0.0
    %583 = vmatpush1.msra.mxu0 0.0
    %584 = vmatprep.subr.mxu0 0.0
    %585 = vmatpush1.msra.mxu0 0.0
    %586 = vmatprep.subr.mxu0 0.0
    %587 = vmatpush1.msra.mxu0 0.0
    %588 = vmatprep.mubr.f32.mxu0 0.0
    %589 = vmatmul.mubr.f32.gmra.mrb[0].mxu0 %v522
    %v590 = vpop.f32.mrb[0].mxu0
    %v591 = vadd.f32 0.0, %v590
    %v592 = vpop.f32.mrb[0].mxu0
    %593 = vdwg.mxu0
    %v594 = vadd.f32 %v519, %v591
    %v595 = vxor.u32 %v594, 2147483648
    %v596 = vmul.f32 %v595, 1.442695
    %v597 = vpow.pop %v596
    %v598 = vadd.f32 %v597, 1.0
    %v599 = vrcp.pop %v598
    %v600 = vmul.f32 1.0, %v599
    %v601 = vtanh.pop %v594
    %v602 = vmul.f32 %v600, %v503
    %604 = vrot.lane.b32.xlu0 %v601, 96
    %v605 = vpop.permute.xlu0 %604
    %v607 = vmul.f32 %v600, %v605
    %609 = vrot.lane.b32.xlu0 %v607, 16
    %v610 = vpop.permute.xlu0 %609
    %v612 = vadd.f32 %v602, %v610
    %v613 = vtanh.pop %v612
    %615 = vrot.lane.b32.xlu0 %v613, 32
    %v616 = vpop.permute.xlu0 %615
    %v618 = vmul.f32 %v600, %v616
    %620 = vrot.lane.b32.xlu0 %v618, 80
    %v621 = vpop.permute.xlu0 %620
    %s623 = scalar_lea.vmem [#allocation3], %s517
    %624 = vst.msk [vmem:[%s623] sm:$0xff] %vm189, %v621
    %s625 = sadd.s32 %s183, 4
    %s626 = smul.u32 %s625, 8
    %s627 = scalar_lea.vmem [#allocation2], %s626
    %v628 = vld [vmem:[%s627] sm:$0xff]
    %v629 = vld [vmem:[%s4] sm:$0xff]
    %v630 = vld [vmem:[%s4 + $0x8] sm:$0xff]
    %v631 = vsel %vm189, %v621, 0
    %633 = vmatprep.subr.mxu0 0.0
    %634 = vmatpush1.msra.mxu0 %v629
    %635 = vmatprep.subr.mxu0 0.0
    %636 = vmatpush1.msra.mxu0 %v630
    %637 = vmatprep.subr.mxu0 0.0
    %638 = vmatpush1.msra.mxu0 0.0
    %639 = vmatprep.subr.mxu0 0.0
    %640 = vmatpush1.msra.mxu0 0.0
    %641 = vmatprep.subr.mxu0 0.0
    %642 = vmatpush1.msra.mxu0 0.0
    %643 = vmatprep.subr.mxu0 0.0
    %644 = vmatpush1.msra.mxu0 0.0
    %645 = vmatprep.subr.mxu0 0.0
    %646 = vmatpush1.msra.mxu0 0.0
    %647 = vmatprep.subr.mxu0 0.0
    %648 = vmatpush1.msra.mxu0 0.0
    %649 = vmatprep.subr.mxu0 0.0
    %650 = vmatpush1.msra.mxu0 0.0
    %651 = vmatprep.subr.mxu0 0.0
    %652 = vmatpush1.msra.mxu0 0.0
    %653 = vmatprep.subr.mxu0 0.0
    %654 = vmatpush1.msra.mxu0 0.0
    %655 = vmatprep.subr.mxu0 0.0
    %656 = vmatpush1.msra.mxu0 0.0
    %657 = vmatprep.subr.mxu0 0.0
    %658 = vmatpush1.msra.mxu0 0.0
    %659 = vmatprep.subr.mxu0 0.0
    %660 = vmatpush1.msra.mxu0 0.0
    %661 = vmatprep.subr.mxu0 0.0
    %662 = vmatpush1.msra.mxu0 0.0
    %663 = vmatprep.subr.mxu0 0.0
    %664 = vmatpush1.msra.mxu0 0.0
    %665 = vmatprep.subr.mxu0 0.0
    %666 = vmatpush1.msra.mxu0 0.0
    %667 = vmatprep.subr.mxu0 0.0
    %668 = vmatpush1.msra.mxu0 0.0
    %669 = vmatprep.subr.mxu0 0.0
    %670 = vmatpush1.msra.mxu0 0.0
    %671 = vmatprep.subr.mxu0 0.0
    %672 = vmatpush1.msra.mxu0 0.0
    %673 = vmatprep.subr.mxu0 0.0
    %674 = vmatpush1.msra.mxu0 0.0
    %675 = vmatprep.subr.mxu0 0.0
    %676 = vmatpush1.msra.mxu0 0.0
    %677 = vmatprep.subr.mxu0 0.0
    %678 = vmatpush1.msra.mxu0 0.0
    %679 = vmatprep.subr.mxu0 0.0
    %680 = vmatpush1.msra.mxu0 0.0
    %681 = vmatprep.subr.mxu0 0.0
    %682 = vmatpush1.msra.mxu0 0.0
    %683 = vmatprep.subr.mxu0 0.0
    %684 = vmatpush1.msra.mxu0 0.0
    %685 = vmatprep.subr.mxu0 0.0
    %686 = vmatpush1.msra.mxu0 0.0
    %687 = vmatprep.subr.mxu0 0.0
    %688 = vmatpush1.msra.mxu0 0.0
    %689 = vmatprep.subr.mxu0 0.0
    %690 = vmatpush1.msra.mxu0 0.0
    %691 = vmatprep.subr.mxu0 0.0
    %692 = vmatpush1.msra.mxu0 0.0
    %693 = vmatprep.subr.mxu0 0.0
    %694 = vmatpush1.msra.mxu0 0.0
    %695 = vmatprep.subr.mxu0 0.0
    %696 = vmatpush1.msra.mxu0 0.0
    %697 = vmatprep.mubr.f32.mxu0 0.0
    %698 = vmatmul.mubr.f32.gmra.mrb[0].mxu0 %v631
    %v699 = vpop.f32.mrb[0].mxu0
    %v700 = vadd.f32 0.0, %v699
    %v701 = vpop.f32.mrb[0].mxu0
    %702 = vdwg.mxu0
    %v703 = vadd.f32 %v628, %v700
    %v704 = vxor.u32 %v703, 2147483648
    %v705 = vmul.f32 %v704, 1.442695
    %v706 = vpow.pop %v705
    %v707 = vadd.f32 %v706, 1.0
    %v708 = vrcp.pop %v707
    %v709 = vmul.f32 1.0, %v708
    %v710 = vtanh.pop %v703
    %v711 = vmul.f32 %v709, %v612
    %713 = vrot.lane.b32.xlu0 %v710, 96
    %v714 = vpop.permute.xlu0 %713
    %v716 = vmul.f32 %v709, %v714
    %718 = vrot.lane.b32.xlu0 %v716, 16
    %v719 = vpop.permute.xlu0 %718
    %v721 = vadd.f32 %v711, %v719
    %v722 = vtanh.pop %v721
    %724 = vrot.lane.b32.xlu0 %v722, 32
    %v725 = vpop.permute.xlu0 %724
    %v727 = vmul.f32 %v709, %v725
    %729 = vrot.lane.b32.xlu0 %v727, 80
    %v730 = vpop.permute.xlu0 %729
    %s732 = scalar_lea.vmem [#allocation3], %s626
    %733 = vst.msk [vmem:[%s732] sm:$0xff] %vm189, %v730
    %s734 = sadd.s32 %s183, 5
    %s735 = smul.u32 %s734, 8
    %s736 = scalar_lea.vmem [#allocation2], %s735
    %v737 = vld [vmem:[%s736] sm:$0xff]
    %v738 = vld [vmem:[%s4] sm:$0xff]
    %v739 = vld [vmem:[%s4 + $0x8] sm:$0xff]
    %v740 = vsel %vm189, %v730, 0
    %742 = vmatprep.subr.mxu0 0.0
    %743 = vmatpush1.msra.mxu0 %v738
    %744 = vmatprep.subr.mxu0 0.0
    %745 = vmatpush1.msra.mxu0 %v739
    %746 = vmatprep.subr.mxu0 0.0
    %747 = vmatpush1.msra.mxu0 0.0
    %748 = vmatprep.subr.mxu0 0.0
    %749 = vmatpush1.msra.mxu0 0.0
    %750 = vmatprep.subr.mxu0 0.0
    %751 = vmatpush1.msra.mxu0 0.0
    %752 = vmatprep.subr.mxu0 0.0
    %753 = vmatpush1.msra.mxu0 0.0
    %754 = vmatprep.subr.mxu0 0.0
    %755 = vmatpush1.msra.mxu0 0.0
    %756 = vmatprep.subr.mxu0 0.0
    %757 = vmatpush1.msra.mxu0 0.0
    %758 = vmatprep.subr.mxu0 0.0
    %759 = vmatpush1.msra.mxu0 0.0
    %760 = vmatprep.subr.mxu0 0.0
    %761 = vmatpush1.msra.mxu0 0.0
    %762 = vmatprep.subr.mxu0 0.0
    %763 = vmatpush1.msra.mxu0 0.0
    %764 = vmatprep.subr.mxu0 0.0
    %765 = vmatpush1.msra.mxu0 0.0
    %766 = vmatprep.subr.mxu0 0.0
    %767 = vmatpush1.msra.mxu0 0.0
    %768 = vmatprep.subr.mxu0 0.0
    %769 = vmatpush1.msra.mxu0 0.0
    %770 = vmatprep.subr.mxu0 0.0
    %771 = vmatpush1.msra.mxu0 0.0
    %772 = vmatprep.subr.mxu0 0.0
    %773 = vmatpush1.msra.mxu0 0.0
    %774 = vmatprep.subr.mxu0 0.0
    %775 = vmatpush1.msra.mxu0 0.0
    %776 = vmatprep.subr.mxu0 0.0
    %777 = vmatpush1.msra.mxu0 0.0
    %778 = vmatprep.subr.mxu0 0.0
    %779 = vmatpush1.msra.mxu0 0.0
    %780 = vmatprep.subr.mxu0 0.0
    %781 = vmatpush1.msra.mxu0 0.0
    %782 = vmatprep.subr.mxu0 0.0
    %783 = vmatpush1.msra.mxu0 0.0
    %784 = vmatprep.subr.mxu0 0.0
    %785 = vmatpush1.msra.mxu0 0.0
    %786 = vmatprep.subr.mxu0 0.0
    %787 = vmatpush1.msra.mxu0 0.0
    %788 = vmatprep.subr.mxu0 0.0
    %789 = vmatpush1.msra.mxu0 0.0
    %790 = vmatprep.subr.mxu0 0.0
    %791 = vmatpush1.msra.mxu0 0.0
    %792 = vmatprep.subr.mxu0 0.0
    %793 = vmatpush1.msra.mxu0 0.0
    %794 = vmatprep.subr.mxu0 0.0
    %795 = vmatpush1.msra.mxu0 0.0
    %796 = vmatprep.subr.mxu0 0.0
    %797 = vmatpush1.msra.mxu0 0.0
    %798 = vmatprep.subr.mxu0 0.0
    %799 = vmatpush1.msra.mxu0 0.0
    %800 = vmatprep.subr.mxu0 0.0
    %801 = vmatpush1.msra.mxu0 0.0
    %802 = vmatprep.subr.mxu0 0.0
    %803 = vmatpush1.msra.mxu0 0.0
    %804 = vmatprep.subr.mxu0 0.0
    %805 = vmatpush1.msra.mxu0 0.0
    %806 = vmatprep.mubr.f32.mxu0 0.0
    %807 = vmatmul.mubr.f32.gmra.mrb[0].mxu0 %v740
    %v808 = vpop.f32.mrb[0].mxu0
    %v809 = vadd.f32 0.0, %v808
    %v810 = vpop.f32.mrb[0].mxu0
    %811 = vdwg.mxu0
    %v812 = vadd.f32 %v737, %v809
    %v813 = vxor.u32 %v812, 2147483648
    %v814 = vmul.f32 %v813, 1.442695
    %v815 = vpow.pop %v814
    %v816 = vadd.f32 %v815, 1.0
    %v817 = vrcp.pop %v816
    %v818 = vmul.f32 1.0, %v817
    %v819 = vtanh.pop %v812
    %v820 = vmul.f32 %v818, %v721
    %822 = vrot.lane.b32.xlu0 %v819, 96
    %v823 = vpop.permute.xlu0 %822
    %v825 = vmul.f32 %v818, %v823
    %827 = vrot.lane.b32.xlu0 %v825, 16
    %v828 = vpop.permute.xlu0 %827
    %v830 = vadd.f32 %v820, %v828
    %v831 = vtanh.pop %v830
    %833 = vrot.lane.b32.xlu0 %v831, 32
    %v834 = vpop.permute.xlu0 %833
    %v836 = vmul.f32 %v818, %v834
    %838 = vrot.lane.b32.xlu0 %v836, 80
    %v839 = vpop.permute.xlu0 %838
    %s841 = scalar_lea.vmem [#allocation3], %s735
    %842 = vst.msk [vmem:[%s841] sm:$0xff] %vm189, %v839
    %s843 = sadd.s32 %s183, 6
    %s844 = smul.u32 %s843, 8
    %s845 = scalar_lea.vmem [#allocation2], %s844
    %v846 = vld [vmem:[%s845] sm:$0xff]
    %v847 = vld [vmem:[%s4] sm:$0xff]
    %v848 = vld [vmem:[%s4 + $0x8] sm:$0xff]
    %v849 = vsel %vm189, %v839, 0
    %851 = vmatprep.subr.mxu0 0.0
    %852 = vmatpush1.msra.mxu0 %v847
    %853 = vmatprep.subr.mxu0 0.0
    %854 = vmatpush1.msra.mxu0 %v848
    %855 = vmatprep.subr.mxu0 0.0
    %856 = vmatpush1.msra.mxu0 0.0
    %857 = vmatprep.subr.mxu0 0.0
    %858 = vmatpush1.msra.mxu0 0.0
    %859 = vmatprep.subr.mxu0 0.0
    %860 = vmatpush1.msra.mxu0 0.0
    %861 = vmatprep.subr.mxu0 0.0
    %862 = vmatpush1.msra.mxu0 0.0
    %863 = vmatprep.subr.mxu0 0.0
    %864 = vmatpush1.msra.mxu0 0.0
    %865 = vmatprep.subr.mxu0 0.0
    %866 = vmatpush1.msra.mxu0 0.0
    %867 = vmatprep.subr.mxu0 0.0
    %868 = vmatpush1.msra.mxu0 0.0
    %869 = vmatprep.subr.mxu0 0.0
    %870 = vmatpush1.msra.mxu0 0.0
    %871 = vmatprep.subr.mxu0 0.0
    %872 = vmatpush1.msra.mxu0 0.0
    %873 = vmatprep.subr.mxu0 0.0
    %874 = vmatpush1.msra.mxu0 0.0
    %875 = vmatprep.subr.mxu0 0.0
    %876 = vmatpush1.msra.mxu0 0.0
    %877 = vmatprep.subr.mxu0 0.0
    %878 = vmatpush1.msra.mxu0 0.0
    %879 = vmatprep.subr.mxu0 0.0
    %880 = vmatpush1.msra.mxu0 0.0
    %881 = vmatprep.subr.mxu0 0.0
    %882 = vmatpush1.msra.mxu0 0.0
    %883 = vmatprep.subr.mxu0 0.0
    %884 = vmatpush1.msra.mxu0 0.0
    %885 = vmatprep.subr.mxu0 0.0
    %886 = vmatpush1.msra.mxu0 0.0
    %887 = vmatprep.subr.mxu0 0.0
    %888 = vmatpush1.msra.mxu0 0.0
    %889 = vmatprep.subr.mxu0 0.0
    %890 = vmatpush1.msra.mxu0 0.0
    %891 = vmatprep.subr.mxu0 0.0
    %892 = vmatpush1.msra.mxu0 0.0
    %893 = vmatprep.subr.mxu0 0.0
    %894 = vmatpush1.msra.mxu0 0.0
    %895 = vmatprep.subr.mxu0 0.0
    %896 = vmatpush1.msra.mxu0 0.0
    %897 = vmatprep.subr.mxu0 0.0
    %898 = vmatpush1.msra.mxu0 0.0
    %899 = vmatprep.subr.mxu0 0.0
    %900 = vmatpush1.msra.mxu0 0.0
    %901 = vmatprep.subr.mxu0 0.0
    %902 = vmatpush1.msra.mxu0 0.0
    %903 = vmatprep.subr.mxu0 0.0
    %904 = vmatpush1.msra.mxu0 0.0
    %905 = vmatprep.subr.mxu0 0.0
    %906 = vmatpush1.msra.mxu0 0.0
    %907 = vmatprep.subr.mxu0 0.0
    %908 = vmatpush1.msra.mxu0 0.0
    %909 = vmatprep.subr.mxu0 0.0
    %910 = vmatpush1.msra.mxu0 0.0
    %911 = vmatprep.subr.mxu0 0.0
    %912 = vmatpush1.msra.mxu0 0.0
    %913 = vmatprep.subr.mxu0 0.0
    %914 = vmatpush1.msra.mxu0 0.0
    %915 = vmatprep.mubr.f32.mxu0 0.0
    %916 = vmatmul.mubr.f32.gmra.mrb[0].mxu0 %v849
    %v917 = vpop.f32.mrb[0].mxu0
    %v918 = vadd.f32 0.0, %v917
    %v919 = vpop.f32.mrb[0].mxu0
    %920 = vdwg.mxu0
    %v921 = vadd.f32 %v846, %v918
    %v922 = vxor.u32 %v921, 2147483648
    %v923 = vmul.f32 %v922, 1.442695
    %v924 = vpow.pop %v923
    %v925 = vadd.f32 %v924, 1.0
    %v926 = vrcp.pop %v925
    %v927 = vmul.f32 1.0, %v926
    %v928 = vtanh.pop %v921
    %v929 = vmul.f32 %v927, %v830
    %931 = vrot.lane.b32.xlu0 %v928, 96
    %v932 = vpop.permute.xlu0 %931
    %v934 = vmul.f32 %v927, %v932
    %936 = vrot.lane.b32.xlu0 %v934, 16
    %v937 = vpop.permute.xlu0 %936
    %v939 = vadd.f32 %v929, %v937
    %v940 = vtanh.pop %v939
    %942 = vrot.lane.b32.xlu0 %v940, 32
    %v943 = vpop.permute.xlu0 %942
    %v945 = vmul.f32 %v927, %v943
    %947 = vrot.lane.b32.xlu0 %v945, 80
    %v948 = vpop.permute.xlu0 %947
    %s950 = scalar_lea.vmem [#allocation3], %s844
    %951 = vst.msk [vmem:[%s950] sm:$0xff] %vm189, %v948
    %s952 = sadd.s32 %s183, 7
    %s953 = smul.u32 %s952, 8
    %s954 = scalar_lea.vmem [#allocation2], %s953
    %v955 = vld [vmem:[%s954] sm:$0xff]
    %v956 = vld [vmem:[%s4] sm:$0xff]
    %v957 = vld [vmem:[%s4 + $0x8] sm:$0xff]
    %v958 = vsel %vm189, %v948, 0
    %960 = vmatprep.subr.mxu0 0.0
    %961 = vmatpush1.msra.mxu0 %v956
    %962 = vmatprep.subr.mxu0 0.0
    %963 = vmatpush1.msra.mxu0 %v957
    %964 = vmatprep.subr.mxu0 0.0
    %965 = vmatpush1.msra.mxu0 0.0
    %966 = vmatprep.subr.mxu0 0.0
    %967 = vmatpush1.msra.mxu0 0.0
    %968 = vmatprep.subr.mxu0 0.0
    %969 = vmatpush1.msra.mxu0 0.0
    %970 = vmatprep.subr.mxu0 0.0
    %971 = vmatpush1.msra.mxu0 0.0
    %972 = vmatprep.subr.mxu0 0.0
    %973 = vmatpush1.msra.mxu0 0.0
    %974 = vmatprep.subr.mxu0 0.0
    %975 = vmatpush1.msra.mxu0 0.0
    %976 = vmatprep.subr.mxu0 0.0
    %977 = vmatpush1.msra.mxu0 0.0
    %978 = vmatprep.subr.mxu0 0.0
    %979 = vmatpush1.msra.mxu0 0.0
    %980 = vmatprep.subr.mxu0 0.0
    %981 = vmatpush1.msra.mxu0 0.0
    %982 = vmatprep.subr.mxu0 0.0
    %983 = vmatpush1.msra.mxu0 0.0
    %984 = vmatprep.subr.mxu0 0.0
    %985 = vmatpush1.msra.mxu0 0.0
    %986 = vmatprep.subr.mxu0 0.0
    %987 = vmatpush1.msra.mxu0 0.0
    %988 = vmatprep.subr.mxu0 0.0
    %989 = vmatpush1.msra.mxu0 0.0
    %990 = vmatprep.subr.mxu0 0.0
    %991 = vmatpush1.msra.mxu0 0.0
    %992 = vmatprep.subr.mxu0 0.0
    %993 = vmatpush1.msra.mxu0 0.0
    %994 = vmatprep.subr.mxu0 0.0
    %995 = vmatpush1.msra.mxu0 0.0
    %996 = vmatprep.subr.mxu0 0.0
    %997 = vmatpush1.msra.mxu0 0.0
    %998 = vmatprep.subr.mxu0 0.0
    %999 = vmatpush1.msra.mxu0 0.0
    %1000 = vmatprep.subr.mxu0 0.0
    %1001 = vmatpush1.msra.mxu0 0.0
    %1002 = vmatprep.subr.mxu0 0.0
    %1003 = vmatpush1.msra.mxu0 0.0
    %1004 = vmatprep.subr.mxu0 0.0
    %1005 = vmatpush1.msra.mxu0 0.0
    %1006 = vmatprep.subr.mxu0 0.0
    %1007 = vmatpush1.msra.mxu0 0.0
    %1008 = vmatprep.subr.mxu0 0.0
    %1009 = vmatpush1.msra.mxu0 0.0
    %1010 = vmatprep.subr.mxu0 0.0
    %1011 = vmatpush1.msra.mxu0 0.0
    %1012 = vmatprep.subr.mxu0 0.0
    %1013 = vmatpush1.msra.mxu0 0.0
    %1014 = vmatprep.subr.mxu0 0.0
    %1015 = vmatpush1.msra.mxu0 0.0
    %1016 = vmatprep.subr.mxu0 0.0
    %1017 = vmatpush1.msra.mxu0 0.0
    %1018 = vmatprep.subr.mxu0 0.0
    %1019 = vmatpush1.msra.mxu0 0.0
    %1020 = vmatprep.subr.mxu0 0.0
    %1021 = vmatpush1.msra.mxu0 0.0
    %1022 = vmatprep.subr.mxu0 0.0
    %1023 = vmatpush1.msra.mxu0 0.0
    %1024 = vmatprep.mubr.f32.mxu0 0.0
    %1025 = vmatmul.mubr.f32.gmra.mrb[0].mxu0 %v958
    %v1026 = vpop.f32.mrb[0].mxu0
    %v1027 = vadd.f32 0.0, %v1026
    %v1028 = vpop.f32.mrb[0].mxu0
    %1029 = vdwg.mxu0
    %v1030 = vadd.f32 %v955, %v1027
    %v1031 = vxor.u32 %v1030, 2147483648
    %v1032 = vmul.f32 %v1031, 1.442695
    %v1033 = vpow.pop %v1032
    %v1034 = vadd.f32 %v1033, 1.0
    %v1035 = vrcp.pop %v1034
    %v1036 = vmul.f32 1.0, %v1035
    %v1037 = vtanh.pop %v1030
    %v1038 = vmul.f32 %v1036, %v939
    %1040 = vrot.lane.b32.xlu0 %v1037, 96
    %v1041 = vpop.permute.xlu0 %1040
    %v1043 = vmul.f32 %v1036, %v1041
    %1045 = vrot.lane.b32.xlu0 %v1043, 16
    %v1046 = vpop.permute.xlu0 %1045
    %v1048 = vadd.f32 %v1038, %v1046
    %v1049 = vtanh.pop %v1048
    %1051 = vrot.lane.b32.xlu0 %v1049, 32
    %v1052 = vpop.permute.xlu0 %1051
    %v1054 = vmul.f32 %v1036, %v1052
    %1056 = vrot.lane.b32.xlu0 %v1054, 80
    %v1057 = vpop.permute.xlu0 %1056
    %s1059 = scalar_lea.vmem [#allocation3], %s953
    %1060 = vst.msk [vmem:[%s1059] sm:$0xff] %vm189, %v1057
    %1062 = vrot.lane.b32.xlu0 %v1048, 112
    %v1063 = vpop.permute.xlu0 %1062
  $region42: #{generator_forward.6} parent=0 // loop_footer
    %s180 = sadd.s32 1, %s176
  $region43: #{generator_forward.6} parent=0 // loop_footer_branch
    %175 = sbr.rel target = $region39
  $region44: #{generator_forward.6} parent=0 // loop_exit
    _
  %vm1065 = vcmask 130048
  %1066 = vst.msk [vmem:[#allocation4] sm:$0xff] %vm1065, %v181
  %1067 = vst.msk [vmem:[#allocation5] sm:$0xff] %vm1065, %v182
  %v1068 = vld [vmem:[#allocation3] sm:$0xff]
  %v1069 = vld [vmem:[#allocation3 + $0x8] sm:$0xff]
  %v1070 = vld [vmem:[#allocation3 + $0x10] sm:$0xff]
  %v1071 = vld [vmem:[#allocation3 + $0x18] sm:$0xff]
  %v1072 = vld [vmem:[#allocation3 + $0x20] sm:$0xff]
  %v1073 = vld [vmem:[#allocation3 + $0x28] sm:$0xff]
  %v1074 = vld [vmem:[#allocation3 + $0x30] sm:$0xff]
  %v1075 = vld [vmem:[#allocation3 + $0x38] sm:$0xff]
  %v1076 = vld [vmem:[#allocation3 + $0x40] sm:$0xff]
  %v1077 = vld [vmem:[#allocation3 + $0x48] sm:$0xff]
  %v1078 = vld [vmem:[#allocation3 + $0x50] sm:$0xff]
  %v1079 = vld [vmem:[#allocation3 + $0x58] sm:$0xff]
  %v1080 = vld [vmem:[#allocation3 + $0x60] sm:$0xff]
  %v1081 = vld [vmem:[#allocation3 + $0x68] sm:$0xff]
  %v1082 = vld [vmem:[#allocation3 + $0x70] sm:$0xff]
  %v1083 = vld [vmem:[#allocation3 + $0x78] sm:$0xff]
  %v1084 = vpack.c.bf16 %v1069, %v1068
  %v1085 = vpack.c.bf16 %v1071, %v1070
  %v1086 = vpack.c.bf16 %v1073, %v1072
  %v1087 = vpack.c.bf16 %v1075, %v1074
  %v1088 = vpack.c.bf16 %v1077, %v1076
  %v1089 = vpack.c.bf16 %v1079, %v1078
  %v1090 = vpack.c.bf16 %v1081, %v1080
  %v1091 = vpack.c.bf16 %v1083, %v1082
  %v1092 = vld [vmem:[%s6] sm:$0xf]
  %v1093 = vld [vmem:[%s6 + $0x4] sm:$0xf]
  %v1094 = vld [vmem:[%s7] sm:$0x1]
  %v1096 = vlaneseq
  %v1097 = vshrl.u32 %v1096, 7
  %v1098 = vsub.s32 0, %v1097
  %v1099 = vrot.slane %v1094, %v1098
  %v1103 = vunpack.c.l.b16 %v1092
  %v1104 = vunpack.c.l.b16 %v1093
  %v1105 = vpack.c.b16 %v1104, %v1103
  %v1108 = vsel %vm1065, %v1084, 0
  %v1111 = vsel %vm1065, %v1085, 0
  %v1114 = vsel %vm1065, %v1086, 0
  %v1117 = vsel %vm1065, %v1087, 0
  %v1120 = vsel %vm1065, %v1088, 0
  %v1123 = vsel %vm1065, %v1089, 0
  %v1126 = vsel %vm1065, %v1090, 0
  %v1129 = vsel %vm1065, %v1091, 0
  %1131 = vmatprep.subr.bf16.mxu0 0
  %1132 = vmatpush1.bf16.msra.mxu0 %v1105
  %1133 = vmatprep.subr.bf16.mxu0 0
  %1134 = vmatpush1.bf16.msra.mxu0 0
  %1135 = vmatprep.subr.bf16.mxu0 0
  %1136 = vmatpush1.bf16.msra.mxu0 0
  %1137 = vmatprep.subr.bf16.mxu0 0
  %1138 = vmatpush1.bf16.msra.mxu0 0
  %1139 = vmatprep.subr.bf16.mxu0 0
  %1140 = vmatpush1.bf16.msra.mxu0 0
  %1141 = vmatprep.subr.bf16.mxu0 0
  %1142 = vmatpush1.bf16.msra.mxu0 0
  %1143 = vmatprep.subr.bf16.mxu0 0
  %1144 = vmatpush1.bf16.msra.mxu0 0
  %1145 = vmatprep.subr.bf16.mxu0 0
  %1146 = vmatpush1.bf16.msra.mxu0 0
  %1147 = vmatprep.subr.bf16.mxu0 0
  %1148 = vmatpush1.bf16.msra.mxu0 0
  %1149 = vmatprep.subr.bf16.mxu0 0
  %1150 = vmatpush1.bf16.msra.mxu0 0
  %1151 = vmatprep.subr.bf16.mxu0 0
  %1152 = vmatpush1.bf16.msra.mxu0 0
  %1153 = vmatprep.subr.bf16.mxu0 0
  %1154 = vmatpush1.bf16.msra.mxu0 0
  %1155 = vmatprep.subr.bf16.mxu0 0
  %1156 = vmatpush1.bf16.msra.mxu0 0
  %1157 = vmatprep.subr.bf16.mxu0 0
  %1158 = vmatpush1.bf16.msra.mxu0 0
  %1159 = vmatprep.subr.bf16.mxu0 0
  %1160 = vmatpush1.bf16.msra.mxu0 0
  %1161 = vmatprep.subr.bf16.mxu0 0
  %1162 = vmatpush1.bf16.msra.mxu0 0
  %1163 = vmatprep.mubr.bf16.mxu0 0
  %1164 = vmatmul.mubr.bf16.gmra.mrb[0].mxu0 %v1108
  %v1165 = vpop.f32.mrb[0].mxu0
  %v1166 = vadd.f32 %v1099, %v1165
  %v1167 = vpop.f32.mrb[0].mxu0
  %v1168 = vpop.f32.mrb[0].mxu0
  %v1169 = vadd.f32 %v1099, %v1168
  %v1170 = vpop.f32.mrb[0].mxu0
  %1171 = vmatprep.mubr.bf16.mxu0 0
  %1172 = vmatmul.mubr.bf16.gmra.mrb[0].mxu0 %v1111
  %v1173 = vpop.f32.mrb[0].mxu0
  %v1174 = vadd.f32 %v1099, %v1173
  %v1175 = vpop.f32.mrb[0].mxu0
  %v1176 = vpop.f32.mrb[0].mxu0
  %v1177 = vadd.f32 %v1099, %v1176
  %v1178 = vpop.f32.mrb[0].mxu0
  %1179 = vmatprep.mubr.bf16.mxu0 0
  %1180 = vmatmul.mubr.bf16.gmra.mrb[0].mxu0 %v1114
  %v1181 = vpop.f32.mrb[0].mxu0
  %v1182 = vadd.f32 %v1099, %v1181
  %v1183 = vpop.f32.mrb[0].mxu0
  %v1184 = vpop.f32.mrb[0].mxu0
  %v1185 = vadd.f32 %v1099, %v1184
  %v1186 = vpop.f32.mrb[0].mxu0
  %1187 = vmatprep.mubr.bf16.mxu0 0
  %1188 = vmatmul.mubr.bf16.gmra.mrb[0].mxu0 %v1117
  %v1189 = vpop.f32.mrb[0].mxu0
  %v1190 = vadd.f32 %v1099, %v1189
  %v1191 = vpop.f32.mrb[0].mxu0
  %v1192 = vpop.f32.mrb[0].mxu0
  %v1193 = vadd.f32 %v1099, %v1192
  %v1194 = vpop.f32.mrb[0].mxu0
  %1195 = vmatprep.mubr.bf16.mxu0 0
  %1196 = vmatmul.mubr.bf16.gmra.mrb[0].mxu0 %v1120
  %v1197 = vpop.f32.mrb[0].mxu0
  %v1198 = vadd.f32 %v1099, %v1197
  %v1199 = vpop.f32.mrb[0].mxu0
  %v1200 = vpop.f32.mrb[0].mxu0
  %v1201 = vadd.f32 %v1099, %v1200
  %v1202 = vpop.f32.mrb[0].mxu0
  %1203 = vmatprep.mubr.bf16.mxu0 0
  %1204 = vmatmul.mubr.bf16.gmra.mrb[0].mxu0 %v1123
  %v1205 = vpop.f32.mrb[0].mxu0
  %v1206 = vadd.f32 %v1099, %v1205
  %v1207 = vpop.f32.mrb[0].mxu0
  %v1208 = vpop.f32.mrb[0].mxu0
  %v1209 = vadd.f32 %v1099, %v1208
  %v1210 = vpop.f32.mrb[0].mxu0
  %1211 = vmatprep.mubr.bf16.mxu0 0
  %1212 = vmatmul.mubr.bf16.gmra.mrb[0].mxu0 %v1126
  %v1213 = vpop.f32.mrb[0].mxu0
  %v1214 = vadd.f32 %v1099, %v1213
  %v1215 = vpop.f32.mrb[0].mxu0
  %v1216 = vpop.f32.mrb[0].mxu0
  %v1217 = vadd.f32 %v1099, %v1216
  %v1218 = vpop.f32.mrb[0].mxu0
  %1219 = vmatprep.mubr.bf16.mxu0 0
  %1220 = vmatmul.mubr.bf16.gmra.mrb[0].mxu0 %v1129
  %v1221 = vpop.f32.mrb[0].mxu0
  %v1222 = vadd.f32 %v1099, %v1221
  %v1223 = vpop.f32.mrb[0].mxu0
  %v1224 = vpop.f32.mrb[0].mxu0
  %v1225 = vadd.f32 %v1099, %v1224
  %v1226 = vpop.f32.mrb[0].mxu0
  %1227 = vdwg.mxu0
  %vm1228 = vcmask 31744
  %1229 = vst.msk [vmem:[%s8] sm:$0xff] %vm1228, %v1166
  %1230 = vst.msk [vmem:[%s8 + $0x8] sm:$0xff] %vm1228, %v1169
  %1231 = vst.msk [vmem:[%s8 + $0x10] sm:$0xff] %vm1228, %v1174
  %1232 = vst.msk [vmem:[%s8 + $0x18] sm:$0xff] %vm1228, %v1177
  %1233 = vst.msk [vmem:[%s8 + $0x20] sm:$0xff] %vm1228, %v1182
  %1234 = vst.msk [vmem:[%s8 + $0x28] sm:$0xff] %vm1228, %v1185
  %1235 = vst.msk [vmem:[%s8 + $0x30] sm:$0xff] %vm1228, %v1190
  %1236 = vst.msk [vmem:[%s8 + $0x38] sm:$0xff] %vm1228, %v1193
  %1237 = vst.msk [vmem:[%s8 + $0x40] sm:$0xff] %vm1228, %v1198
  %1238 = vst.msk [vmem:[%s8 + $0x48] sm:$0xff] %vm1228, %v1201
  %1239 = vst.msk [vmem:[%s8 + $0x50] sm:$0xff] %vm1228, %v1206
  %1240 = vst.msk [vmem:[%s8 + $0x58] sm:$0xff] %vm1228, %v1209
  %1241 = vst.msk [vmem:[%s8 + $0x60] sm:$0xff] %vm1228, %v1214
  %1242 = vst.msk [vmem:[%s8 + $0x68] sm:$0xff] %vm1228, %v1217
  %1243 = vst.msk [vmem:[%s8 + $0x70] sm:$0xff] %vm1228, %v1222
  %1244 = vst.msk [vmem:[%s8 + $0x78] sm:$0xff] %vm1228, %v1225
  // Predicated region
  $region45: #{generator_forward.6} parent=0 // pred_check
    _
  $region46: #{generator_forward.6} parent=0 // pred_check_branch
    %1246 = sbr.rel (0) target = $region48
  $region47: #{generator_forward.6} parent=0 // pred_region
    _
  $region48: #{generator_forward.6} parent=0 // pred_fallthru
    _
  // Predicated region
  $region49: #{generator_forward.6} parent=0 // pred_check
    _
  $region50: #{generator_forward.6} parent=0 // pred_check_branch
    %1248 = sbr.rel (0) target = $region52
  $region51: #{generator_forward.6} parent=0 // pred_region
    _
  $region52: #{generator_forward.6} parent=0 // pred_fallthru
    _

// kernel: generator_forward.7
$region0: #{generator_forward.7}
  #allocation0 [shape = 'u32[]', space=smem, size = 0x4, offset = 0x4, fixed_abs, tag = 'smem constant byte address 0x4 - core index']
  #allocation1 [shape = 'u32[144,128]{1,0:T(1,128)}', space=vmem, size = 0x12000, scoped, tag = 'internal scratch']
  #allocation2 [shape = 'f32[16,8,64]{2,1,0:T(8,128)}', space=vmem, size = 0x10000, scoped, tag = 'scratch operand']
  #allocation3 [shape = 'f32[16,8,16]{2,1,0:T(8,128)}', space=vmem, size = 0x10000, scoped, tag = 'scratch operand']
  #allocation4 [shape = 'f32[8,16]{1,0:T(8,128)}', space=vmem, size = 0x1000, scoped, tag = 'scratch operand']
  #allocation5 [shape = 'f32[8,16]{1,0:T(8,128)}', space=vmem, size = 0x1000, scoped, tag = 'scratch operand']
  %s0 = inlined_call_operand.vmem [shape: f32[2,8,12], index: 0, kind: input, shape index: {}]
  %s1 = inlined_call_operand.vmem [shape: f32[16,8,4], index: 1, kind: input, shape index: {}]
  %s2 = inlined_call_operand.vmem [shape: bf16[12,64], index: 2, kind: input, shape index: {}]
  %s3 = inlined_call_operand.vmem [shape: bf16[4,64], index: 3, kind: input, shape index: {}]
  %s4 = inlined_call_operand.vmem [shape: f32[16,64], index: 4, kind: input, shape index: {}]
  %s5 = inlined_call_operand.vmem [shape: f32[1,64], index: 5, kind: input, shape index: {}]
  %s6 = inlined_call_operand.vmem [shape: bf16[16,16], index: 6, kind: input, shape index: {}]
  %s7 = inlined_call_operand.vmem [shape: f32[1,16], index: 7, kind: input, shape index: {}]
  %s8 = inlined_call_operand.vmem [shape: f32[16,8,16], index: 8, kind: output, shape index: {}]
  %s9 = sld [smem:[#allocation0]]
  $region53: #{generator_forward.7} parent=0
    _
  %s11 = ssub.s32 1, %s9
  %s12 = scalar_select 0, %s11, %s9
  // Predicated region
  $region2: #{generator_forward.7} parent=0 // pred_check
    _
  $region3: #{generator_forward.7} parent=0 // pred_check_branch
    %14 = sbr.rel (0) target = $region5
  $region4: #{generator_forward.7} parent=0 // pred_region
    _
  $region5: #{generator_forward.7} parent=0 // pred_fallthru
    _
  // Predicated region
  $region6: #{generator_forward.7} parent=0 // pred_check
    _
  $region7: #{generator_forward.7} parent=0 // pred_check_branch
    %16 = sbr.rel (0) target = $region9
  $region8: #{generator_forward.7} parent=0 // pred_region
    _
  $region9: #{generator_forward.7} parent=0 // pred_fallthru
    _
  // Predicated region
  $region10: #{generator_forward.7} parent=0 // pred_check
    _
  $region11: #{generator_forward.7} parent=0 // pred_check_branch
    %18 = sbr.rel (0) target = $region13
  $region12: #{generator_forward.7} parent=0 // pred_region
    _
  $region13: #{generator_forward.7} parent=0 // pred_fallthru
    _
  // Predicated region
  $region14: #{generator_forward.7} parent=0 // pred_check
    _
  $region15: #{generator_forward.7} parent=0 // pred_check_branch
    %20 = sbr.rel (0) target = $region17
  $region16: #{generator_forward.7} parent=0 // pred_region
    _
  $region17: #{generator_forward.7} parent=0 // pred_fallthru
    _
  // Predicated region
  $region18: #{generator_forward.7} parent=0 // pred_check
    _
  $region19: #{generator_forward.7} parent=0 // pred_check_branch
    %22 = sbr.rel (0) target = $region21
  $region20: #{generator_forward.7} parent=0 // pred_region
    _
  $region21: #{generator_forward.7} parent=0 // pred_fallthru
    _
  // Predicated region
  $region22: #{generator_forward.7} parent=0 // pred_check
    _
  $region23: #{generator_forward.7} parent=0 // pred_check_branch
    %24 = sbr.rel (0) target = $region25
  $region24: #{generator_forward.7} parent=0 // pred_region
    _
  $region25: #{generator_forward.7} parent=0 // pred_fallthru
    _
  // Predicated region
  $region26: #{generator_forward.7} parent=0 // pred_check
    _
  $region27: #{generator_forward.7} parent=0 // pred_check_branch
    %26 = sbr.rel (0) target = $region29
  $region28: #{generator_forward.7} parent=0 // pred_region
    _
  $region29: #{generator_forward.7} parent=0 // pred_fallthru
    _
  // Predicated region
  $region30: #{generator_forward.7} parent=0 // pred_check
    _
  $region31: #{generator_forward.7} parent=0 // pred_check_branch
    %28 = sbr.rel (0) target = $region33
  $region32: #{generator_forward.7} parent=0 // pred_region
    _
  $region33: #{generator_forward.7} parent=0 // pred_fallthru
    _
  %p30 = scmp.eq.s32.totalorder 0, 0
  // Predicated region
  $region34: #{generator_forward.7} parent=0 // pred_check
    %p31 = pneg %p30
  $region35: #{generator_forward.7} parent=0 // pred_check_branch
    %33 = sbr.rel (%p31) target = $region37
  $region36: #{generator_forward.7} parent=0 // pred_region
    %vm34 = vcmask 130048
    %35 = vst.msk [vmem:[#allocation4] sm:$0xff] %vm34, 0.0
    %36 = vst.msk [vmem:[#allocation5] sm:$0xff] %vm34, 0.0
  $region37: #{generator_forward.7} parent=0 // pred_fallthru
    _
  %v37 = vld [vmem:[%s0] sm:$0xff]
  %v38 = vld [vmem:[%s0 + $0x8] sm:$0xff]
  %v39 = vpack.c.bf16 %v38, %v37
  %v40 = vld [vmem:[%s2] sm:$0xf]
  %v41 = vld [vmem:[%s2 + $0x4] sm:$0x3]
  %v44 = vunpack.c.l.b16 %v40
  %v45 = vunpack.c.l.b16 %v41
  %v46 = vpack.c.b16 %v45, %v44
  %vm47 = vcmask 97280
  %v49 = vsel %vm47, %v39, 0
  %vm51 = vcmask 1045504
  %v53 = vsel %vm51, %v46, 0
  %55 = vmatprep.subr.bf16.mxu0 0
  %56 = vmatpush1.bf16.msra.mxu0 %v53
  %57 = vmatprep.subr.bf16.mxu0 0
  %58 = vmatpush1.bf16.msra.mxu0 0
  %59 = vmatprep.subr.bf16.mxu0 0
  %60 = vmatpush1.bf16.msra.mxu0 0
  %61 = vmatprep.subr.bf16.mxu0 0
  %62 = vmatpush1.bf16.msra.mxu0 0
  %63 = vmatprep.subr.bf16.mxu0 0
  %64 = vmatpush1.bf16.msra.mxu0 0
  %65 = vmatprep.subr.bf16.mxu0 0
  %66 = vmatpush1.bf16.msra.mxu0 0
  %67 = vmatprep.subr.bf16.mxu0 0
  %68 = vmatpush1.bf16.msra.mxu0 0
  %69 = vmatprep.subr.bf16.mxu0 0
  %70 = vmatpush1.bf16.msra.mxu0 0
  %71 = vmatprep.subr.bf16.mxu0 0
  %72 = vmatpush1.bf16.msra.mxu0 0
  %73 = vmatprep.subr.bf16.mxu0 0
  %74 = vmatpush1.bf16.msra.mxu0 0
  %75 = vmatprep.subr.bf16.mxu0 0
  %76 = vmatpush1.bf16.msra.mxu0 0
  %77 = vmatprep.subr.bf16.mxu0 0
  %78 = vmatpush1.bf16.msra.mxu0 0
  %79 = vmatprep.subr.bf16.mxu0 0
  %80 = vmatpush1.bf16.msra.mxu0 0
  %81 = vmatprep.subr.bf16.mxu0 0
  %82 = vmatpush1.bf16.msra.mxu0 0
  %83 = vmatprep.subr.bf16.mxu0 0
  %84 = vmatpush1.bf16.msra.mxu0 0
  %85 = vmatprep.subr.bf16.mxu0 0
  %86 = vmatpush1.bf16.msra.mxu0 0
  %87 = vmatprep.mubr.bf16.mxu0 0
  %88 = vmatmul.mubr.bf16.gmra.mrb[0].mxu0 %v49
  %v89 = vpop.f32.mrb[0].mxu0
  %v90 = vadd.f32 0.0, %v89
  %v91 = vpop.f32.mrb[0].mxu0
  %v92 = vpop.f32.mrb[0].mxu0
  %v93 = vadd.f32 0.0, %v92
  %v94 = vpop.f32.mrb[0].mxu0
  %95 = vdwg.mxu0
  %v96 = vld [vmem:[%s1] sm:$0xff]
  %v97 = vld [vmem:[%s1 + $0x8] sm:$0xff]
  %v98 = vld [vmem:[%s1 + $0x10] sm:$0xff]
  %v99 = vld [vmem:[%s1 + $0x18] sm:$0xff]
  %v100 = vld [vmem:[%s1 + $0x20] sm:$0xff]
  %v101 = vld [vmem:[%s1 + $0x28] sm:$0xff]
  %v102 = vld [vmem:[%s1 + $0x30] sm:$0xff]
  %v103 = vld [vmem:[%s1 + $0x38] sm:$0xff]
  %v104 = vld [vmem:[%s1 + $0x40] sm:$0xff]
  %v105 = vld [vmem:[%s1 + $0x48] sm:$0xff]
  %v106 = vld [vmem:[%s1 + $0x50] sm:$0xff]
  %v107 = vld [vmem:[%s1 + $0x58] sm:$0xff]
  %v108 = vld [vmem:[%s1 + $0x60] sm:$0xff]
  %v109 = vld [vmem:[%s1 + $0x68] sm:$0xff]
  %v110 = vld [vmem:[%s1 + $0x70] sm:$0xff]
  %v111 = vld [vmem:[%s1 + $0x78] sm:$0xff]
  %v112 = vpack.c.bf16 %v97, %v96
  %v113 = vpack.c.bf16 %v99, %v98
  %v114 = vpack.c.bf16 %v101, %v100
  %v115 = vpack.c.bf16 %v103, %v102
  %v116 = vpack.c.bf16 %v105, %v104
  %v117 = vpack.c.bf16 %v107, %v106
  %v118 = vpack.c.bf16 %v109, %v108
  %v119 = vpack.c.bf16 %v111, %v110
  %v120 = vld [vmem:[%s3] sm:$0x3]
  %vm121 = vcmask 31744
  %v123 = vsel %vm121, %v112, 0
  %v126 = vsel %vm121, %v113, 0
  %v129 = vsel %vm121, %v114, 0
  %v132 = vsel %vm121, %v115, 0
  %v135 = vsel %vm121, %v116, 0
  %v138 = vsel %vm121, %v117, 0
  %v141 = vsel %vm121, %v118, 0
  %v144 = vsel %vm121, %v119, 0
  %vm146 = vcmask 1041408
  %v148 = vsel %vm146, %v120, 0
  %150 = vmatprep.subr.bf16.mxu0 0
  %151 = vmatpush1.bf16.msra.mxu0 %v148
  %152 = vmatprep.subr.bf16.mxu0 0
  %153 = vmatpush1.bf16.msra.mxu0 0
  %154 = vmatprep.subr.bf16.mxu0 0
  %155 = vmatpush1.bf16.msra.mxu0 0
  %156 = vmatprep.subr.bf16.mxu0 0
  %157 = vmatpush1.bf16.msra.mxu0 0
  %158 = vmatprep.subr.bf16.mxu0 0
  %159 = vmatpush1.bf16.msra.mxu0 0
  %160 = vmatprep.subr.bf16.mxu0 0
  %161 = vmatpush1.bf16.msra.mxu0 0
  %162 = vmatprep.subr.bf16.mxu0 0
  %163 = vmatpush1.bf16.msra.mxu0 0
  %164 = vmatprep.subr.bf16.mxu0 0
  %165 = vmatpush1.bf16.msra.mxu0 0
  %166 = vmatprep.subr.bf16.mxu0 0
  %167 = vmatpush1.bf16.msra.mxu0 0
  %168 = vmatprep.subr.bf16.mxu0 0
  %169 = vmatpush1.bf16.msra.mxu0 0
  %170 = vmatprep.subr.bf16.mxu0 0
  %171 = vmatpush1.bf16.msra.mxu0 0
  %172 = vmatprep.subr.bf16.mxu0 0
  %173 = vmatpush1.bf16.msra.mxu0 0
  %174 = vmatprep.subr.bf16.mxu0 0
  %175 = vmatpush1.bf16.msra.mxu0 0
  %176 = vmatprep.subr.bf16.mxu0 0
  %177 = vmatpush1.bf16.msra.mxu0 0
  %178 = vmatprep.subr.bf16.mxu0 0
  %179 = vmatpush1.bf16.msra.mxu0 0
  %180 = vmatprep.subr.bf16.mxu0 0
  %181 = vmatpush1.bf16.msra.mxu0 0
  %182 = vmatprep.mubr.bf16.mxu0 0
  %183 = vmatmul.mubr.bf16.gmra.mrb[0].mxu0 %v123
  %v184 = vpop.f32.mrb[0].mxu0
  %v185 = vadd.f32 0.0, %v184
  %v186 = vpop.f32.mrb[0].mxu0
  %v187 = vpop.f32.mrb[0].mxu0
  %v188 = vadd.f32 0.0, %v187
  %v189 = vpop.f32.mrb[0].mxu0
  %190 = vmatprep.mubr.bf16.mxu0 0
  %191 = vmatmul.mubr.bf16.gmra.mrb[0].mxu0 %v126
  %v192 = vpop.f32.mrb[0].mxu0
  %v193 = vadd.f32 0.0, %v192
  %v194 = vpop.f32.mrb[0].mxu0
  %v195 = vpop.f32.mrb[0].mxu0
  %v196 = vadd.f32 0.0, %v195
  %v197 = vpop.f32.mrb[0].mxu0
  %198 = vmatprep.mubr.bf16.mxu0 0
  %199 = vmatmul.mubr.bf16.gmra.mrb[0].mxu0 %v129
  %v200 = vpop.f32.mrb[0].mxu0
  %v201 = vadd.f32 0.0, %v200
  %v202 = vpop.f32.mrb[0].mxu0
  %v203 = vpop.f32.mrb[0].mxu0
  %v204 = vadd.f32 0.0, %v203
  %v205 = vpop.f32.mrb[0].mxu0
  %206 = vmatprep.mubr.bf16.mxu0 0
  %207 = vmatmul.mubr.bf16.gmra.mrb[0].mxu0 %v132
  %v208 = vpop.f32.mrb[0].mxu0
  %v209 = vadd.f32 0.0, %v208
  %v210 = vpop.f32.mrb[0].mxu0
  %v211 = vpop.f32.mrb[0].mxu0
  %v212 = vadd.f32 0.0, %v211
  %v213 = vpop.f32.mrb[0].mxu0
  %214 = vmatprep.mubr.bf16.mxu0 0
  %215 = vmatmul.mubr.bf16.gmra.mrb[0].mxu0 %v135
  %v216 = vpop.f32.mrb[0].mxu0
  %v217 = vadd.f32 0.0, %v216
  %v218 = vpop.f32.mrb[0].mxu0
  %v219 = vpop.f32.mrb[0].mxu0
  %v220 = vadd.f32 0.0, %v219
  %v221 = vpop.f32.mrb[0].mxu0
  %222 = vmatprep.mubr.bf16.mxu0 0
  %223 = vmatmul.mubr.bf16.gmra.mrb[0].mxu0 %v138
  %v224 = vpop.f32.mrb[0].mxu0
  %v225 = vadd.f32 0.0, %v224
  %v226 = vpop.f32.mrb[0].mxu0
  %v227 = vpop.f32.mrb[0].mxu0
  %v228 = vadd.f32 0.0, %v227
  %v229 = vpop.f32.mrb[0].mxu0
  %230 = vmatprep.mubr.bf16.mxu0 0
  %231 = vmatmul.mubr.bf16.gmra.mrb[0].mxu0 %v141
  %v232 = vpop.f32.mrb[0].mxu0
  %v233 = vadd.f32 0.0, %v232
  %v234 = vpop.f32.mrb[0].mxu0
  %v235 = vpop.f32.mrb[0].mxu0
  %v236 = vadd.f32 0.0, %v235
  %v237 = vpop.f32.mrb[0].mxu0
  %238 = vmatprep.mubr.bf16.mxu0 0
  %239 = vmatmul.mubr.bf16.gmra.mrb[0].mxu0 %v144
  %v240 = vpop.f32.mrb[0].mxu0
  %v241 = vadd.f32 0.0, %v240
  %v242 = vpop.f32.mrb[0].mxu0
  %v243 = vpop.f32.mrb[0].mxu0
  %v244 = vadd.f32 0.0, %v243
  %v245 = vpop.f32.mrb[0].mxu0
  %246 = vdwg.mxu0
  %v247 = vadd.f32 %v90, %v185
  %v248 = vadd.f32 %v90, %v188
  %v249 = vadd.f32 %v90, %v193
  %v250 = vadd.f32 %v90, %v196
  %v251 = vadd.f32 %v90, %v201
  %v252 = vadd.f32 %v90, %v204
  %v253 = vadd.f32 %v90, %v209
  %v254 = vadd.f32 %v90, %v212
  %v255 = vadd.f32 %v93, %v217
  %v256 = vadd.f32 %v93, %v220
  %v257 = vadd.f32 %v93, %v225
  %v258 = vadd.f32 %v93, %v228
  %v259 = vadd.f32 %v93, %v233
  %v260 = vadd.f32 %v93, %v236
  %v261 = vadd.f32 %v93, %v241
  %v262 = vadd.f32 %v93, %v244
  %v263 = vld [vmem:[%s5] sm:$0x1]
  %v265 = vlaneseq
  %v266 = vshrl.u32 %v265, 7
  %v267 = vsub.s32 0, %v266
  %v268 = vrot.slane %v263, %v267
  %v270 = vadd.f32 %v247, %v268
  %v271 = vadd.f32 %v248, %v268
  %v272 = vadd.f32 %v249, %v268
  %v273 = vadd.f32 %v250, %v268
  %v274 = vadd.f32 %v251, %v268
  %v275 = vadd.f32 %v252, %v268
  %v276 = vadd.f32 %v253, %v268
  %v277 = vadd.f32 %v254, %v268
  %v278 = vadd.f32 %v255, %v268
  %v279 = vadd.f32 %v256, %v268
  %v280 = vadd.f32 %v257, %v268
  %v281 = vadd.f32 %v258, %v268
  %v282 = vadd.f32 %v259, %v268
  %v283 = vadd.f32 %v260, %v268
  %v284 = vadd.f32 %v261, %v268
  %v285 = vadd.f32 %v262, %v268
  %vm286 = vcmask 523264
  %287 = vst.msk [vmem:[#allocation2] sm:$0xff] %vm286, %v270
  %288 = vst.msk [vmem:[#allocation2 + $0x8] sm:$0xff] %vm286, %v271
  %289 = vst.msk [vmem:[#allocation2 + $0x10] sm:$0xff] %vm286, %v272
  %290 = vst.msk [vmem:[#allocation2 + $0x18] sm:$0xff] %vm286, %v273
  %291 = vst.msk [vmem:[#allocation2 + $0x20] sm:$0xff] %vm286, %v274
  %292 = vst.msk [vmem:[#allocation2 + $0x28] sm:$0xff] %vm286, %v275
  %293 = vst.msk [vmem:[#allocation2 + $0x30] sm:$0xff] %vm286, %v276
  %294 = vst.msk [vmem:[#allocation2 + $0x38] sm:$0xff] %vm286, %v277
  %295 = vst.msk [vmem:[#allocation2 + $0x40] sm:$0xff] %vm286, %v278
  %296 = vst.msk [vmem:[#allocation2 + $0x48] sm:$0xff] %vm286, %v279
  %297 = vst.msk [vmem:[#allocation2 + $0x50] sm:$0xff] %vm286, %v280
  %298 = vst.msk [vmem:[#allocation2 + $0x58] sm:$0xff] %vm286, %v281
  %299 = vst.msk [vmem:[#allocation2 + $0x60] sm:$0xff] %vm286, %v282
  %300 = vst.msk [vmem:[#allocation2 + $0x68] sm:$0xff] %vm286, %v283
  %301 = vst.msk [vmem:[#allocation2 + $0x70] sm:$0xff] %vm286, %v284
  %302 = vst.msk [vmem:[#allocation2 + $0x78] sm:$0xff] %vm286, %v285
  %v303 = vld [vmem:[#allocation4] sm:$0xff]
  %v304 = vld [vmem:[#allocation5] sm:$0xff]
  loop: start=0, step=1, limit=2
  $region38: #{generator_forward.7} parent=0 // loop_pre_header
    _
  $region39: #{generator_forward.7} parent=0 // loop_header
    %s306 = sphi 0, %s310
    %p307 = scmp.ge.s32.totalorder %s306, 2
    %v311 = vphi %v303, %v1187
    %v312 = vphi %v304, %v1193
  $region40: #{generator_forward.7} parent=0 // loop_header_branch
    %309 = sbr.rel (%p307) target = $region44
  $region41: #{generator_forward.7} parent=0 // loop_body
    %s313 = smul.u32 %s306, 8
    %s314 = smul.u32 %s313, 8
    %s315 = scalar_lea.vmem [#allocation2], %s314
    %v316 = vld [vmem:[%s315] sm:$0xff]
    %v317 = vld [vmem:[%s4] sm:$0xff]
    %v318 = vld [vmem:[%s4 + $0x8] sm:$0xff]
    %vm319 = vcmask 130048
    %v321 = vsel %vm319, %v311, 0
    %323 = vmatprep.subr.mxu0 0.0
    %324 = vmatpush1.msra.mxu0 %v317
    %325 = vmatprep.subr.mxu0 0.0
    %326 = vmatpush1.msra.mxu0 %v318
    %327 = vmatprep.subr.mxu0 0.0
    %328 = vmatpush1.msra.mxu0 0.0
    %329 = vmatprep.subr.mxu0 0.0
    %330 = vmatpush1.msra.mxu0 0.0
    %331 = vmatprep.subr.mxu0 0.0
    %332 = vmatpush1.msra.mxu0 0.0
    %333 = vmatprep.subr.mxu0 0.0
    %334 = vmatpush1.msra.mxu0 0.0
    %335 = vmatprep.subr.mxu0 0.0
    %336 = vmatpush1.msra.mxu0 0.0
    %337 = vmatprep.subr.mxu0 0.0
    %338 = vmatpush1.msra.mxu0 0.0
    %339 = vmatprep.subr.mxu0 0.0
    %340 = vmatpush1.msra.mxu0 0.0
    %341 = vmatprep.subr.mxu0 0.0
    %342 = vmatpush1.msra.mxu0 0.0
    %343 = vmatprep.subr.mxu0 0.0
    %344 = vmatpush1.msra.mxu0 0.0
    %345 = vmatprep.subr.mxu0 0.0
    %346 = vmatpush1.msra.mxu0 0.0
    %347 = vmatprep.subr.mxu0 0.0
    %348 = vmatpush1.msra.mxu0 0.0
    %349 = vmatprep.subr.mxu0 0.0
    %350 = vmatpush1.msra.mxu0 0.0
    %351 = vmatprep.subr.mxu0 0.0
    %352 = vmatpush1.msra.mxu0 0.0
    %353 = vmatprep.subr.mxu0 0.0
    %354 = vmatpush1.msra.mxu0 0.0
    %355 = vmatprep.subr.mxu0 0.0
    %356 = vmatpush1.msra.mxu0 0.0
    %357 = vmatprep.subr.mxu0 0.0
    %358 = vmatpush1.msra.mxu0 0.0
    %359 = vmatprep.subr.mxu0 0.0
    %360 = vmatpush1.msra.mxu0 0.0
    %361 = vmatprep.subr.mxu0 0.0
    %362 = vmatpush1.msra.mxu0 0.0
    %363 = vmatprep.subr.mxu0 0.0
    %364 = vmatpush1.msra.mxu0 0.0
    %365 = vmatprep.subr.mxu0 0.0
    %366 = vmatpush1.msra.mxu0 0.0
    %367 = vmatprep.subr.mxu0 0.0
    %368 = vmatpush1.msra.mxu0 0.0
    %369 = vmatprep.subr.mxu0 0.0
    %370 = vmatpush1.msra.mxu0 0.0
    %371 = vmatprep.subr.mxu0 0.0
    %372 = vmatpush1.msra.mxu0 0.0
    %373 = vmatprep.subr.mxu0 0.0
    %374 = vmatpush1.msra.mxu0 0.0
    %375 = vmatprep.subr.mxu0 0.0
    %376 = vmatpush1.msra.mxu0 0.0
    %377 = vmatprep.subr.mxu0 0.0
    %378 = vmatpush1.msra.mxu0 0.0
    %379 = vmatprep.subr.mxu0 0.0
    %380 = vmatpush1.msra.mxu0 0.0
    %381 = vmatprep.subr.mxu0 0.0
    %382 = vmatpush1.msra.mxu0 0.0
    %383 = vmatprep.subr.mxu0 0.0
    %384 = vmatpush1.msra.mxu0 0.0
    %385 = vmatprep.subr.mxu0 0.0
    %386 = vmatpush1.msra.mxu0 0.0
    %387 = vmatprep.mubr.f32.mxu0 0.0
    %388 = vmatmul.mubr.f32.gmra.mrb[0].mxu0 %v321
    %v389 = vpop.f32.mrb[0].mxu0
    %v390 = vadd.f32 0.0, %v389
    %v391 = vpop.f32.mrb[0].mxu0
    %392 = vdwg.mxu0
    %v393 = vadd.f32 %v316, %v390
    %v394 = vxor.u32 %v393, 2147483648
    %v395 = vmul.f32 %v394, 1.442695
    %v396 = vpow.pop %v395
    %v397 = vadd.f32 %v396, 1.0
    %v398 = vrcp.pop %v397
    %v399 = vmul.f32 1.0, %v398
    %v400 = vtanh.pop %v393
    %402 = vrot.lane.b32.xlu0 %v312, 16
    %v403 = vpop.permute.xlu0 %402
    %v405 = vmul.f32 %v399, %v403
    %407 = vrot.lane.b32.xlu0 %v400, 96
    %v408 = vpop.permute.xlu0 %407
    %v410 = vmul.f32 %v399, %v408
    %412 = vrot.lane.b32.xlu0 %v410, 16
    %v413 = vpop.permute.xlu0 %412
    %v415 = vadd.f32 %v405, %v413
    %v416 = vtanh.pop %v415
    %418 = vrot.lane.b32.xlu0 %v416, 32
    %v419 = vpop.permute.xlu0 %418
    %v421 = vmul.f32 %v399, %v419
    %423 = vrot.lane.b32.xlu0 %v421, 80
    %v424 = vpop.permute.xlu0 %423
    %s426 = scalar_lea.vmem [#allocation3], %s314
    %427 = vst.msk [vmem:[%s426] sm:$0xff] %vm319, %v424
    %s428 = sadd.s32 %s313, 1
    %s429 = smul.u32 %s428, 8
    %s430 = scalar_lea.vmem [#allocation2], %s429
    %v431 = vld [vmem:[%s430] sm:$0xff]
    %v432 = vld [vmem:[%s4] sm:$0xff]
    %v433 = vld [vmem:[%s4 + $0x8] sm:$0xff]
    %v434 = vsel %vm319, %v424, 0
    %436 = vmatprep.subr.mxu0 0.0
    %437 = vmatpush1.msra.mxu0 %v432
    %438 = vmatprep.subr.mxu0 0.0
    %439 = vmatpush1.msra.mxu0 %v433
    %440 = vmatprep.subr.mxu0 0.0
    %441 = vmatpush1.msra.mxu0 0.0
    %442 = vmatprep.subr.mxu0 0.0
    %443 = vmatpush1.msra.mxu0 0.0
    %444 = vmatprep.subr.mxu0 0.0
    %445 = vmatpush1.msra.mxu0 0.0
    %446 = vmatprep.subr.mxu0 0.0
    %447 = vmatpush1.msra.mxu0 0.0
    %448 = vmatprep.subr.mxu0 0.0
    %449 = vmatpush1.msra.mxu0 0.0
    %450 = vmatprep.subr.mxu0 0.0
    %451 = vmatpush1.msra.mxu0 0.0
    %452 = vmatprep.subr.mxu0 0.0
    %453 = vmatpush1.msra.mxu0 0.0
    %454 = vmatprep.subr.mxu0 0.0
    %455 = vmatpush1.msra.mxu0 0.0
    %456 = vmatprep.subr.mxu0 0.0
    %457 = vmatpush1.msra.mxu0 0.0
    %458 = vmatprep.subr.mxu0 0.0
    %459 = vmatpush1.msra.mxu0 0.0
    %460 = vmatprep.subr.mxu0 0.0
    %461 = vmatpush1.msra.mxu0 0.0
    %462 = vmatprep.subr.mxu0 0.0
    %463 = vmatpush1.msra.mxu0 0.0
    %464 = vmatprep.subr.mxu0 0.0
    %465 = vmatpush1.msra.mxu0 0.0
    %466 = vmatprep.subr.mxu0 0.0
    %467 = vmatpush1.msra.mxu0 0.0
    %468 = vmatprep.subr.mxu0 0.0
    %469 = vmatpush1.msra.mxu0 0.0
    %470 = vmatprep.subr.mxu0 0.0
    %471 = vmatpush1.msra.mxu0 0.0
    %472 = vmatprep.subr.mxu0 0.0
    %473 = vmatpush1.msra.mxu0 0.0
    %474 = vmatprep.subr.mxu0 0.0
    %475 = vmatpush1.msra.mxu0 0.0
    %476 = vmatprep.subr.mxu0 0.0
    %477 = vmatpush1.msra.mxu0 0.0
    %478 = vmatprep.subr.mxu0 0.0
    %479 = vmatpush1.msra.mxu0 0.0
    %480 = vmatprep.subr.mxu0 0.0
    %481 = vmatpush1.msra.mxu0 0.0
    %482 = vmatprep.subr.mxu0 0.0
    %483 = vmatpush1.msra.mxu0 0.0
    %484 = vmatprep.subr.mxu0 0.0
    %485 = vmatpush1.msra.mxu0 0.0
    %486 = vmatprep.subr.mxu0 0.0
    %487 = vmatpush1.msra.mxu0 0.0
    %488 = vmatprep.subr.mxu0 0.0
    %489 = vmatpush1.msra.mxu0 0.0
    %490 = vmatprep.subr.mxu0 0.0
    %491 = vmatpush1.msra.mxu0 0.0
    %492 = vmatprep.subr.mxu0 0.0
    %493 = vmatpush1.msra.mxu0 0.0
    %494 = vmatprep.subr.mxu0 0.0
    %495 = vmatpush1.msra.mxu0 0.0
    %496 = vmatprep.subr.mxu0 0.0
    %497 = vmatpush1.msra.mxu0 0.0
    %498 = vmatprep.subr.mxu0 0.0
    %499 = vmatpush1.msra.mxu0 0.0
    %500 = vmatprep.mubr.f32.mxu0 0.0
    %501 = vmatmul.mubr.f32.gmra.mrb[0].mxu0 %v434
    %v502 = vpop.f32.mrb[0].mxu0
    %v503 = vadd.f32 0.0, %v502
    %v504 = vpop.f32.mrb[0].mxu0
    %505 = vdwg.mxu0
    %v506 = vadd.f32 %v431, %v503
    %v507 = vxor.u32 %v506, 2147483648
    %v508 = vmul.f32 %v507, 1.442695
    %v509 = vpow.pop %v508
    %v510 = vadd.f32 %v509, 1.0
    %v511 = vrcp.pop %v510
    %v512 = vmul.f32 1.0, %v511
    %v513 = vtanh.pop %v506
    %v514 = vmul.f32 %v512, %v415
    %516 = vrot.lane.b32.xlu0 %v513, 96
    %v517 = vpop.permute.xlu0 %516
    %v519 = vmul.f32 %v512, %v517
    %521 = vrot.lane.b32.xlu0 %v519, 16
    %v522 = vpop.permute.xlu0 %521
    %v524 = vadd.f32 %v514, %v522
    %v525 = vtanh.pop %v524
    %527 = vrot.lane.b32.xlu0 %v525, 32
    %v528 = vpop.permute.xlu0 %527
    %v530 = vmul.f32 %v512, %v528
    %532 = vrot.lane.b32.xlu0 %v530, 80
    %v533 = vpop.permute.xlu0 %532
    %s535 = scalar_lea.vmem [#allocation3], %s429
    %536 = vst.msk [vmem:[%s535] sm:$0xff] %vm319, %v533
    %s537 = sadd.s32 %s313, 2
    %s538 = smul.u32 %s537, 8
    %s539 = scalar_lea.vmem [#allocation2], %s538
    %v540 = vld [vmem:[%s539] sm:$0xff]
    %v541 = vld [vmem:[%s4] sm:$0xff]
    %v542 = vld [vmem:[%s4 + $0x8] sm:$0xff]
    %v543 = vsel %vm319, %v533, 0
    %545 = vmatprep.subr.mxu0 0.0
    %546 = vmatpush1.msra.mxu0 %v541
    %547 = vmatprep.subr.mxu0 0.0
    %548 = vmatpush1.msra.mxu0 %v542
    %549 = vmatprep.subr.mxu0 0.0
    %550 = vmatpush1.msra.mxu0 0.0
    %551 = vmatprep.subr.mxu0 0.0
    %552 = vmatpush1.msra.mxu0 0.0
    %553 = vmatprep.subr.mxu0 0.0
    %554 = vmatpush1.msra.mxu0 0.0
    %555 = vmatprep.subr.mxu0 0.0
    %556 = vmatpush1.msra.mxu0 0.0
    %557 = vmatprep.subr.mxu0 0.0
    %558 = vmatpush1.msra.mxu0 0.0
    %559 = vmatprep.subr.mxu0 0.0
    %560 = vmatpush1.msra.mxu0 0.0
    %561 = vmatprep.subr.mxu0 0.0
    %562 = vmatpush1.msra.mxu0 0.0
    %563 = vmatprep.subr.mxu0 0.0
    %564 = vmatpush1.msra.mxu0 0.0
    %565 = vmatprep.subr.mxu0 0.0
    %566 = vmatpush1.msra.mxu0 0.0
    %567 = vmatprep.subr.mxu0 0.0
    %568 = vmatpush1.msra.mxu0 0.0
    %569 = vmatprep.subr.mxu0 0.0
    %570 = vmatpush1.msra.mxu0 0.0
    %571 = vmatprep.subr.mxu0 0.0
    %572 = vmatpush1.msra.mxu0 0.0
    %573 = vmatprep.subr.mxu0 0.0
    %574 = vmatpush1.msra.mxu0 0.0
    %575 = vmatprep.subr.mxu0 0.0
    %576 = vmatpush1.msra.mxu0 0.0
    %577 = vmatprep.subr.mxu0 0.0
    %578 = vmatpush1.msra.mxu0 0.0
    %579 = vmatprep.subr.mxu0 0.0
    %580 = vmatpush1.msra.mxu0 0.0
    %581 = vmatprep.subr.mxu0 0.0
    %582 = vmatpush1.msra.mxu0 0.0
    %583 = vmatprep.subr.mxu0 0.0
    %584 = vmatpush1.msra.mxu0 0.0
    %585 = vmatprep.subr.mxu0 0.0
    %586 = vmatpush1.msra.mxu0 0.0
    %587 = vmatprep.subr.mxu0 0.0
    %588 = vmatpush1.msra.mxu0 0.0
    %589 = vmatprep.subr.mxu0 0.0
    %590 = vmatpush1.msra.mxu0 0.0
    %591 = vmatprep.subr.mxu0 0.0
    %592 = vmatpush1.msra.mxu0 0.0
    %593 = vmatprep.subr.mxu0 0.0
    %594 = vmatpush1.msra.mxu0 0.0
    %595 = vmatprep.subr.mxu0 0.0
    %596 = vmatpush1.msra.mxu0 0.0
    %597 = vmatprep.subr.mxu0 0.0
    %598 = vmatpush1.msra.mxu0 0.0
    %599 = vmatprep.subr.mxu0 0.0
    %600 = vmatpush1.msra.mxu0 0.0
    %601 = vmatprep.subr.mxu0 0.0
    %602 = vmatpush1.msra.mxu0 0.0
    %603 = vmatprep.subr.mxu0 0.0
    %604 = vmatpush1.msra.mxu0 0.0
    %605 = vmatprep.subr.mxu0 0.0
    %606 = vmatpush1.msra.mxu0 0.0
    %607 = vmatprep.subr.mxu0 0.0
    %608 = vmatpush1.msra.mxu0 0.0
    %609 = vmatprep.mubr.f32.mxu0 0.0
    %610 = vmatmul.mubr.f32.gmra.mrb[0].mxu0 %v543
    %v611 = vpop.f32.mrb[0].mxu0
    %v612 = vadd.f32 0.0, %v611
    %v613 = vpop.f32.mrb[0].mxu0
    %614 = vdwg.mxu0
    %v615 = vadd.f32 %v540, %v612
    %v616 = vxor.u32 %v615, 2147483648
    %v617 = vmul.f32 %v616, 1.442695
    %v618 = vpow.pop %v617
    %v619 = vadd.f32 %v618, 1.0
    %v620 = vrcp.pop %v619
    %v621 = vmul.f32 1.0, %v620
    %v622 = vtanh.pop %v615
    %v623 = vmul.f32 %v621, %v524
    %625 = vrot.lane.b32.xlu0 %v622, 96
    %v626 = vpop.permute.xlu0 %625
    %v628 = vmul.f32 %v621, %v626
    %630 = vrot.lane.b32.xlu0 %v628, 16
    %v631 = vpop.permute.xlu0 %630
    %v633 = vadd.f32 %v623, %v631
    %v634 = vtanh.pop %v633
    %636 = vrot.lane.b32.xlu0 %v634, 32
    %v637 = vpop.permute.xlu0 %636
    %v639 = vmul.f32 %v621, %v637
    %641 = vrot.lane.b32.xlu0 %v639, 80
    %v642 = vpop.permute.xlu0 %641
    %s644 = scalar_lea.vmem [#allocation3], %s538
    %645 = vst.msk [vmem:[%s644] sm:$0xff] %vm319, %v642
    %s646 = sadd.s32 %s313, 3
    %s647 = smul.u32 %s646, 8
    %s648 = scalar_lea.vmem [#allocation2], %s647
    %v649 = vld [vmem:[%s648] sm:$0xff]
    %v650 = vld [vmem:[%s4] sm:$0xff]
    %v651 = vld [vmem:[%s4 + $0x8] sm:$0xff]
    %v652 = vsel %vm319, %v642, 0
    %654 = vmatprep.subr.mxu0 0.0
    %655 = vmatpush1.msra.mxu0 %v650
    %656 = vmatprep.subr.mxu0 0.0
    %657 = vmatpush1.msra.mxu0 %v651
    %658 = vmatprep.subr.mxu0 0.0
    %659 = vmatpush1.msra.mxu0 0.0
    %660 = vmatprep.subr.mxu0 0.0
    %661 = vmatpush1.msra.mxu0 0.0
    %662 = vmatprep.subr.mxu0 0.0
    %663 = vmatpush1.msra.mxu0 0.0
    %664 = vmatprep.subr.mxu0 0.0
    %665 = vmatpush1.msra.mxu0 0.0
    %666 = vmatprep.subr.mxu0 0.0
    %667 = vmatpush1.msra.mxu0 0.0
    %668 = vmatprep.subr.mxu0 0.0
    %669 = vmatpush1.msra.mxu0 0.0
    %670 = vmatprep.subr.mxu0 0.0
    %671 = vmatpush1.msra.mxu0 0.0
    %672 = vmatprep.subr.mxu0 0.0
    %673 = vmatpush1.msra.mxu0 0.0
    %674 = vmatprep.subr.mxu0 0.0
    %675 = vmatpush1.msra.mxu0 0.0
    %676 = vmatprep.subr.mxu0 0.0
    %677 = vmatpush1.msra.mxu0 0.0
    %678 = vmatprep.subr.mxu0 0.0
    %679 = vmatpush1.msra.mxu0 0.0
    %680 = vmatprep.subr.mxu0 0.0
    %681 = vmatpush1.msra.mxu0 0.0
    %682 = vmatprep.subr.mxu0 0.0
    %683 = vmatpush1.msra.mxu0 0.0
    %684 = vmatprep.subr.mxu0 0.0
    %685 = vmatpush1.msra.mxu0 0.0
    %686 = vmatprep.subr.mxu0 0.0
    %687 = vmatpush1.msra.mxu0 0.0
    %688 = vmatprep.subr.mxu0 0.0
    %689 = vmatpush1.msra.mxu0 0.0
    %690 = vmatprep.subr.mxu0 0.0
    %691 = vmatpush1.msra.mxu0 0.0
    %692 = vmatprep.subr.mxu0 0.0
    %693 = vmatpush1.msra.mxu0 0.0
    %694 = vmatprep.subr.mxu0 0.0
    %695 = vmatpush1.msra.mxu0 0.0
    %696 = vmatprep.subr.mxu0 0.0
    %697 = vmatpush1.msra.mxu0 0.0
    %698 = vmatprep.subr.mxu0 0.0
    %699 = vmatpush1.msra.mxu0 0.0
    %700 = vmatprep.subr.mxu0 0.0
    %701 = vmatpush1.msra.mxu0 0.0
    %702 = vmatprep.subr.mxu0 0.0
    %703 = vmatpush1.msra.mxu0 0.0
    %704 = vmatprep.subr.mxu0 0.0
    %705 = vmatpush1.msra.mxu0 0.0
    %706 = vmatprep.subr.mxu0 0.0
    %707 = vmatpush1.msra.mxu0 0.0
    %708 = vmatprep.subr.mxu0 0.0
    %709 = vmatpush1.msra.mxu0 0.0
    %710 = vmatprep.subr.mxu0 0.0
    %711 = vmatpush1.msra.mxu0 0.0
    %712 = vmatprep.subr.mxu0 0.0
    %713 = vmatpush1.msra.mxu0 0.0
    %714 = vmatprep.subr.mxu0 0.0
    %715 = vmatpush1.msra.mxu0 0.0
    %716 = vmatprep.subr.mxu0 0.0
    %717 = vmatpush1.msra.mxu0 0.0
    %718 = vmatprep.mubr.f32.mxu0 0.0
    %719 = vmatmul.mubr.f32.gmra.mrb[0].mxu0 %v652
    %v720 = vpop.f32.mrb[0].mxu0
    %v721 = vadd.f32 0.0, %v720
    %v722 = vpop.f32.mrb[0].mxu0
    %723 = vdwg.mxu0
    %v724 = vadd.f32 %v649, %v721
    %v725 = vxor.u32 %v724, 2147483648
    %v726 = vmul.f32 %v725, 1.442695
    %v727 = vpow.pop %v726
    %v728 = vadd.f32 %v727, 1.0
    %v729 = vrcp.pop %v728
    %v730 = vmul.f32 1.0, %v729
    %v731 = vtanh.pop %v724
    %v732 = vmul.f32 %v730, %v633
    %734 = vrot.lane.b32.xlu0 %v731, 96
    %v735 = vpop.permute.xlu0 %734
    %v737 = vmul.f32 %v730, %v735
    %739 = vrot.lane.b32.xlu0 %v737, 16
    %v740 = vpop.permute.xlu0 %739
    %v742 = vadd.f32 %v732, %v740
    %v743 = vtanh.pop %v742
    %745 = vrot.lane.b32.xlu0 %v743, 32
    %v746 = vpop.permute.xlu0 %745
    %v748 = vmul.f32 %v730, %v746
    %750 = vrot.lane.b32.xlu0 %v748, 80
    %v751 = vpop.permute.xlu0 %750
    %s753 = scalar_lea.vmem [#allocation3], %s647
    %754 = vst.msk [vmem:[%s753] sm:$0xff] %vm319, %v751
    %s755 = sadd.s32 %s313, 4
    %s756 = smul.u32 %s755, 8
    %s757 = scalar_lea.vmem [#allocation2], %s756
    %v758 = vld [vmem:[%s757] sm:$0xff]
    %v759 = vld [vmem:[%s4] sm:$0xff]
    %v760 = vld [vmem:[%s4 + $0x8] sm:$0xff]
    %v761 = vsel %vm319, %v751, 0
    %763 = vmatprep.subr.mxu0 0.0
    %764 = vmatpush1.msra.mxu0 %v759
    %765 = vmatprep.subr.mxu0 0.0
    %766 = vmatpush1.msra.mxu0 %v760
    %767 = vmatprep.subr.mxu0 0.0
    %768 = vmatpush1.msra.mxu0 0.0
    %769 = vmatprep.subr.mxu0 0.0
    %770 = vmatpush1.msra.mxu0 0.0
    %771 = vmatprep.subr.mxu0 0.0
    %772 = vmatpush1.msra.mxu0 0.0
    %773 = vmatprep.subr.mxu0 0.0
    %774 = vmatpush1.msra.mxu0 0.0
    %775 = vmatprep.subr.mxu0 0.0
    %776 = vmatpush1.msra.mxu0 0.0
    %777 = vmatprep.subr.mxu0 0.0
    %778 = vmatpush1.msra.mxu0 0.0
    %779 = vmatprep.subr.mxu0 0.0
    %780 = vmatpush1.msra.mxu0 0.0
    %781 = vmatprep.subr.mxu0 0.0
    %782 = vmatpush1.msra.mxu0 0.0
    %783 = vmatprep.subr.mxu0 0.0
    %784 = vmatpush1.msra.mxu0 0.0
    %785 = vmatprep.subr.mxu0 0.0
    %786 = vmatpush1.msra.mxu0 0.0
    %787 = vmatprep.subr.mxu0 0.0
    %788 = vmatpush1.msra.mxu0 0.0
    %789 = vmatprep.subr.mxu0 0.0
    %790 = vmatpush1.msra.mxu0 0.0
    %791 = vmatprep.subr.mxu0 0.0
    %792 = vmatpush1.msra.mxu0 0.0
    %793 = vmatprep.subr.mxu0 0.0
    %794 = vmatpush1.msra.mxu0 0.0
    %795 = vmatprep.subr.mxu0 0.0
    %796 = vmatpush1.msra.mxu0 0.0
    %797 = vmatprep.subr.mxu0 0.0
    %798 = vmatpush1.msra.mxu0 0.0
    %799 = vmatprep.subr.mxu0 0.0
    %800 = vmatpush1.msra.mxu0 0.0
    %801 = vmatprep.subr.mxu0 0.0
    %802 = vmatpush1.msra.mxu0 0.0
    %803 = vmatprep.subr.mxu0 0.0
    %804 = vmatpush1.msra.mxu0 0.0
    %805 = vmatprep.subr.mxu0 0.0
    %806 = vmatpush1.msra.mxu0 0.0
    %807 = vmatprep.subr.mxu0 0.0
    %808 = vmatpush1.msra.mxu0 0.0
    %809 = vmatprep.subr.mxu0 0.0
    %810 = vmatpush1.msra.mxu0 0.0
    %811 = vmatprep.subr.mxu0 0.0
    %812 = vmatpush1.msra.mxu0 0.0
    %813 = vmatprep.subr.mxu0 0.0
    %814 = vmatpush1.msra.mxu0 0.0
    %815 = vmatprep.subr.mxu0 0.0
    %816 = vmatpush1.msra.mxu0 0.0
    %817 = vmatprep.subr.mxu0 0.0
    %818 = vmatpush1.msra.mxu0 0.0
    %819 = vmatprep.subr.mxu0 0.0
    %820 = vmatpush1.msra.mxu0 0.0
    %821 = vmatprep.subr.mxu0 0.0
    %822 = vmatpush1.msra.mxu0 0.0
    %823 = vmatprep.subr.mxu0 0.0
    %824 = vmatpush1.msra.mxu0 0.0
    %825 = vmatprep.subr.mxu0 0.0
    %826 = vmatpush1.msra.mxu0 0.0
    %827 = vmatprep.mubr.f32.mxu0 0.0
    %828 = vmatmul.mubr.f32.gmra.mrb[0].mxu0 %v761
    %v829 = vpop.f32.mrb[0].mxu0
    %v830 = vadd.f32 0.0, %v829
    %v831 = vpop.f32.mrb[0].mxu0
    %832 = vdwg.mxu0
    %v833 = vadd.f32 %v758, %v830
    %v834 = vxor.u32 %v833, 2147483648
    %v835 = vmul.f32 %v834, 1.442695
    %v836 = vpow.pop %v835
    %v837 = vadd.f32 %v836, 1.0
    %v838 = vrcp.pop %v837
    %v839 = vmul.f32 1.0, %v838
    %v840 = vtanh.pop %v833
    %v841 = vmul.f32 %v839, %v742
    %843 = vrot.lane.b32.xlu0 %v840, 96
    %v844 = vpop.permute.xlu0 %843
    %v846 = vmul.f32 %v839, %v844
    %848 = vrot.lane.b32.xlu0 %v846, 16
    %v849 = vpop.permute.xlu0 %848
    %v851 = vadd.f32 %v841, %v849
    %v852 = vtanh.pop %v851
    %854 = vrot.lane.b32.xlu0 %v852, 32
    %v855 = vpop.permute.xlu0 %854
    %v857 = vmul.f32 %v839, %v855
    %859 = vrot.lane.b32.xlu0 %v857, 80
    %v860 = vpop.permute.xlu0 %859
    %s862 = scalar_lea.vmem [#allocation3], %s756
    %863 = vst.msk [vmem:[%s862] sm:$0xff] %vm319, %v860
    %s864 = sadd.s32 %s313, 5
    %s865 = smul.u32 %s864, 8
    %s866 = scalar_lea.vmem [#allocation2], %s865
    %v867 = vld [vmem:[%s866] sm:$0xff]
    %v868 = vld [vmem:[%s4] sm:$0xff]
    %v869 = vld [vmem:[%s4 + $0x8] sm:$0xff]
    %v870 = vsel %vm319, %v860, 0
    %872 = vmatprep.subr.mxu0 0.0
    %873 = vmatpush1.msra.mxu0 %v868
    %874 = vmatprep.subr.mxu0 0.0
    %875 = vmatpush1.msra.mxu0 %v869
    %876 = vmatprep.subr.mxu0 0.0
    %877 = vmatpush1.msra.mxu0 0.0
    %878 = vmatprep.subr.mxu0 0.0
    %879 = vmatpush1.msra.mxu0 0.0
    %880 = vmatprep.subr.mxu0 0.0
    %881 = vmatpush1.msra.mxu0 0.0
    %882 = vmatprep.subr.mxu0 0.0
    %883 = vmatpush1.msra.mxu0 0.0
    %884 = vmatprep.subr.mxu0 0.0
    %885 = vmatpush1.msra.mxu0 0.0
    %886 = vmatprep.subr.mxu0 0.0
    %887 = vmatpush1.msra.mxu0 0.0
    %888 = vmatprep.subr.mxu0 0.0
    %889 = vmatpush1.msra.mxu0 0.0
    %890 = vmatprep.subr.mxu0 0.0
    %891 = vmatpush1.msra.mxu0 0.0
    %892 = vmatprep.subr.mxu0 0.0
    %893 = vmatpush1.msra.mxu0 0.0
    %894 = vmatprep.subr.mxu0 0.0
    %895 = vmatpush1.msra.mxu0 0.0
    %896 = vmatprep.subr.mxu0 0.0
    %897 = vmatpush1.msra.mxu0 0.0
    %898 = vmatprep.subr.mxu0 0.0
    %899 = vmatpush1.msra.mxu0 0.0
    %900 = vmatprep.subr.mxu0 0.0
    %901 = vmatpush1.msra.mxu0 0.0
    %902 = vmatprep.subr.mxu0 0.0
    %903 = vmatpush1.msra.mxu0 0.0
    %904 = vmatprep.subr.mxu0 0.0
    %905 = vmatpush1.msra.mxu0 0.0
    %906 = vmatprep.subr.mxu0 0.0
    %907 = vmatpush1.msra.mxu0 0.0
    %908 = vmatprep.subr.mxu0 0.0
    %909 = vmatpush1.msra.mxu0 0.0
    %910 = vmatprep.subr.mxu0 0.0
    %911 = vmatpush1.msra.mxu0 0.0
    %912 = vmatprep.subr.mxu0 0.0
    %913 = vmatpush1.msra.mxu0 0.0
    %914 = vmatprep.subr.mxu0 0.0
    %915 = vmatpush1.msra.mxu0 0.0
    %916 = vmatprep.subr.mxu0 0.0
    %917 = vmatpush1.msra.mxu0 0.0
    %918 = vmatprep.subr.mxu0 0.0
    %919 = vmatpush1.msra.mxu0 0.0
    %920 = vmatprep.subr.mxu0 0.0
    %921 = vmatpush1.msra.mxu0 0.0
    %922 = vmatprep.subr.mxu0 0.0
    %923 = vmatpush1.msra.mxu0 0.0
    %924 = vmatprep.subr.mxu0 0.0
    %925 = vmatpush1.msra.mxu0 0.0
    %926 = vmatprep.subr.mxu0 0.0
    %927 = vmatpush1.msra.mxu0 0.0
    %928 = vmatprep.subr.mxu0 0.0
    %929 = vmatpush1.msra.mxu0 0.0
    %930 = vmatprep.subr.mxu0 0.0
    %931 = vmatpush1.msra.mxu0 0.0
    %932 = vmatprep.subr.mxu0 0.0
    %933 = vmatpush1.msra.mxu0 0.0
    %934 = vmatprep.subr.mxu0 0.0
    %935 = vmatpush1.msra.mxu0 0.0
    %936 = vmatprep.mubr.f32.mxu0 0.0
    %937 = vmatmul.mubr.f32.gmra.mrb[0].mxu0 %v870
    %v938 = vpop.f32.mrb[0].mxu0
    %v939 = vadd.f32 0.0, %v938
    %v940 = vpop.f32.mrb[0].mxu0
    %941 = vdwg.mxu0
    %v942 = vadd.f32 %v867, %v939
    %v943 = vxor.u32 %v942, 2147483648
    %v944 = vmul.f32 %v943, 1.442695
    %v945 = vpow.pop %v944
    %v946 = vadd.f32 %v945, 1.0
    %v947 = vrcp.pop %v946
    %v948 = vmul.f32 1.0, %v947
    %v949 = vtanh.pop %v942
    %v950 = vmul.f32 %v948, %v851
    %952 = vrot.lane.b32.xlu0 %v949, 96
    %v953 = vpop.permute.xlu0 %952
    %v955 = vmul.f32 %v948, %v953
    %957 = vrot.lane.b32.xlu0 %v955, 16
    %v958 = vpop.permute.xlu0 %957
    %v960 = vadd.f32 %v950, %v958
    %v961 = vtanh.pop %v960
    %963 = vrot.lane.b32.xlu0 %v961, 32
    %v964 = vpop.permute.xlu0 %963
    %v966 = vmul.f32 %v948, %v964
    %968 = vrot.lane.b32.xlu0 %v966, 80
    %v969 = vpop.permute.xlu0 %968
    %s971 = scalar_lea.vmem [#allocation3], %s865
    %972 = vst.msk [vmem:[%s971] sm:$0xff] %vm319, %v969
    %s973 = sadd.s32 %s313, 6
    %s974 = smul.u32 %s973, 8
    %s975 = scalar_lea.vmem [#allocation2], %s974
    %v976 = vld [vmem:[%s975] sm:$0xff]
    %v977 = vld [vmem:[%s4] sm:$0xff]
    %v978 = vld [vmem:[%s4 + $0x8] sm:$0xff]
    %v979 = vsel %vm319, %v969, 0
    %981 = vmatprep.subr.mxu0 0.0
    %982 = vmatpush1.msra.mxu0 %v977
    %983 = vmatprep.subr.mxu0 0.0
    %984 = vmatpush1.msra.mxu0 %v978
    %985 = vmatprep.subr.mxu0 0.0
    %986 = vmatpush1.msra.mxu0 0.0
    %987 = vmatprep.subr.mxu0 0.0
    %988 = vmatpush1.msra.mxu0 0.0
    %989 = vmatprep.subr.mxu0 0.0
    %990 = vmatpush1.msra.mxu0 0.0
    %991 = vmatprep.subr.mxu0 0.0
    %992 = vmatpush1.msra.mxu0 0.0
    %993 = vmatprep.subr.mxu0 0.0
    %994 = vmatpush1.msra.mxu0 0.0
    %995 = vmatprep.subr.mxu0 0.0
    %996 = vmatpush1.msra.mxu0 0.0
    %997 = vmatprep.subr.mxu0 0.0
    %998 = vmatpush1.msra.mxu0 0.0
    %999 = vmatprep.subr.mxu0 0.0
    %1000 = vmatpush1.msra.mxu0 0.0
    %1001 = vmatprep.subr.mxu0 0.0
    %1002 = vmatpush1.msra.mxu0 0.0
    %1003 = vmatprep.subr.mxu0 0.0
    %1004 = vmatpush1.msra.mxu0 0.0
    %1005 = vmatprep.subr.mxu0 0.0
    %1006 = vmatpush1.msra.mxu0 0.0
    %1007 = vmatprep.subr.mxu0 0.0
    %1008 = vmatpush1.msra.mxu0 0.0
    %1009 = vmatprep.subr.mxu0 0.0
    %1010 = vmatpush1.msra.mxu0 0.0
    %1011 = vmatprep.subr.mxu0 0.0
    %1012 = vmatpush1.msra.mxu0 0.0
    %1013 = vmatprep.subr.mxu0 0.0
    %1014 = vmatpush1.msra.mxu0 0.0
    %1015 = vmatprep.subr.mxu0 0.0
    %1016 = vmatpush1.msra.mxu0 0.0
    %1017 = vmatprep.subr.mxu0 0.0
    %1018 = vmatpush1.msra.mxu0 0.0
    %1019 = vmatprep.subr.mxu0 0.0
    %1020 = vmatpush1.msra.mxu0 0.0
    %1021 = vmatprep.subr.mxu0 0.0
    %1022 = vmatpush1.msra.mxu0 0.0
    %1023 = vmatprep.subr.mxu0 0.0
    %1024 = vmatpush1.msra.mxu0 0.0
    %1025 = vmatprep.subr.mxu0 0.0
    %1026 = vmatpush1.msra.mxu0 0.0
    %1027 = vmatprep.subr.mxu0 0.0
    %1028 = vmatpush1.msra.mxu0 0.0
    %1029 = vmatprep.subr.mxu0 0.0
    %1030 = vmatpush1.msra.mxu0 0.0
    %1031 = vmatprep.subr.mxu0 0.0
    %1032 = vmatpush1.msra.mxu0 0.0
    %1033 = vmatprep.subr.mxu0 0.0
    %1034 = vmatpush1.msra.mxu0 0.0
    %1035 = vmatprep.subr.mxu0 0.0
    %1036 = vmatpush1.msra.mxu0 0.0
    %1037 = vmatprep.subr.mxu0 0.0
    %1038 = vmatpush1.msra.mxu0 0.0
    %1039 = vmatprep.subr.mxu0 0.0
    %1040 = vmatpush1.msra.mxu0 0.0
    %1041 = vmatprep.subr.mxu0 0.0
    %1042 = vmatpush1.msra.mxu0 0.0
    %1043 = vmatprep.subr.mxu0 0.0
    %1044 = vmatpush1.msra.mxu0 0.0
    %1045 = vmatprep.mubr.f32.mxu0 0.0
    %1046 = vmatmul.mubr.f32.gmra.mrb[0].mxu0 %v979
    %v1047 = vpop.f32.mrb[0].mxu0
    %v1048 = vadd.f32 0.0, %v1047
    %v1049 = vpop.f32.mrb[0].mxu0
    %1050 = vdwg.mxu0
    %v1051 = vadd.f32 %v976, %v1048
    %v1052 = vxor.u32 %v1051, 2147483648
    %v1053 = vmul.f32 %v1052, 1.442695
    %v1054 = vpow.pop %v1053
    %v1055 = vadd.f32 %v1054, 1.0
    %v1056 = vrcp.pop %v1055
    %v1057 = vmul.f32 1.0, %v1056
    %v1058 = vtanh.pop %v1051
    %v1059 = vmul.f32 %v1057, %v960
    %1061 = vrot.lane.b32.xlu0 %v1058, 96
    %v1062 = vpop.permute.xlu0 %1061
    %v1064 = vmul.f32 %v1057, %v1062
    %1066 = vrot.lane.b32.xlu0 %v1064, 16
    %v1067 = vpop.permute.xlu0 %1066
    %v1069 = vadd.f32 %v1059, %v1067
    %v1070 = vtanh.pop %v1069
    %1072 = vrot.lane.b32.xlu0 %v1070, 32
    %v1073 = vpop.permute.xlu0 %1072
    %v1075 = vmul.f32 %v1057, %v1073
    %1077 = vrot.lane.b32.xlu0 %v1075, 80
    %v1078 = vpop.permute.xlu0 %1077
    %s1080 = scalar_lea.vmem [#allocation3], %s974
    %1081 = vst.msk [vmem:[%s1080] sm:$0xff] %vm319, %v1078
    %s1082 = sadd.s32 %s313, 7
    %s1083 = smul.u32 %s1082, 8
    %s1084 = scalar_lea.vmem [#allocation2], %s1083
    %v1085 = vld [vmem:[%s1084] sm:$0xff]
    %v1086 = vld [vmem:[%s4] sm:$0xff]
    %v1087 = vld [vmem:[%s4 + $0x8] sm:$0xff]
    %v1088 = vsel %vm319, %v1078, 0
    %1090 = vmatprep.subr.mxu0 0.0
    %1091 = vmatpush1.msra.mxu0 %v1086
    %1092 = vmatprep.subr.mxu0 0.0
    %1093 = vmatpush1.msra.mxu0 %v1087
    %1094 = vmatprep.subr.mxu0 0.0
    %1095 = vmatpush1.msra.mxu0 0.0
    %1096 = vmatprep.subr.mxu0 0.0
    %1097 = vmatpush1.msra.mxu0 0.0
    %1098 = vmatprep.subr.mxu0 0.0
    %1099 = vmatpush1.msra.mxu0 0.0
    %1100 = vmatprep.subr.mxu0 0.0
    %1101 = vmatpush1.msra.mxu0 0.0
    %1102 = vmatprep.subr.mxu0 0.0
    %1103 = vmatpush1.msra.mxu0 0.0
    %1104 = vmatprep.subr.mxu0 0.0
    %1105 = vmatpush1.msra.mxu0 0.0
    %1106 = vmatprep.subr.mxu0 0.0
    %1107 = vmatpush1.msra.mxu0 0.0
    %1108 = vmatprep.subr.mxu0 0.0
    %1109 = vmatpush1.msra.mxu0 0.0
    %1110 = vmatprep.subr.mxu0 0.0
    %1111 = vmatpush1.msra.mxu0 0.0
    %1112 = vmatprep.subr.mxu0 0.0
    %1113 = vmatpush1.msra.mxu0 0.0
    %1114 = vmatprep.subr.mxu0 0.0
    %1115 = vmatpush1.msra.mxu0 0.0
    %1116 = vmatprep.subr.mxu0 0.0
    %1117 = vmatpush1.msra.mxu0 0.0
    %1118 = vmatprep.subr.mxu0 0.0
    %1119 = vmatpush1.msra.mxu0 0.0
    %1120 = vmatprep.subr.mxu0 0.0
    %1121 = vmatpush1.msra.mxu0 0.0
    %1122 = vmatprep.subr.mxu0 0.0
    %1123 = vmatpush1.msra.mxu0 0.0
    %1124 = vmatprep.subr.mxu0 0.0
    %1125 = vmatpush1.msra.mxu0 0.0
    %1126 = vmatprep.subr.mxu0 0.0
    %1127 = vmatpush1.msra.mxu0 0.0
    %1128 = vmatprep.subr.mxu0 0.0
    %1129 = vmatpush1.msra.mxu0 0.0
    %1130 = vmatprep.subr.mxu0 0.0
    %1131 = vmatpush1.msra.mxu0 0.0
    %1132 = vmatprep.subr.mxu0 0.0
    %1133 = vmatpush1.msra.mxu0 0.0
    %1134 = vmatprep.subr.mxu0 0.0
    %1135 = vmatpush1.msra.mxu0 0.0
    %1136 = vmatprep.subr.mxu0 0.0
    %1137 = vmatpush1.msra.mxu0 0.0
    %1138 = vmatprep.subr.mxu0 0.0
    %1139 = vmatpush1.msra.mxu0 0.0
    %1140 = vmatprep.subr.mxu0 0.0
    %1141 = vmatpush1.msra.mxu0 0.0
    %1142 = vmatprep.subr.mxu0 0.0
    %1143 = vmatpush1.msra.mxu0 0.0
    %1144 = vmatprep.subr.mxu0 0.0
    %1145 = vmatpush1.msra.mxu0 0.0
    %1146 = vmatprep.subr.mxu0 0.0
    %1147 = vmatpush1.msra.mxu0 0.0
    %1148 = vmatprep.subr.mxu0 0.0
    %1149 = vmatpush1.msra.mxu0 0.0
    %1150 = vmatprep.subr.mxu0 0.0
    %1151 = vmatpush1.msra.mxu0 0.0
    %1152 = vmatprep.subr.mxu0 0.0
    %1153 = vmatpush1.msra.mxu0 0.0
    %1154 = vmatprep.mubr.f32.mxu0 0.0
    %1155 = vmatmul.mubr.f32.gmra.mrb[0].mxu0 %v1088
    %v1156 = vpop.f32.mrb[0].mxu0
    %v1157 = vadd.f32 0.0, %v1156
    %v1158 = vpop.f32.mrb[0].mxu0
    %1159 = vdwg.mxu0
    %v1160 = vadd.f32 %v1085, %v1157
    %v1161 = vxor.u32 %v1160, 2147483648
    %v1162 = vmul.f32 %v1161, 1.442695
    %v1163 = vpow.pop %v1162
    %v1164 = vadd.f32 %v1163, 1.0
    %v1165 = vrcp.pop %v1164
    %v1166 = vmul.f32 1.0, %v1165
    %v1167 = vtanh.pop %v1160
    %v1168 = vmul.f32 %v1166, %v1069
    %1170 = vrot.lane.b32.xlu0 %v1167, 96
    %v1171 = vpop.permute.xlu0 %1170
    %v1173 = vmul.f32 %v1166, %v1171
    %1175 = vrot.lane.b32.xlu0 %v1173, 16
    %v1176 = vpop.permute.xlu0 %1175
    %v1178 = vadd.f32 %v1168, %v1176
    %v1179 = vtanh.pop %v1178
    %1181 = vrot.lane.b32.xlu0 %v1179, 32
    %v1182 = vpop.permute.xlu0 %1181
    %v1184 = vmul.f32 %v1166, %v1182
    %1186 = vrot.lane.b32.xlu0 %v1184, 80
    %v1187 = vpop.permute.xlu0 %1186
    %s1189 = scalar_lea.vmem [#allocation3], %s1083
    %1190 = vst.msk [vmem:[%s1189] sm:$0xff] %vm319, %v1187
    %1192 = vrot.lane.b32.xlu0 %v1178, 112
    %v1193 = vpop.permute.xlu0 %1192
  $region42: #{generator_forward.7} parent=0 // loop_footer
    %s310 = sadd.s32 1, %s306
  $region43: #{generator_forward.7} parent=0 // loop_footer_branch
    %305 = sbr.rel target = $region39
  $region44: #{generator_forward.7} parent=0 // loop_exit
    _
  %vm1195 = vcmask 130048
  %1196 = vst.msk [vmem:[#allocation4] sm:$0xff] %vm1195, %v311
  %1197 = vst.msk [vmem:[#allocation5] sm:$0xff] %vm1195, %v312
  %v1198 = vld [vmem:[#allocation3] sm:$0xff]
  %v1199 = vld [vmem:[#allocation3 + $0x8] sm:$0xff]
  %v1200 = vld [vmem:[#allocation3 + $0x10] sm:$0xff]
  %v1201 = vld [vmem:[#allocation3 + $0x18] sm:$0xff]
  %v1202 = vld [vmem:[#allocation3 + $0x20] sm:$0xff]
  %v1203 = vld [vmem:[#allocation3 + $0x28] sm:$0xff]
  %v1204 = vld [vmem:[#allocation3 + $0x30] sm:$0xff]
  %v1205 = vld [vmem:[#allocation3 + $0x38] sm:$0xff]
  %v1206 = vld [vmem:[#allocation3 + $0x40] sm:$0xff]
  %v1207 = vld [vmem:[#allocation3 + $0x48] sm:$0xff]
  %v1208 = vld [vmem:[#allocation3 + $0x50] sm:$0xff]
  %v1209 = vld [vmem:[#allocation3 + $0x58] sm:$0xff]
  %v1210 = vld [vmem:[#allocation3 + $0x60] sm:$0xff]
  %v1211 = vld [vmem:[#allocation3 + $0x68] sm:$0xff]
  %v1212 = vld [vmem:[#allocation3 + $0x70] sm:$0xff]
  %v1213 = vld [vmem:[#allocation3 + $0x78] sm:$0xff]
  %v1214 = vpack.c.bf16 %v1199, %v1198
  %v1215 = vpack.c.bf16 %v1201, %v1200
  %v1216 = vpack.c.bf16 %v1203, %v1202
  %v1217 = vpack.c.bf16 %v1205, %v1204
  %v1218 = vpack.c.bf16 %v1207, %v1206
  %v1219 = vpack.c.bf16 %v1209, %v1208
  %v1220 = vpack.c.bf16 %v1211, %v1210
  %v1221 = vpack.c.bf16 %v1213, %v1212
  %v1222 = vld [vmem:[%s6] sm:$0xf]
  %v1223 = vld [vmem:[%s6 + $0x4] sm:$0xf]
  %v1224 = vld [vmem:[%s7] sm:$0x1]
  %v1226 = vlaneseq
  %v1227 = vshrl.u32 %v1226, 7
  %v1228 = vsub.s32 0, %v1227
  %v1229 = vrot.slane %v1224, %v1228
  %v1233 = vunpack.c.l.b16 %v1222
  %v1234 = vunpack.c.l.b16 %v1223
  %v1235 = vpack.c.b16 %v1234, %v1233
  %v1238 = vsel %vm1195, %v1214, 0
  %v1241 = vsel %vm1195, %v1215, 0
  %v1244 = vsel %vm1195, %v1216, 0
  %v1247 = vsel %vm1195, %v1217, 0
  %v1250 = vsel %vm1195, %v1218, 0
  %v1253 = vsel %vm1195, %v1219, 0
  %v1256 = vsel %vm1195, %v1220, 0
  %v1259 = vsel %vm1195, %v1221, 0
  %1261 = vmatprep.subr.bf16.mxu0 0
  %1262 = vmatpush1.bf16.msra.mxu0 %v1235
  %1263 = vmatprep.subr.bf16.mxu0 0
  %1264 = vmatpush1.bf16.msra.mxu0 0
  %1265 = vmatprep.subr.bf16.mxu0 0
  %1266 = vmatpush1.bf16.msra.mxu0 0
  %1267 = vmatprep.subr.bf16.mxu0 0
  %1268 = vmatpush1.bf16.msra.mxu0 0
  %1269 = vmatprep.subr.bf16.mxu0 0
  %1270 = vmatpush1.bf16.msra.mxu0 0
  %1271 = vmatprep.subr.bf16.mxu0 0
  %1272 = vmatpush1.bf16.msra.mxu0 0
  %1273 = vmatprep.subr.bf16.mxu0 0
  %1274 = vmatpush1.bf16.msra.mxu0 0
  %1275 = vmatprep.subr.bf16.mxu0 0
  %1276 = vmatpush1.bf16.msra.mxu0 0
  %1277 = vmatprep.subr.bf16.mxu0 0
  %1278 = vmatpush1.bf16.msra.mxu0 0
  %1279 = vmatprep.subr.bf16.mxu0 0
  %1280 = vmatpush1.bf16.msra.mxu0 0
  %1281 = vmatprep.subr.bf16.mxu0 0
  %1282 = vmatpush1.bf16.msra.mxu0 0
  %1283 = vmatprep.subr.bf16.mxu0 0
  %1284 = vmatpush1.bf16.msra.mxu0 0
  %1285 = vmatprep.subr.bf16.mxu0 0
  %1286 = vmatpush1.bf16.msra.mxu0 0
  %1287 = vmatprep.subr.bf16.mxu0 0
  %1288 = vmatpush1.bf16.msra.mxu0 0
  %1289 = vmatprep.subr.bf16.mxu0 0
  %1290 = vmatpush1.bf16.msra.mxu0 0
  %1291 = vmatprep.subr.bf16.mxu0 0
  %1292 = vmatpush1.bf16.msra.mxu0 0
  %1293 = vmatprep.mubr.bf16.mxu0 0
  %1294 = vmatmul.mubr.bf16.gmra.mrb[0].mxu0 %v1238
  %v1295 = vpop.f32.mrb[0].mxu0
  %v1296 = vadd.f32 %v1229, %v1295
  %v1297 = vpop.f32.mrb[0].mxu0
  %v1298 = vpop.f32.mrb[0].mxu0
  %v1299 = vadd.f32 %v1229, %v1298
  %v1300 = vpop.f32.mrb[0].mxu0
  %1301 = vmatprep.mubr.bf16.mxu0 0
  %1302 = vmatmul.mubr.bf16.gmra.mrb[0].mxu0 %v1241
  %v1303 = vpop.f32.mrb[0].mxu0
  %v1304 = vadd.f32 %v1229, %v1303
  %v1305 = vpop.f32.mrb[0].mxu0
  %v1306 = vpop.f32.mrb[0].mxu0
  %v1307 = vadd.f32 %v1229, %v1306
  %v1308 = vpop.f32.mrb[0].mxu0
  %1309 = vmatprep.mubr.bf16.mxu0 0
  %1310 = vmatmul.mubr.bf16.gmra.mrb[0].mxu0 %v1244
  %v1311 = vpop.f32.mrb[0].mxu0
  %v1312 = vadd.f32 %v1229, %v1311
  %v1313 = vpop.f32.mrb[0].mxu0
  %v1314 = vpop.f32.mrb[0].mxu0
  %v1315 = vadd.f32 %v1229, %v1314
  %v1316 = vpop.f32.mrb[0].mxu0
  %1317 = vmatprep.mubr.bf16.mxu0 0
  %1318 = vmatmul.mubr.bf16.gmra.mrb[0].mxu0 %v1247
  %v1319 = vpop.f32.mrb[0].mxu0
  %v1320 = vadd.f32 %v1229, %v1319
  %v1321 = vpop.f32.mrb[0].mxu0
  %v1322 = vpop.f32.mrb[0].mxu0
  %v1323 = vadd.f32 %v1229, %v1322
  %v1324 = vpop.f32.mrb[0].mxu0
  %1325 = vmatprep.mubr.bf16.mxu0 0
  %1326 = vmatmul.mubr.bf16.gmra.mrb[0].mxu0 %v1250
  %v1327 = vpop.f32.mrb[0].mxu0
  %v1328 = vadd.f32 %v1229, %v1327
  %v1329 = vpop.f32.mrb[0].mxu0
  %v1330 = vpop.f32.mrb[0].mxu0
  %v1331 = vadd.f32 %v1229, %v1330
  %v1332 = vpop.f32.mrb[0].mxu0
  %1333 = vmatprep.mubr.bf16.mxu0 0
  %1334 = vmatmul.mubr.bf16.gmra.mrb[0].mxu0 %v1253
  %v1335 = vpop.f32.mrb[0].mxu0
  %v1336 = vadd.f32 %v1229, %v1335
  %v1337 = vpop.f32.mrb[0].mxu0
  %v1338 = vpop.f32.mrb[0].mxu0
  %v1339 = vadd.f32 %v1229, %v1338
  %v1340 = vpop.f32.mrb[0].mxu0
  %1341 = vmatprep.mubr.bf16.mxu0 0
  %1342 = vmatmul.mubr.bf16.gmra.mrb[0].mxu0 %v1256
  %v1343 = vpop.f32.mrb[0].mxu0
  %v1344 = vadd.f32 %v1229, %v1343
  %v1345 = vpop.f32.mrb[0].mxu0
  %v1346 = vpop.f32.mrb[0].mxu0
  %v1347 = vadd.f32 %v1229, %v1346
  %v1348 = vpop.f32.mrb[0].mxu0
  %1349 = vmatprep.mubr.bf16.mxu0 0
  %1350 = vmatmul.mubr.bf16.gmra.mrb[0].mxu0 %v1259
  %v1351 = vpop.f32.mrb[0].mxu0
  %v1352 = vadd.f32 %v1229, %v1351
  %v1353 = vpop.f32.mrb[0].mxu0
  %v1354 = vpop.f32.mrb[0].mxu0
  %v1355 = vadd.f32 %v1229, %v1354
  %v1356 = vpop.f32.mrb[0].mxu0
  %1357 = vdwg.mxu0
  %1358 = vst.msk [vmem:[%s8] sm:$0xff] %vm1195, %v1296
  %1359 = vst.msk [vmem:[%s8 + $0x8] sm:$0xff] %vm1195, %v1299
  %1360 = vst.msk [vmem:[%s8 + $0x10] sm:$0xff] %vm1195, %v1304
  %1361 = vst.msk [vmem:[%s8 + $0x18] sm:$0xff] %vm1195, %v1307
  %1362 = vst.msk [vmem:[%s8 + $0x20] sm:$0xff] %vm1195, %v1312
  %1363 = vst.msk [vmem:[%s8 + $0x28] sm:$0xff] %vm1195, %v1315
  %1364 = vst.msk [vmem:[%s8 + $0x30] sm:$0xff] %vm1195, %v1320
  %1365 = vst.msk [vmem:[%s8 + $0x38] sm:$0xff] %vm1195, %v1323
  %1366 = vst.msk [vmem:[%s8 + $0x40] sm:$0xff] %vm1195, %v1328
  %1367 = vst.msk [vmem:[%s8 + $0x48] sm:$0xff] %vm1195, %v1331
  %1368 = vst.msk [vmem:[%s8 + $0x50] sm:$0xff] %vm1195, %v1336
  %1369 = vst.msk [vmem:[%s8 + $0x58] sm:$0xff] %vm1195, %v1339
  %1370 = vst.msk [vmem:[%s8 + $0x60] sm:$0xff] %vm1195, %v1344
  %1371 = vst.msk [vmem:[%s8 + $0x68] sm:$0xff] %vm1195, %v1347
  %1372 = vst.msk [vmem:[%s8 + $0x70] sm:$0xff] %vm1195, %v1352
  %1373 = vst.msk [vmem:[%s8 + $0x78] sm:$0xff] %vm1195, %v1355
  // Predicated region
  $region45: #{generator_forward.7} parent=0 // pred_check
    _
  $region46: #{generator_forward.7} parent=0 // pred_check_branch
    %1375 = sbr.rel (0) target = $region48
  $region47: #{generator_forward.7} parent=0 // pred_region
    _
  $region48: #{generator_forward.7} parent=0 // pred_fallthru
    _
  // Predicated region
  $region49: #{generator_forward.7} parent=0 // pred_check
    _
  $region50: #{generator_forward.7} parent=0 // pred_check_branch
    %1377 = sbr.rel (0) target = $region52
  $region51: #{generator_forward.7} parent=0 // pred_region
    _
  $region52: #{generator_forward.7} parent=0 // pred_fallthru
    _

</llo_original>
